<compile_context>
chip_gen: v6e
topology: v6e:2x2x1
jax: 0.10.0
libtpu: 0.0.40
codegen_flags: <defaults>
</compile_context>

<pallas_src>
import functools

import jax
import jax.numpy as jnp
from jax.experimental import pallas as pl
from jax.experimental.pallas import tpu as pltpu


# ----------------------------------------------------------------------------
# Static model hyper-parameters (NOT in the params dict -> never traced)
# ----------------------------------------------------------------------------
D = 32            # transformer hidden dim
NUM_HEADS = 4
HEAD_DIM = D // NUM_HEADS
MLP_DIM = 64
TOKENS = 16       # 4x4 patch grid
LN_EPS = 1e-5


# ----------------------------------------------------------------------------
# Pallas kernels
# ----------------------------------------------------------------------------

def _mm_bias_kernel(x_ref, w_ref, b_ref, o_ref, *, relu):
    """o = act(x @ w + b); bias broadcasts over rows."""
    acc = jnp.dot(x_ref[...], w_ref[...], preferred_element_type=jnp.float32)
    acc = acc + b_ref[...]
    if relu:
        acc = jnp.maximum(acc, 0.0)
    o_ref[...] = acc.astype(o_ref.dtype)


def _mm_bias_res_kernel(x_ref, w_ref, b_ref, r_ref, o_ref):
    """o = x @ w + b + residual  (used to fuse the pos-embed add)."""
    acc = jnp.dot(x_ref[...], w_ref[...], preferred_element_type=jnp.float32)
    o_ref[...] = (acc + b_ref[...] + r_ref[...]).astype(o_ref.dtype)


def _mm2_kernel(x_ref, w1_ref, b1_ref, w2_ref, b2_ref, o_ref):
    """o = (relu(x @ w1 + b1)) @ w2 + b2   (fused Conv3x3+ReLU -> Conv1x1)."""
    h = jnp.dot(x_ref[...], w1_ref[...], preferred_element_type=jnp.float32)
    h = jnp.maximum(h + b1_ref[...], 0.0)
    acc = jnp.dot(h, w2_ref[...], preferred_element_type=jnp.float32) + b2_ref[...]
    o_ref[...] = acc.astype(o_ref.dtype)


def _transformer_block_kernel(tok_ref, vecs_ref, hm_ref,
                              wq_ref, wk_ref, wv_ref, wo_ref,
                              w1_ref, b1_ref, w2_ref, o_ref,
                              *, num_heads, eps):
    """One full pre-LN transformer encoder block for a single batch element.

    vecs_ref rows: 0 ln1_g, 1 ln1_b, 2 ln2_g, 3 ln2_b,
                   4 b_q,   5 b_k,   6 b_v,   7 b_o,   8 b_fc2
    hm_ref:  [num_heads, D] head mask (1.0 where channel belongs to that head).
    """
    x = tok_ref[0]                       # [T, D]
    vecs = vecs_ref[...]                 # [9, D]
    hm = hm_ref[...]                     # [nh, D]
    T, Dm = x.shape
    dh = Dm // num_heads
    scale = 1.0 / (float(dh) ** 0.5)

    def layer_norm(v, g, b):
        mu = jnp.mean(v, axis=-1, keepdims=True)
        var = jnp.mean((v - mu) ** 2, axis=-1, keepdims=True)
        return (v - mu) * jax.lax.rsqrt(var + eps) * g + b

    # ---- Multi-head self-attention (pre-LN) ----
    h = layer_norm(x, vecs[0:1, :], vecs[1:2, :])
    # Fold 1/sqrt(dh) into Q once (cheaper than scaling every score tensor).
    q = (jnp.dot(h, wq_ref[...], preferred_element_type=jnp.float32) + vecs[4:5, :]) * scale
    k = jnp.dot(h, wk_ref[...], preferred_element_type=jnp.float32) + vecs[5:6, :]
    v = jnp.dot(h, wv_ref[...], preferred_element_type=jnp.float32) + vecs[6:7, :]

    # Per-head attention, but every contraction stays full-D (32 wide) via a
    # head mask instead of slicing out Dh=8 channels (avoids tiny MXU tiles).
    o = jnp.zeros((T, Dm), jnp.float32)
    for head in range(num_heads):            # static unroll, nh = 4
        mask = hm[head:head + 1, :]          # [1, D]
        s = jax.lax.dot_general((q * mask), k, (((1,), (1,)), ((), ())),
                                preferred_element_type=jnp.float32)   # [T, T]
        m = jnp.max(s, axis=-1, keepdims=True)
        e = jnp.exp(s - m)
        p = e * pl.reciprocal(jnp.sum(e, axis=-1, keepdims=True), approx=True)
        o = o + jnp.dot(p, v * mask, preferred_element_type=jnp.float32)

    attn = jnp.dot(o, wo_ref[...], preferred_element_type=jnp.float32) + vecs[7:8, :]
    x = x + attn                              # residual (fused, no extra kernel)

    # ---- MLP (pre-LN) ----
    h = layer_norm(x, vecs[2:3, :], vecs[3:4, :])
    h = jnp.dot(h, w1_ref[...], preferred_element_type=jnp.float32) + b1_ref[...]
    h = jnp.maximum(h, 0.0)
    h = jnp.dot(h, w2_ref[...], preferred_element_type=jnp.float32) + vecs[8:9, :]
    o_ref[0] = (x + h).astype(o_ref.dtype)    # residual (fused)


# ----------------------------------------------------------------------------
# Thin wrappers (whole operands fit in VMEM -> simplest pallas_call form)
# ----------------------------------------------------------------------------

def matmul_bias(x, w, b, *, relu=False, residual=None):
    """o = act(x @ w + b [+ residual]).  x:[M,K], w:[K,N], b:[N]."""
    M, K = x.shape
    _, N = w.shape
    b2 = b.reshape(1, N).astype(jnp.float32)
    x = x.astype(jnp.float32)
    w = w.astype(jnp.float32)
    if residual is None:
        return pl.pallas_call(
            functools.partial(_mm_bias_kernel, relu=relu),
            out_shape=jax.ShapeDtypeStruct((M, N), jnp.float32),
        )(x, w, b2)
    return pl.pallas_call(
        _mm_bias_res_kernel,
        out_shape=jax.ShapeDtypeStruct((M, N), jnp.float32),
    )(x, w, b2, residual.astype(jnp.float32))


def _im2col(x_nhwc, kh, kw, stride, pad):
    """NHWC im2col (XLA glue).  Returns patches [B*oh*ow, kh*kw*C], oh, ow."""
    B, H, W, C = x_nhwc.shape
    x = jnp.pad(x_nhwc, ((0, 0), (pad, pad), (pad, pad), (0, 0)))
    Hp, Wp = H + 2 * pad, W + 2 * pad
    oh = (Hp - kh) // stride + 1
    ow = (Wp - kw) // stride + 1
    cols = []
    for i in range(kh):
        for j in range(kw):
            cols.append(x[:, i:i + stride * oh:stride, j:j + stride * ow:stride, :])
    patches = jnp.concatenate(cols, axis=-1).reshape(B * oh * ow, kh * kw * C)
    return patches, oh, ow


def _conv_weight_as_matrix(w):
    """torch Conv2d weight [Cout,Cin,kh,kw] -> [kh*kw*Cin, Cout] matching _im2col."""
    Cout, Cin, kh, kw = w.shape
    return jnp.transpose(w, (2, 3, 1, 0)).reshape(kh * kw * Cin, Cout)


def conv2d_nhwc(x, w, b, *, stride=1, pad=0, relu=False, residual=None):
    """Conv2d with torch semantics, NHWC in/out.  One Pallas matmul per conv."""
    B = x.shape[0]
    Cout = w.shape[0]
    kh, kw = w.shape[2], w.shape[3]
    patches, oh, ow = _im2col(x, kh, kw, stride, pad)
    y = matmul_bias(patches, _conv_weight_as_matrix(w), b, relu=relu, residual=residual)
    return y.reshape(B, oh, ow, Cout)


def transformer_block(tokens, p):
    """Fully fused transformer encoder block.  tokens: [B, T, D] f32."""
    B, T, Dm = tokens.shape

    # Pack the nine D-wide vectors into one VMEM operand (fewer tiny DMAs).
    vecs = jnp.stack(
        [p["ln1_g"], p["ln1_b"], p["ln2_g"], p["ln2_b"],
         p["b_qkv"][0:Dm], p["b_qkv"][Dm:2 * Dm], p["b_qkv"][2 * Dm:3 * Dm],
         p["b_o"], p["b_fc2"]], axis=0).astype(jnp.float32)          # [9, D]
    hm = (jnp.arange(Dm)[None, :] // HEAD_DIM ==
          jnp.arange(NUM_HEADS)[:, None]).astype(jnp.float32)        # [nh, D]
    wq = p["w_qkv"][:, 0:Dm]
    wk = p["w_qkv"][:, Dm:2 * Dm]
    wv = p["w_qkv"][:, 2 * Dm:3 * Dm]

    def full_spec(shape):
        nd = len(shape)
        return pl.BlockSpec(shape, lambda b, _nd=nd: (0,) * _nd)

    tok_spec = pl.BlockSpec((1, T, Dm), lambda b: (b, 0, 0))

    flops_per_b = (2 * T * Dm * 3 * Dm                 # QKV
                   + NUM_HEADS * 4 * T * T * Dm        # scores + PV
                   + 2 * T * Dm * Dm                   # out proj
                   + 4 * T * Dm * MLP_DIM)             # MLP
    bytes_acc = 4 * (2 * B * T * Dm + 4 * Dm * Dm + 2 * Dm * MLP_DIM
                     + (9 + NUM_HEADS) * Dm + MLP_DIM)

    return pl.pallas_call(
        functools.partial(_transformer_block_kernel,
                          num_heads=NUM_HEADS, eps=LN_EPS),
        out_shape=jax.ShapeDtypeStruct((B, T, Dm), jnp.float32),
        grid=(B,),
        in_specs=[
            tok_spec,
            full_spec((9, Dm)),
            full_spec((NUM_HEADS, Dm)),
            full_spec((Dm, Dm)),          # wq
            full_spec((Dm, Dm)),          # wk
            full_spec((Dm, Dm)),          # wv
            full_spec((Dm, Dm)),          # wo
            full_spec((Dm, MLP_DIM)),     # w_fc1
            full_spec((1, MLP_DIM)),      # b_fc1
            full_spec((MLP_DIM, Dm)),     # w_fc2
        ],
        out_specs=tok_spec,
        compiler_params=pltpu.CompilerParams(dimension_semantics=("parallel",)),
        cost_estimate=pl.CostEstimate(
            flops=B * flops_per_b,
            transcendentals=B * (NUM_HEADS * T * T + 3 * T),
            bytes_accessed=bytes_acc),
    )(tokens.astype(jnp.float32), vecs, hm,
      wq.astype(jnp.float32), wk.astype(jnp.float32), wv.astype(jnp.float32),
      p["w_o"].astype(jnp.float32),
      p["w_fc1"].astype(jnp.float32), p["b_fc1"].reshape(1, -1).astype(jnp.float32),
      p["w_fc2"].astype(jnp.float32))


# ----------------------------------------------------------------------------
# TransUNet sub-modules (all NHWC internally)
# ----------------------------------------------------------------------------

def backbone(x_nhwc, p):
    # Conv2d(4 -> 8, k3, s2, p1) + ReLU
    return conv2d_nhwc(x_nhwc, p["w_bb"], p["b_bb"], stride=2, pad=1, relu=True)


def embedding(features_nhwc, p):
    # Patch-embed Conv2d(8 -> 32, k2, s2); pos-embed add fused into the matmul.
    B = features_nhwc.shape[0]
    pos = jnp.broadcast_to(p["pos"], (B, TOKENS, D)).reshape(B * TOKENS, D)
    emb = conv2d_nhwc(features_nhwc, p["w_emb"], p["b_emb"],
                      stride=2, pad=0, residual=pos)                # [B,4,4,32]
    return emb.reshape(B, TOKENS, D)                                # [B,16,32]


def upsampler(tokens, features_nhwc, p):
    B, T, Dm = tokens.shape
    g = int(round(T ** 0.5))
    x = tokens.reshape(B, g, g, Dm)                                  # [B,4,4,32]
    x = jnp.repeat(jnp.repeat(x, 2, axis=1), 2, axis=2)              # [B,8,8,32]
    x = jnp.concatenate([x, features_nhwc], axis=-1)                 # [B,8,8,40]

    # Conv3x3(40->16)+ReLU then Conv1x1(16->1), fused into one kernel.
    # The 1x1 conv is pointwise, so it commutes with the x2 nearest-neighbour
    # upsample; applying it before the upsample is numerically identical.
    patches, oh, ow = _im2col(x, 3, 3, 1, 1)                         # [B*64, 360]
    w1 = _conv_weight_as_matrix(p["w_up1"])                          # [360, 16]
    w2 = _conv_weight_as_matrix(p["w_out"])                          # [16, 1]
    y = pl.pallas_call(
        _mm2_kernel,
        out_shape=jax.ShapeDtypeStruct((patches.shape[0], w2.shape[1]), jnp.float32),
    )(patches.astype(jnp.float32), w1.astype(jnp.float32),
      p["b_up1"].reshape(1, -1).astype(jnp.float32),
      w2.astype(jnp.float32), p["b_out"].reshape(1, -1).astype(jnp.float32))
    y = y.reshape(B, oh, ow, 1)                                      # [B,8,8,1]
    y = jnp.repeat(jnp.repeat(y, 2, axis=1), 2, axis=2)              # [B,16,16,1]
    return y


def transunet_forward(x_nchw, params):
    x = jnp.transpose(x_nchw, (0, 2, 3, 1))            # NCHW -> NHWC, once
    features = backbone(x, params)                     # [B,8,8,8]
    embed_features = embedding(features, params)       # [B,16,32]
    trans_features = transformer_block(embed_features, params)
    output = upsampler(trans_features, features, params)   # [B,16,16,1]
    return jnp.transpose(output, (0, 3, 1, 2))          # NHWC -> NCHW, once


# ----------------------------------------------------------------------------
# Deterministic parameter initialization
# ----------------------------------------------------------------------------

def init_params(key):
    def nrm(k, shape, scale=0.05):
        return (scale * jax.random.normal(k, shape)).astype(jnp.float32)

    keys = jax.random.split(key, 12)
    return {
        # backbone: Conv2d(4->8, 3x3)
        "w_bb": nrm(keys[0], (8, 4, 3, 3)), "b_bb": jnp.zeros((8,), jnp.float32),
        # embedding: Conv2d(8->32, 2x2 patch), pos embed [1,16,32]
        "w_emb": nrm(keys[1], (D, 8, 2, 2)), "b_emb": jnp.zeros((D,), jnp.float32),
        "pos": nrm(keys[2], (1, TOKENS, D)),
        # transformer block
        "ln1_g": jnp.ones((D,), jnp.float32), "ln1_b": jnp.zeros((D,), jnp.float32),
        "w_qkv": nrm(keys[3], (D, 3 * D)), "b_qkv": jnp.zeros((3 * D,), jnp.float32),
        "w_o": nrm(keys[4], (D, D)), "b_o": jnp.zeros((D,), jnp.float32),
        "ln2_g": jnp.ones((D,), jnp.float32), "ln2_b": jnp.zeros((D,), jnp.float32),
        "w_fc1": nrm(keys[5], (D, MLP_DIM)), "b_fc1": jnp.zeros((MLP_DIM,), jnp.float32),
        "w_fc2": nrm(keys[6], (MLP_DIM, D)), "b_fc2": jnp.zeros((D,), jnp.float32),
        # upsampler
        "w_up1": nrm(keys[7], (16, D + 8, 3, 3)), "b_up1": jnp.zeros((16,), jnp.float32),
        "w_out": nrm(keys[8], (1, 16, 1, 1)), "b_out": jnp.zeros((1,), jnp.float32),
    }


# ----------------------------------------------------------------------------

if __name__ == "__main__":
    key = jax.random.PRNGKey(0)
    k_x, k_p = jax.random.split(key)
    x = jax.random.normal(k_x, (2, 4, 16, 16), dtype=jnp.float32)   # NCHW like PyTorch
    params = init_params(k_p)

    fwd = jax.jit(transunet_forward)
    out = jax.block_until_ready(fwd(x, params))

    assert out.shape == (2, 1, 16, 16), out.shape
    assert out.dtype == jnp.float32
    assert bool(jnp.all(jnp.isfinite(out)))
    print("KERNEL_OK")
</pallas_src>

<mosaic_0001>
module attributes {stable_mosaic.version = 11 : i64} {
  func.func @_mm_bias_kernel(%arg0: memref<128x36xf32, #tpu.memory_space<vmem>>, %arg1: memref<36x8xf32, #tpu.memory_space<vmem>>, %arg2: memref<1x8xf32, #tpu.memory_space<vmem>>, %arg3: memref<128x8xf32, #tpu.memory_space<vmem>>) attributes {dimension_semantics = [], scalar_prefetch = 0 : i64, scratch_operands = 0 : i64, tpu.core_type = #tpu.core_type<tc>} {
    %c0 = arith.constant 0 : index
    %c0_0 = arith.constant 0 : index
    %0 = vector.load %arg0[%c0, %c0_0] : memref<128x36xf32, #tpu.memory_space<vmem>>, vector<128x36xf32>
    %c0_1 = arith.constant 0 : index
    %c0_2 = arith.constant 0 : index
    %1 = vector.load %arg1[%c0_1, %c0_2] : memref<36x8xf32, #tpu.memory_space<vmem>>, vector<36x8xf32>
    %cst = arith.constant dense<0.000000e+00> : vector<128x8xf32>
    %2 = tpu.matmul %0, %1, %cst {dimension_numbers = #tpu.dot_dimension_numbers<[1], [0], [0], [1], [0, 0, 1, 1], [], []>} : vector<128x36xf32>, vector<36x8xf32>, vector<128x8xf32> -> vector<128x8xf32>
    %c0_3 = arith.constant 0 : index
    %c0_4 = arith.constant 0 : index
    %3 = vector.load %arg2[%c0_3, %c0_4] : memref<1x8xf32, #tpu.memory_space<vmem>>, vector<1x8xf32>
    %4 = vector.broadcast %3 : vector<1x8xf32> to vector<128x8xf32>
    %5 = arith.addf %2, %4 : vector<128x8xf32>
    %cst_5 = arith.constant 0.000000e+00 : f32
    %6 = vector.broadcast %cst_5 : f32 to vector<128x8xf32>
    %7 = arith.maximumf %5, %6 : vector<128x8xf32>
    %c0_6 = arith.constant 0 : index
    %c0_7 = arith.constant 0 : index
    %8 = vector.load %arg3[%c0_6, %c0_7] : memref<128x8xf32, #tpu.memory_space<vmem>>, vector<128x8xf32>
    tpu.vector_store %arg3[%c0_6, %c0_7], %7 {strides = array<i32>} : memref<128x8xf32, #tpu.memory_space<vmem>>, vector<128x8xf32>,
    return
  }
}

module attributes {stable_mosaic.version = 11 : i64} {
  func.func @_mm_bias_res_kernel(%arg0: memref<32x32xf32, #tpu.memory_space<vmem>>, %arg1: memref<32x32xf32, #tpu.memory_space<vmem>>, %arg2: memref<1x32xf32, #tpu.memory_space<vmem>>, %arg3: memref<32x32xf32, #tpu.memory_space<vmem>>, %arg4: memref<32x32xf32, #tpu.memory_space<vmem>>) attributes {dimension_semantics = [], scalar_prefetch = 0 : i64, scratch_operands = 0 : i64, tpu.core_type = #tpu.core_type<tc>} {
    %c0 = arith.constant 0 : index
    %c0_0 = arith.constant 0 : index
    %0 = vector.load %arg0[%c0, %c0_0] : memref<32x32xf32, #tpu.memory_space<vmem>>, vector<32x32xf32>
    %c0_1 = arith.constant 0 : index
    %c0_2 = arith.constant 0 : index
    %1 = vector.load %arg1[%c0_1, %c0_2] : memref<32x32xf32, #tpu.memory_space<vmem>>, vector<32x32xf32>
    %cst = arith.constant dense<0.000000e+00> : vector<32x32xf32>
    %2 = tpu.matmul %0, %1, %cst {dimension_numbers = #tpu.dot_dimension_numbers<[1], [0], [0], [1], [0, 0, 1, 1], [], []>} : vector<32x32xf32>, vector<32x32xf32>, vector<32x32xf32> -> vector<32x32xf32>
    %c0_3 = arith.constant 0 : index
    %c0_4 = arith.constant 0 : index
    %3 = vector.load %arg2[%c0_3, %c0_4] : memref<1x32xf32, #tpu.memory_space<vmem>>, vector<1x32xf32>
    %4 = vector.broadcast %3 : vector<1x32xf32> to vector<32x32xf32>
    %5 = arith.addf %2, %4 : vector<32x32xf32>
    %c0_5 = arith.constant 0 : index
    %c0_6 = arith.constant 0 : index
    %6 = vector.load %arg3[%c0_5, %c0_6] : memref<32x32xf32, #tpu.memory_space<vmem>>, vector<32x32xf32>
    %7 = arith.addf %5, %6 : vector<32x32xf32>
    %c0_7 = arith.constant 0 : index
    %c0_8 = arith.constant 0 : index
    %8 = vector.load %arg4[%c0_7, %c0_8] : memref<32x32xf32, #tpu.memory_space<vmem>>, vector<32x32xf32>
    tpu.vector_store %arg4[%c0_7, %c0_8], %7 {strides = array<i32>} : memref<32x32xf32, #tpu.memory_space<vmem>>, vector<32x32xf32>,
    return
  }
}

module attributes {stable_mosaic.version = 11 : i64} {
  func.func @_transformer_block_kernel(%arg0: i32, %arg1: memref<1x16x32xf32, #tpu.memory_space<vmem>>, %arg2: memref<9x32xf32, #tpu.memory_space<vmem>>, %arg3: memref<4x32xf32, #tpu.memory_space<vmem>>, %arg4: memref<32x32xf32, #tpu.memory_space<vmem>>, %arg5: memref<32x32xf32, #tpu.memory_space<vmem>>, %arg6: memref<32x32xf32, #tpu.memory_space<vmem>>, %arg7: memref<32x32xf32, #tpu.memory_space<vmem>>, %arg8: memref<32x64xf32, #tpu.memory_space<vmem>>, %arg9: memref<1x64xf32, #tpu.memory_space<vmem>>, %arg10: memref<64x32xf32, #tpu.memory_space<vmem>>, %arg11: memref<1x16x32xf32, #tpu.memory_space<vmem>>) attributes {dimension_semantics = [#tpu.dimension_semantics<parallel>], iteration_bounds = array<i64: 2>, scalar_prefetch = 0 : i64, scratch_operands = 0 : i64, tpu.core_type = #tpu.core_type<tc>, window_params = [{transform_indices = @transform_0, window_bounds = array<i64: 1, 16, 32>}, {pipeline_mode = #tpu.pipeline_mode<synchronous>, transform_indices = @transform_1, window_bounds = array<i64: 9, 32>}, {pipeline_mode = #tpu.pipeline_mode<synchronous>, transform_indices = @transform_2, window_bounds = array<i64: 4, 32>}, {pipeline_mode = #tpu.pipeline_mode<synchronous>, transform_indices = @transform_3, window_bounds = array<i64: 32, 32>}, {pipeline_mode = #tpu.pipeline_mode<synchronous>, transform_indices = @transform_4, window_bounds = array<i64: 32, 32>}, {pipeline_mode = #tpu.pipeline_mode<synchronous>, transform_indices = @transform_5, window_bounds = array<i64: 32, 32>}, {pipeline_mode = #tpu.pipeline_mode<synchronous>, transform_indices = @transform_6, window_bounds = array<i64: 32, 32>}, {pipeline_mode = #tpu.pipeline_mode<synchronous>, transform_indices = @transform_7, window_bounds = array<i64: 32, 64>}, {pipeline_mode = #tpu.pipeline_mode<synchronous>, transform_indices = @transform_8, window_bounds = array<i64: 1, 64>}, {pipeline_mode = #tpu.pipeline_mode<synchronous>, transform_indices = @transform_9, window_bounds = array<i64: 64, 32>}, {transform_indices = @transform_10, window_bounds = array<i64: 1, 16, 32>}]} {
    %c0 = arith.constant 0 : index
    %c0_0 = arith.constant 0 : index
    %c0_1 = arith.constant 0 : index
    %0 = vector.load %arg1[%c0, %c0_0, %c0_1] : memref<1x16x32xf32, #tpu.memory_space<vmem>>, vector<1x16x32xf32>
    %1 = vector.shape_cast %0 : vector<1x16x32xf32> to vector<16x32xf32>
    %c0_2 = arith.constant 0 : index
    %c0_3 = arith.constant 0 : index
    %2 = vector.load %arg2[%c0_2, %c0_3] : memref<9x32xf32, #tpu.memory_space<vmem>>, vector<9x32xf32>
    %c0_4 = arith.constant 0 : index
    %c0_5 = arith.constant 0 : index
    %3 = vector.load %arg3[%c0_4, %c0_5] : memref<4x32xf32, #tpu.memory_space<vmem>>, vector<4x32xf32>
    %4 = vector.extract_strided_slice %2 {offsets = [0, 0], sizes = [1, 32], strides = [1, 1]} : vector<9x32xf32> to vector<1x32xf32>
    %5 = vector.extract_strided_slice %2 {offsets = [1, 0], sizes = [1, 32], strides = [1, 1]} : vector<9x32xf32> to vector<1x32xf32>
    %cst = arith.constant dense<0.000000e+00> : vector<16xf32>
    %6 = vector.multi_reduction <add>, %1, %cst [1] : vector<16x32xf32> to vector<16xf32>
    %7 = vector.shape_cast %6 : vector<16xf32> to vector<16x1xf32>
    %cst_6 = arith.constant 3.200000e+01 : f32
    %8 = vector.broadcast %cst_6 : f32 to vector<16x1xf32>
    %9 = arith.divf %7, %8 : vector<16x1xf32>
    %10 = vector.broadcast %9 : vector<16x1xf32> to vector<16x32xf32>
    %11 = arith.subf %1, %10 : vector<16x32xf32>
    %12 = arith.mulf %11, %11 : vector<16x32xf32>
    %cst_7 = arith.constant dense<0.000000e+00> : vector<16xf32>
    %13 = vector.multi_reduction <add>, %12, %cst_7 [1] : vector<16x32xf32> to vector<16xf32>
    %14 = vector.shape_cast %13 : vector<16xf32> to vector<16x1xf32>
    %cst_8 = arith.constant 3.200000e+01 : f32
    %15 = vector.broadcast %cst_8 : f32 to vector<16x1xf32>
    %16 = arith.divf %14, %15 : vector<16x1xf32>
    %17 = vector.broadcast %9 : vector<16x1xf32> to vector<16x32xf32>
    %18 = arith.subf %1, %17 : vector<16x32xf32>
    %cst_9 = arith.constant 9.99999974E-6 : f32
    %19 = vector.broadcast %cst_9 : f32 to vector<16x1xf32>
    %20 = arith.addf %16, %19 : vector<16x1xf32>
    %21 = math.rsqrt %20 : vector<16x1xf32>
    %22 = vector.broadcast %21 : vector<16x1xf32> to vector<16x32xf32>
    %23 = arith.mulf %18, %22 : vector<16x32xf32>
    %24 = vector.broadcast %4 : vector<1x32xf32> to vector<16x32xf32>
    %25 = arith.mulf %23, %24 : vector<16x32xf32>
    %26 = vector.broadcast %5 : vector<1x32xf32> to vector<16x32xf32>
    %27 = arith.addf %25, %26 : vector<16x32xf32>
    %c0_10 = arith.constant 0 : index
    %c0_11 = arith.constant 0 : index
    %28 = vector.load %arg4[%c0_10, %c0_11] : memref<32x32xf32, #tpu.memory_space<vmem>>, vector<32x32xf32>
    %cst_12 = arith.constant dense<0.000000e+00> : vector<16x32xf32>
    %29 = tpu.matmul %27, %28, %cst_12 {dimension_numbers = #tpu.dot_dimension_numbers<[1], [0], [0], [1], [0, 0, 1, 1], [], []>} : vector<16x32xf32>, vector<32x32xf32>, vector<16x32xf32> -> vector<16x32xf32>
    %30 = vector.extract_strided_slice %2 {offsets = [4, 0], sizes = [1, 32], strides = [1, 1]} : vector<9x32xf32> to vector<1x32xf32>
    %31 = vector.broadcast %30 : vector<1x32xf32> to vector<16x32xf32>
    %32 = arith.addf %29, %31 : vector<16x32xf32>
    %cst_13 = arith.constant 0.353553385 : f32
    %33 = vector.broadcast %cst_13 : f32 to vector<16x32xf32>
    %34 = arith.mulf %32, %33 : vector<16x32xf32>
    %c0_14 = arith.constant 0 : index
    %c0_15 = arith.constant 0 : index
    %35 = vector.load %arg5[%c0_14, %c0_15] : memref<32x32xf32, #tpu.memory_space<vmem>>, vector<32x32xf32>
    %cst_16 = arith.constant dense<0.000000e+00> : vector<16x32xf32>
    %36 = tpu.matmul %27, %35, %cst_16 {dimension_numbers = #tpu.dot_dimension_numbers<[1], [0], [0], [1], [0, 0, 1, 1], [], []>} : vector<16x32xf32>, vector<32x32xf32>, vector<16x32xf32> -> vector<16x32xf32>
    %37 = vector.extract_strided_slice %2 {offsets = [5, 0], sizes = [1, 32], strides = [1, 1]} : vector<9x32xf32> to vector<1x32xf32>
    %38 = vector.broadcast %37 : vector<1x32xf32> to vector<16x32xf32>
    %39 = arith.addf %36, %38 : vector<16x32xf32>
    %c0_17 = arith.constant 0 : index
    %c0_18 = arith.constant 0 : index
    %40 = vector.load %arg6[%c0_17, %c0_18] : memref<32x32xf32, #tpu.memory_space<vmem>>, vector<32x32xf32>
    %cst_19 = arith.constant dense<0.000000e+00> : vector<16x32xf32>
    %41 = tpu.matmul %27, %40, %cst_19 {dimension_numbers = #tpu.dot_dimension_numbers<[1], [0], [0], [1], [0, 0, 1, 1], [], []>} : vector<16x32xf32>, vector<32x32xf32>, vector<16x32xf32> -> vector<16x32xf32>
    %42 = vector.extract_strided_slice %2 {offsets = [6, 0], sizes = [1, 32], strides = [1, 1]} : vector<9x32xf32> to vector<1x32xf32>
    %43 = vector.broadcast %42 : vector<1x32xf32> to vector<16x32xf32>
    %44 = arith.addf %41, %43 : vector<16x32xf32>
    %cst_20 = arith.constant 0.000000e+00 : f32
    %45 = vector.broadcast %cst_20 : f32 to vector<16x32xf32>
    %46 = vector.extract_strided_slice %3 {offsets = [0, 0], sizes = [1, 32], strides = [1, 1]} : vector<4x32xf32> to vector<1x32xf32>
    %47 = vector.broadcast %46 : vector<1x32xf32> to vector<16x32xf32>
    %48 = arith.mulf %34, %47 : vector<16x32xf32>
    %cst_21 = arith.constant dense<0.000000e+00> : vector<16x16xf32>
    %49 = tpu.matmul %48, %39, %cst_21 {dimension_numbers = #tpu.dot_dimension_numbers<[1], [1], [0], [0], [0, 0, 1, 0], [], []>} : vector<16x32xf32>, vector<16x32xf32>, vector<16x16xf32> -> vector<16x16xf32>
    %cst_22 = arith.constant dense<0xFF800000> : vector<16xf32>
    %50 = vector.multi_reduction <maximumf>, %49, %cst_22 [1] : vector<16x16xf32> to vector<16xf32>
    %51 = vector.shape_cast %50 : vector<16xf32> to vector<16x1xf32>
    %52 = vector.broadcast %51 : vector<16x1xf32> to vector<16x16xf32>
    %53 = arith.subf %49, %52 : vector<16x16xf32>
    %54 = math.exp %53 : vector<16x16xf32>
    %cst_23 = arith.constant dense<0.000000e+00> : vector<16xf32>
    %55 = vector.multi_reduction <add>, %54, %cst_23 [1] : vector<16x16xf32> to vector<16xf32>
    %56 = vector.shape_cast %55 : vector<16xf32> to vector<16x1xf32>
    %57 = tpu.reciprocal %56 {approx = true} : vector<16x1xf32> -> vector<16x1xf32>
    %58 = vector.broadcast %57 : vector<16x1xf32> to vector<16x16xf32>
    %59 = arith.mulf %54, %58 : vector<16x16xf32>
    %60 = vector.broadcast %46 : vector<1x32xf32> to vector<16x32xf32>
    %61 = arith.mulf %44, %60 : vector<16x32xf32>
    %cst_24 = arith.constant dense<0.000000e+00> : vector<16x32xf32>
    %62 = tpu.matmul %59, %61, %cst_24 {dimension_numbers = #tpu.dot_dimension_numbers<[1], [0], [0], [1], [0, 0, 1, 1], [], []>} : vector<16x16xf32>, vector<16x32xf32>, vector<16x32xf32> -> vector<16x32xf32>
    %63 = arith.addf %45, %62 : vector<16x32xf32>
    %64 = vector.extract_strided_slice %3 {offsets = [1, 0], sizes = [1, 32], strides = [1, 1]} : vector<4x32xf32> to vector<1x32xf32>
    %65 = vector.broadcast %64 : vector<1x32xf32> to vector<16x32xf32>
    %66 = arith.mulf %34, %65 : vector<16x32xf32>
    %cst_25 = arith.constant dense<0.000000e+00> : vector<16x16xf32>
    %67 = tpu.matmul %66, %39, %cst_25 {dimension_numbers = #tpu.dot_dimension_numbers<[1], [1], [0], [0], [0, 0, 1, 0], [], []>} : vector<16x32xf32>, vector<16x32xf32>, vector<16x16xf32> -> vector<16x16xf32>
    %cst_26 = arith.constant dense<0xFF800000> : vector<16xf32>
    %68 = vector.multi_reduction <maximumf>, %67, %cst_26 [1] : vector<16x16xf32> to vector<16xf32>
    %69 = vector.shape_cast %68 : vector<16xf32> to vector<16x1xf32>
    %70 = vector.broadcast %69 : vector<16x1xf32> to vector<16x16xf32>
    %71 = arith.subf %67, %70 : vector<16x16xf32>
    %72 = math.exp %71 : vector<16x16xf32>
    %cst_27 = arith.constant dense<0.000000e+00> : vector<16xf32>
    %73 = vector.multi_reduction <add>, %72, %cst_27 [1] : vector<16x16xf32> to vector<16xf32>
    %74 = vector.shape_cast %73 : vector<16xf32> to vector<16x1xf32>
    %75 = tpu.reciprocal %74 {approx = true} : vector<16x1xf32> -> vector<16x1xf32>
    %76 = vector.broadcast %75 : vector<16x1xf32> to vector<16x16xf32>
    %77 = arith.mulf %72, %76 : vector<16x16xf32>
    %78 = vector.broadcast %64 : vector<1x32xf32> to vector<16x32xf32>
    %79 = arith.mulf %44, %78 : vector<16x32xf32>
    %cst_28 = arith.constant dense<0.000000e+00> : vector<16x32xf32>
    %80 = tpu.matmul %77, %79, %cst_28 {dimension_numbers = #tpu.dot_dimension_numbers<[1], [0], [0], [1], [0, 0, 1, 1], [], []>} : vector<16x16xf32>, vector<16x32xf32>, vector<16x32xf32> -> vector<16x32xf32>
    %81 = arith.addf %63, %80 : vector<16x32xf32>
    %82 = vector.extract_strided_slice %3 {offsets = [2, 0], sizes = [1, 32], strides = [1, 1]} : vector<4x32xf32> to vector<1x32xf32>
    %83 = vector.broadcast %82 : vector<1x32xf32> to vector<16x32xf32>
    %84 = arith.mulf %34, %83 : vector<16x32xf32>
    %cst_29 = arith.constant dense<0.000000e+00> : vector<16x16xf32>
    %85 = tpu.matmul %84, %39, %cst_29 {dimension_numbers = #tpu.dot_dimension_numbers<[1], [1], [0], [0], [0, 0, 1, 0], [], []>} : vector<16x32xf32>, vector<16x32xf32>, vector<16x16xf32> -> vector<16x16xf32>
    %cst_30 = arith.constant dense<0xFF800000> : vector<16xf32>
    %86 = vector.multi_reduction <maximumf>, %85, %cst_30 [1] : vector<16x16xf32> to vector<16xf32>
    %87 = vector.shape_cast %86 : vector<16xf32> to vector<16x1xf32>
    %88 = vector.broadcast %87 : vector<16x1xf32> to vector<16x16xf32>
    %89 = arith.subf %85, %88 : vector<16x16xf32>
    %90 = math.exp %89 : vector<16x16xf32>
    %cst_31 = arith.constant dense<0.000000e+00> : vector<16xf32>
    %91 = vector.multi_reduction <add>, %90, %cst_31 [1] : vector<16x16xf32> to vector<16xf32>
    %92 = vector.shape_cast %91 : vector<16xf32> to vector<16x1xf32>
    %93 = tpu.reciprocal %92 {approx = true} : vector<16x1xf32> -> vector<16x1xf32>
    %94 = vector.broadcast %93 : vector<16x1xf32> to vector<16x16xf32>
    %95 = arith.mulf %90, %94 : vector<16x16xf32>
    %96 = vector.broadcast %82 : vector<1x32xf32> to vector<16x32xf32>
    %97 = arith.mulf %44, %96 : vector<16x32xf32>
    %cst_32 = arith.constant dense<0.000000e+00> : vector<16x32xf32>
    %98 = tpu.matmul %95, %97, %cst_32 {dimension_numbers = #tpu.dot_dimension_numbers<[1], [0], [0], [1], [0, 0, 1, 1], [], []>} : vector<16x16xf32>, vector<16x32xf32>, vector<16x32xf32> -> vector<16x32xf32>
    %99 = arith.addf %81, %98 : vector<16x32xf32>
    %100 = vector.extract_strided_slice %3 {offsets = [3, 0], sizes = [1, 32], strides = [1, 1]} : vector<4x32xf32> to vector<1x32xf32>
    %101 = vector.broadcast %100 : vector<1x32xf32> to vector<16x32xf32>
    %102 = arith.mulf %34, %101 : vector<16x32xf32>
    %cst_33 = arith.constant dense<0.000000e+00> : vector<16x16xf32>
    %103 = tpu.matmul %102, %39, %cst_33 {dimension_numbers = #tpu.dot_dimension_numbers<[1], [1], [0], [0], [0, 0, 1, 0], [], []>} : vector<16x32xf32>, vector<16x32xf32>, vector<16x16xf32> -> vector<16x16xf32>
    %cst_34 = arith.constant dense<0xFF800000> : vector<16xf32>
    %104 = vector.multi_reduction <maximumf>, %103, %cst_34 [1] : vector<16x16xf32> to vector<16xf32>
    %105 = vector.shape_cast %104 : vector<16xf32> to vector<16x1xf32>
    %106 = vector.broadcast %105 : vector<16x1xf32> to vector<16x16xf32>
    %107 = arith.subf %103, %106 : vector<16x16xf32>
    %108 = math.exp %107 : vector<16x16xf32>
    %cst_35 = arith.constant dense<0.000000e+00> : vector<16xf32>
    %109 = vector.multi_reduction <add>, %108, %cst_35 [1] : vector<16x16xf32> to vector<16xf32>
    %110 = vector.shape_cast %109 : vector<16xf32> to vector<16x1xf32>
    %111 = tpu.reciprocal %110 {approx = true} : vector<16x1xf32> -> vector<16x1xf32>
    %112 = vector.broadcast %111 : vector<16x1xf32> to vector<16x16xf32>
    %113 = arith.mulf %108, %112 : vector<16x16xf32>
    %114 = vector.broadcast %100 : vector<1x32xf32> to vector<16x32xf32>
    %115 = arith.mulf %44, %114 : vector<16x32xf32>
    %cst_36 = arith.constant dense<0.000000e+00> : vector<16x32xf32>
    %116 = tpu.matmul %113, %115, %cst_36 {dimension_numbers = #tpu.dot_dimension_numbers<[1], [0], [0], [1], [0, 0, 1, 1], [], []>} : vector<16x16xf32>, vector<16x32xf32>, vector<16x32xf32> -> vector<16x32xf32>
    %117 = arith.addf %99, %116 : vector<16x32xf32>
    %c0_37 = arith.constant 0 : index
    %c0_38 = arith.constant 0 : index
    %118 = vector.load %arg7[%c0_37, %c0_38] : memref<32x32xf32, #tpu.memory_space<vmem>>, vector<32x32xf32>
    %cst_39 = arith.constant dense<0.000000e+00> : vector<16x32xf32>
    %119 = tpu.matmul %117, %118, %cst_39 {dimension_numbers = #tpu.dot_dimension_numbers<[1], [0], [0], [1], [0, 0, 1, 1], [], []>} : vector<16x32xf32>, vector<32x32xf32>, vector<16x32xf32> -> vector<16x32xf32>
    %120 = vector.extract_strided_slice %2 {offsets = [7, 0], sizes = [1, 32], strides = [1, 1]} : vector<9x32xf32> to vector<1x32xf32>
    %121 = vector.broadcast %120 : vector<1x32xf32> to vector<16x32xf32>
    %122 = arith.addf %119, %121 : vector<16x32xf32>
    %123 = arith.addf %1, %122 : vector<16x32xf32>
    %124 = vector.extract_strided_slice %2 {offsets = [2, 0], sizes = [1, 32], strides = [1, 1]} : vector<9x32xf32> to vector<1x32xf32>
    %125 = vector.extract_strided_slice %2 {offsets = [3, 0], sizes = [1, 32], strides = [1, 1]} : vector<9x32xf32> to vector<1x32xf32>
    %cst_40 = arith.constant dense<0.000000e+00> : vector<16xf32>
    %126 = vector.multi_reduction <add>, %123, %cst_40 [1] : vector<16x32xf32> to vector<16xf32>
    %127 = vector.shape_cast %126 : vector<16xf32> to vector<16x1xf32>
    %cst_41 = arith.constant 3.200000e+01 : f32
    %128 = vector.broadcast %cst_41 : f32 to vector<16x1xf32>
    %129 = arith.divf %127, %128 : vector<16x1xf32>
    %130 = vector.broadcast %129 : vector<16x1xf32> to vector<16x32xf32>
    %131 = arith.subf %123, %130 : vector<16x32xf32>
    %132 = arith.mulf %131, %131 : vector<16x32xf32>
    %cst_42 = arith.constant dense<0.000000e+00> : vector<16xf32>
    %133 = vector.multi_reduction <add>, %132, %cst_42 [1] : vector<16x32xf32> to vector<16xf32>
    %134 = vector.shape_cast %133 : vector<16xf32> to vector<16x1xf32>
    %cst_43 = arith.constant 3.200000e+01 : f32
    %135 = vector.broadcast %cst_43 : f32 to vector<16x1xf32>
    %136 = arith.divf %134, %135 : vector<16x1xf32>
    %137 = vector.broadcast %129 : vector<16x1xf32> to vector<16x32xf32>
    %138 = arith.subf %123, %137 : vector<16x32xf32>
    %cst_44 = arith.constant 9.99999974E-6 : f32
    %139 = vector.broadcast %cst_44 : f32 to vector<16x1xf32>
    %140 = arith.addf %136, %139 : vector<16x1xf32>
    %141 = math.rsqrt %140 : vector<16x1xf32>
    %142 = vector.broadcast %141 : vector<16x1xf32> to vector<16x32xf32>
    %143 = arith.mulf %138, %142 : vector<16x32xf32>
    %144 = vector.broadcast %124 : vector<1x32xf32> to vector<16x32xf32>
    %145 = arith.mulf %143, %144 : vector<16x32xf32>
    %146 = vector.broadcast %125 : vector<1x32xf32> to vector<16x32xf32>
    %147 = arith.addf %145, %146 : vector<16x32xf32>
    %c0_45 = arith.constant 0 : index
    %c0_46 = arith.constant 0 : index
    %148 = vector.load %arg8[%c0_45, %c0_46] : memref<32x64xf32, #tpu.memory_space<vmem>>, vector<32x64xf32>
    %cst_47 = arith.constant dense<0.000000e+00> : vector<16x64xf32>
    %149 = tpu.matmul %147, %148, %cst_47 {dimension_numbers = #tpu.dot_dimension_numbers<[1], [0], [0], [1], [0, 0, 1, 1], [], []>} : vector<16x32xf32>, vector<32x64xf32>, vector<16x64xf32> -> vector<16x64xf32>
    %c0_48 = arith.constant 0 : index
    %c0_49 = arith.constant 0 : index
    %150 = vector.load %arg9[%c0_48, %c0_49] : memref<1x64xf32, #tpu.memory_space<vmem>>, vector<1x64xf32>
    %151 = vector.broadcast %150 : vector<1x64xf32> to vector<16x64xf32>
    %152 = arith.addf %149, %151 : vector<16x64xf32>
    %cst_50 = arith.constant 0.000000e+00 : f32
    %153 = vector.broadcast %cst_50 : f32 to vector<16x64xf32>
    %154 = arith.maximumf %152, %153 : vector<16x64xf32>
    %c0_51 = arith.constant 0 : index
    %c0_52 = arith.constant 0 : index
    %155 = vector.load %arg10[%c0_51, %c0_52] : memref<64x32xf32, #tpu.memory_space<vmem>>, vector<64x32xf32>
    %cst_53 = arith.constant dense<0.000000e+00> : vector<16x32xf32>
    %156 = tpu.matmul %154, %155, %cst_53 {dimension_numbers = #tpu.dot_dimension_numbers<[1], [0], [0], [1], [0, 0, 1, 1], [], []>} : vector<16x64xf32>, vector<64x32xf32>, vector<16x32xf32> -> vector<16x32xf32>
    %157 = vector.extract_strided_slice %2 {offsets = [8, 0], sizes = [1, 32], strides = [1, 1]} : vector<9x32xf32> to vector<1x32xf32>
    %158 = vector.broadcast %157 : vector<1x32xf32> to vector<16x32xf32>
    %159 = arith.addf %156, %158 : vector<16x32xf32>
    %160 = arith.addf %123, %159 : vector<16x32xf32>
    %c0_54 = arith.constant 0 : index
    %c0_55 = arith.constant 0 : index
    %c0_56 = arith.constant 0 : index
    %161 = vector.load %arg11[%c0_54, %c0_55, %c0_56] : memref<1x16x32xf32, #tpu.memory_space<vmem>>, vector<1x16x32xf32>
    %162 = vector.shape_cast %161 : vector<1x16x32xf32> to vector<16x32xf32>
    %163 = vector.shape_cast %160 : vector<16x32xf32> to vector<1x16x32xf32>
    tpu.vector_store %arg11[%c0_54, %c0_55, %c0_56], %163 {strides = array<i32>} : memref<1x16x32xf32, #tpu.memory_space<vmem>>, vector<1x16x32xf32>,
    return
  }
  func.func @transform_0(%arg0: i32) -> (i32, i32, i32) {
    %c0_i32 = arith.constant 0 : i32
    %c0_i32_0 = arith.constant 0 : i32
    %c0_i32_1 = arith.constant 0 : i32
    return %arg0, %c0_i32, %c0_i32_0 : i32, i32, i32
  }
  func.func @transform_1(%arg0: i32) -> (i32, i32) {
    %c0_i32 = arith.constant 0 : i32
    %c0_i32_0 = arith.constant 0 : i32
    %c0_i32_1 = arith.constant 0 : i32
    return %c0_i32, %c0_i32_0 : i32, i32
  }
  func.func @transform_2(%arg0: i32) -> (i32, i32) {
    %c0_i32 = arith.constant 0 : i32
    %c0_i32_0 = arith.constant 0 : i32
    %c0_i32_1 = arith.constant 0 : i32
    return %c0_i32, %c0_i32_0 : i32, i32
  }
  func.func @transform_3(%arg0: i32) -> (i32, i32) {
    %c0_i32 = arith.constant 0 : i32
    %c0_i32_0 = arith.constant 0 : i32
    %c0_i32_1 = arith.constant 0 : i32
    return %c0_i32, %c0_i32_0 : i32, i32
  }
  func.func @transform_4(%arg0: i32) -> (i32, i32) {
    %c0_i32 = arith.constant 0 : i32
    %c0_i32_0 = arith.constant 0 : i32
    %c0_i32_1 = arith.constant 0 : i32
    return %c0_i32, %c0_i32_0 : i32, i32
  }
  func.func @transform_5(%arg0: i32) -> (i32, i32) {
    %c0_i32 = arith.constant 0 : i32
    %c0_i32_0 = arith.constant 0 : i32
    %c0_i32_1 = arith.constant 0 : i32
    return %c0_i32, %c0_i32_0 : i32, i32
  }
  func.func @transform_6(%arg0: i32) -> (i32, i32) {
    %c0_i32 = arith.constant 0 : i32
    %c0_i32_0 = arith.constant 0 : i32
    %c0_i32_1 = arith.constant 0 : i32
    return %c0_i32, %c0_i32_0 : i32, i32
  }
  func.func @transform_7(%arg0: i32) -> (i32, i32) {
    %c0_i32 = arith.constant 0 : i32
    %c0_i32_0 = arith.constant 0 : i32
    %c0_i32_1 = arith.constant 0 : i32
    return %c0_i32, %c0_i32_0 : i32, i32
  }
  func.func @transform_8(%arg0: i32) -> (i32, i32) {
    %c0_i32 = arith.constant 0 : i32
    %c0_i32_0 = arith.constant 0 : i32
    %c0_i32_1 = arith.constant 0 : i32
    return %c0_i32, %c0_i32_0 : i32, i32
  }
  func.func @transform_9(%arg0: i32) -> (i32, i32) {
    %c0_i32 = arith.constant 0 : i32
    %c0_i32_0 = arith.constant 0 : i32
    %c0_i32_1 = arith.constant 0 : i32
    return %c0_i32, %c0_i32_0 : i32, i32
  }
  func.func @transform_10(%arg0: i32) -> (i32, i32, i32) {
    %c0_i32 = arith.constant 0 : i32
    %c0_i32_0 = arith.constant 0 : i32
    %c0_i32_1 = arith.constant 0 : i32
    return %arg0, %c0_i32, %c0_i32_0 : i32, i32, i32
  }
}

module attributes {stable_mosaic.version = 11 : i64} {
  func.func @_mm2_kernel(%arg0: memref<128x360xf32, #tpu.memory_space<vmem>>, %arg1: memref<360x16xf32, #tpu.memory_space<vmem>>, %arg2: memref<1x16xf32, #tpu.memory_space<vmem>>, %arg3: memref<16x1xf32, #tpu.memory_space<vmem>>, %arg4: memref<1x1xf32, #tpu.memory_space<vmem>>, %arg5: memref<128x1xf32, #tpu.memory_space<vmem>>) attributes {dimension_semantics = [], scalar_prefetch = 0 : i64, scratch_operands = 0 : i64, tpu.core_type = #tpu.core_type<tc>} {
    %c0 = arith.constant 0 : index
    %c0_0 = arith.constant 0 : index
    %0 = vector.load %arg0[%c0, %c0_0] : memref<128x360xf32, #tpu.memory_space<vmem>>, vector<128x360xf32>
    %c0_1 = arith.constant 0 : index
    %c0_2 = arith.constant 0 : index
    %1 = vector.load %arg1[%c0_1, %c0_2] : memref<360x16xf32, #tpu.memory_space<vmem>>, vector<360x16xf32>
    %cst = arith.constant dense<0.000000e+00> : vector<128x16xf32>
    %2 = tpu.matmul %0, %1, %cst {dimension_numbers = #tpu.dot_dimension_numbers<[1], [0], [0], [1], [0, 0, 1, 1], [], []>} : vector<128x360xf32>, vector<360x16xf32>, vector<128x16xf32> -> vector<128x16xf32>
    %c0_3 = arith.constant 0 : index
    %c0_4 = arith.constant 0 : index
    %3 = vector.load %arg2[%c0_3, %c0_4] : memref<1x16xf32, #tpu.memory_space<vmem>>, vector<1x16xf32>
    %4 = vector.broadcast %3 : vector<1x16xf32> to vector<128x16xf32>
    %5 = arith.addf %2, %4 : vector<128x16xf32>
    %cst_5 = arith.constant 0.000000e+00 : f32
    %6 = vector.broadcast %cst_5 : f32 to vector<128x16xf32>
    %7 = arith.maximumf %5, %6 : vector<128x16xf32>
    %c0_6 = arith.constant 0 : index
    %c0_7 = arith.constant 0 : index
    %8 = vector.load %arg3[%c0_6, %c0_7] : memref<16x1xf32, #tpu.memory_space<vmem>>, vector<16x1xf32>
    %cst_8 = arith.constant dense<0.000000e+00> : vector<128x1xf32>
    %9 = tpu.matmul %7, %8, %cst_8 {dimension_numbers = #tpu.dot_dimension_numbers<[1], [0], [0], [1], [0, 0, 1, 1], [], []>} : vector<128x16xf32>, vector<16x1xf32>, vector<128x1xf32> -> vector<128x1xf32>
    %c0_9 = arith.constant 0 : index
    %c0_10 = arith.constant 0 : index
    %10 = vector.load %arg4[%c0_9, %c0_10] : memref<1x1xf32, #tpu.memory_space<vmem>>, vector<1x1xf32>
    %11 = vector.broadcast %10 : vector<1x1xf32> to vector<128x1xf32>
    %12 = arith.addf %9, %11 : vector<128x1xf32>
    %c0_11 = arith.constant 0 : index
    %c0_12 = arith.constant 0 : index
    %13 = vector.load %arg5[%c0_11, %c0_12] : memref<128x1xf32, #tpu.memory_space<vmem>>, vector<128x1xf32>
    tpu.vector_store %arg5[%c0_11, %c0_12], %12 {strides = array<i32>} : memref<128x1xf32, #tpu.memory_space<vmem>>, vector<128x1xf32>,
    return
  }
}

</mosaic_0001>

<llo_original>
// kernel: transunet_forward.4
$region0: #{transunet_forward.4}
  #allocation0 [shape = 'u32[]', space=smem, size = 0x4, offset = 0x4, fixed_abs, tag = 'smem constant byte address 0x4 - core index']
  #allocation1 [shape = 'u32[144,128]{1,0:T(1,128)}', space=vmem, size = 0x12000, scoped, tag = 'internal scratch']
  %s0 = inlined_call_operand.vmem [shape: f32[128,36], index: 0, kind: input, shape index: {}]
  %s1 = inlined_call_operand.vmem [shape: f32[36,8], index: 1, kind: input, shape index: {}]
  %s2 = inlined_call_operand.vmem [shape: f32[1,8], index: 2, kind: input, shape index: {}]
  %s3 = inlined_call_operand.vmem [shape: f32[128,8], index: 3, kind: output, shape index: {}]
  %s4 = sld [smem:[#allocation0]]
  $region22: #{transunet_forward.4} parent=0
    _
  %s6 = ssub.s32 1, %s4
  %s7 = scalar_select 0, %s6, %s4
  // Predicated region
  $region2: #{transunet_forward.4} parent=0 // pred_check
    _
  $region3: #{transunet_forward.4} parent=0 // pred_check_branch
    %9 = sbr.rel (0) target = $region5
  $region4: #{transunet_forward.4} parent=0 // pred_region
    _
  $region5: #{transunet_forward.4} parent=0 // pred_fallthru
    _
  // Predicated region
  $region6: #{transunet_forward.4} parent=0 // pred_check
    _
  $region7: #{transunet_forward.4} parent=0 // pred_check_branch
    %11 = sbr.rel (0) target = $region9
  $region8: #{transunet_forward.4} parent=0 // pred_region
    _
  $region9: #{transunet_forward.4} parent=0 // pred_fallthru
    _
  // Predicated region
  $region10: #{transunet_forward.4} parent=0 // pred_check
    _
  $region11: #{transunet_forward.4} parent=0 // pred_check_branch
    %13 = sbr.rel (0) target = $region13
  $region12: #{transunet_forward.4} parent=0 // pred_region
    _
  $region13: #{transunet_forward.4} parent=0 // pred_fallthru
    _
  %v14 = vld [vmem:[%s0] sm:$0xff]
  %v15 = vld [vmem:[%s0 + $0x8] sm:$0xff]
  %v16 = vld [vmem:[%s0 + $0x10] sm:$0xff]
  %v17 = vld [vmem:[%s0 + $0x18] sm:$0xff]
  %v18 = vld [vmem:[%s0 + $0x20] sm:$0xff]
  %v19 = vld [vmem:[%s0 + $0x28] sm:$0xff]
  %v20 = vld [vmem:[%s0 + $0x30] sm:$0xff]
  %v21 = vld [vmem:[%s0 + $0x38] sm:$0xff]
  %v22 = vld [vmem:[%s0 + $0x40] sm:$0xff]
  %v23 = vld [vmem:[%s0 + $0x48] sm:$0xff]
  %v24 = vld [vmem:[%s0 + $0x50] sm:$0xff]
  %v25 = vld [vmem:[%s0 + $0x58] sm:$0xff]
  %v26 = vld [vmem:[%s0 + $0x60] sm:$0xff]
  %v27 = vld [vmem:[%s0 + $0x68] sm:$0xff]
  %v28 = vld [vmem:[%s0 + $0x70] sm:$0xff]
  %v29 = vld [vmem:[%s0 + $0x78] sm:$0xff]
  %v30 = vld [vmem:[%s1] sm:$0xff]
  %v31 = vld [vmem:[%s1 + $0x8] sm:$0xff]
  %v32 = vld [vmem:[%s1 + $0x10] sm:$0xff]
  %v33 = vld [vmem:[%s1 + $0x18] sm:$0xff]
  %v34 = vld [vmem:[%s1 + $0x20] sm:$0xf]
  %v35 = vld [vmem:[%s2] sm:$0x1]
  %v37 = vlaneseq
  %v38 = vshrl.u32 %v37, 7
  %v39 = vsub.s32 0, %v38
  %v40 = vrot.slane %v35, %v39
  %vm42 = vcmask 293888
  %v44 = vsel %vm42, %v14, 0
  %v47 = vsel %vm42, %v15, 0
  %v50 = vsel %vm42, %v16, 0
  %v53 = vsel %vm42, %v17, 0
  %v56 = vsel %vm42, %v18, 0
  %v59 = vsel %vm42, %v19, 0
  %v62 = vsel %vm42, %v20, 0
  %v65 = vsel %vm42, %v21, 0
  %v68 = vsel %vm42, %v22, 0
  %v71 = vsel %vm42, %v23, 0
  %v74 = vsel %vm42, %v24, 0
  %v77 = vsel %vm42, %v25, 0
  %v80 = vsel %vm42, %v26, 0
  %v83 = vsel %vm42, %v27, 0
  %v86 = vsel %vm42, %v28, 0
  %v89 = vsel %vm42, %v29, 0
  %vm91 = vcmask 1043456
  %v93 = vsel %vm91, %v34, 0
  %95 = vmatprep.subr.mxu0 0.0
  %96 = vmatpush1.msra.mxu0 0.0
  %97 = vmatprep.subr.mxu0 0.0
  %98 = vmatpush1.msra.mxu0 0.0
  %99 = vmatprep.subr.mxu0 0.0
  %100 = vmatpush1.msra.mxu0 0.0
  %101 = vmatprep.subr.mxu0 0.0
  %102 = vmatpush1.msra.mxu0 0.0
  %103 = vmatprep.subr.mxu0 0.0
  %104 = vmatpush1.msra.mxu0 0.0
  %105 = vmatprep.subr.mxu0 0.0
  %106 = vmatpush1.msra.mxu0 0.0
  %107 = vmatprep.subr.mxu0 0.0
  %108 = vmatpush1.msra.mxu0 0.0
  %109 = vmatprep.subr.mxu0 0.0
  %110 = vmatpush1.msra.mxu0 0.0
  %111 = vmatprep.subr.mxu0 0.0
  %112 = vmatpush1.msra.mxu0 0.0
  %113 = vmatprep.subr.mxu0 0.0
  %114 = vmatpush1.msra.mxu0 0.0
  %115 = vmatprep.subr.mxu0 0.0
  %116 = vmatpush1.msra.mxu0 0.0
  %117 = vmatprep.subr.mxu0 0.0
  %118 = vmatpush1.msra.mxu0 %v93
  %119 = vmatprep.subr.mxu0 0.0
  %120 = vmatpush1.msra.mxu0 %v33
  %121 = vmatprep.subr.mxu0 0.0
  %122 = vmatpush1.msra.mxu0 %v32
  %123 = vmatprep.subr.mxu0 0.0
  %124 = vmatpush1.msra.mxu0 %v31
  %125 = vmatprep.subr.mxu0 0.0
  %126 = vmatpush1.msra.mxu0 %v30
  %127 = vmatprep.subr.mxu0 0.0
  %128 = vmatpush2.msra.mxu0 0.0
  %129 = vmatprep.subr.mxu0 0.0
  %130 = vmatpush2.msra.mxu0 0.0
  %131 = vmatprep.subr.mxu0 0.0
  %132 = vmatpush2.msra.mxu0 0.0
  %133 = vmatprep.subr.mxu0 0.0
  %134 = vmatpush2.msra.mxu0 0.0
  %135 = vmatprep.subr.mxu0 0.0
  %136 = vmatpush2.msra.mxu0 0.0
  %137 = vmatprep.subr.mxu0 0.0
  %138 = vmatpush2.msra.mxu0 0.0
  %139 = vmatprep.subr.mxu0 0.0
  %140 = vmatpush2.msra.mxu0 0.0
  %141 = vmatprep.subr.mxu0 0.0
  %142 = vmatpush2.msra.mxu0 0.0
  %143 = vmatprep.subr.mxu0 0.0
  %144 = vmatpush2.msra.mxu0 0.0
  %145 = vmatprep.subr.mxu0 0.0
  %146 = vmatpush2.msra.mxu0 0.0
  %147 = vmatprep.subr.mxu0 0.0
  %148 = vmatpush2.msra.mxu0 0.0
  %149 = vmatprep.subr.mxu0 0.0
  %150 = vmatpush2.msra.mxu0 0.0
  %151 = vmatprep.subr.mxu0 0.0
  %152 = vmatpush2.msra.mxu0 0.0
  %153 = vmatprep.subr.mxu0 0.0
  %154 = vmatpush2.msra.mxu0 0.0
  %155 = vmatprep.subr.mxu0 0.0
  %156 = vmatpush2.msra.mxu0 0.0
  %157 = vmatprep.subr.mxu0 0.0
  %158 = vmatpush2.msra.mxu0 0.0
  %159 = vmatprep.mubr.f32.mxu0 0.0
  %160 = vmatmul.mubr.f32.gmra.mxu0 %v44
  %v161 = vpop.f32.mrf.mxu0
  %v162 = vadd.f32 %v40, %v161
  %v163 = vpop.f32.mrf.mxu0
  %164 = vmatprep.mubr.f32.mxu0 0.0
  %165 = vmatmul.mubr.f32.gmra.mxu0 %v47
  %v166 = vpop.f32.mrf.mxu0
  %v167 = vadd.f32 %v40, %v166
  %v168 = vpop.f32.mrf.mxu0
  %169 = vmatprep.mubr.f32.mxu0 0.0
  %170 = vmatmul.mubr.f32.gmra.mxu0 %v50
  %v171 = vpop.f32.mrf.mxu0
  %v172 = vadd.f32 %v40, %v171
  %v173 = vpop.f32.mrf.mxu0
  %174 = vmatprep.mubr.f32.mxu0 0.0
  %175 = vmatmul.mubr.f32.gmra.mxu0 %v53
  %v176 = vpop.f32.mrf.mxu0
  %v177 = vadd.f32 %v40, %v176
  %v178 = vpop.f32.mrf.mxu0
  %179 = vmatprep.mubr.f32.mxu0 0.0
  %180 = vmatmul.mubr.f32.gmra.mxu0 %v56
  %v181 = vpop.f32.mrf.mxu0
  %v182 = vadd.f32 %v40, %v181
  %v183 = vpop.f32.mrf.mxu0
  %184 = vmatprep.mubr.f32.mxu0 0.0
  %185 = vmatmul.mubr.f32.gmra.mxu0 %v59
  %v186 = vpop.f32.mrf.mxu0
  %v187 = vadd.f32 %v40, %v186
  %v188 = vpop.f32.mrf.mxu0
  %189 = vmatprep.mubr.f32.mxu0 0.0
  %190 = vmatmul.mubr.f32.gmra.mxu0 %v62
  %v191 = vpop.f32.mrf.mxu0
  %v192 = vadd.f32 %v40, %v191
  %v193 = vpop.f32.mrf.mxu0
  %194 = vmatprep.mubr.f32.mxu0 0.0
  %195 = vmatmul.mubr.f32.gmra.mxu0 %v65
  %v196 = vpop.f32.mrf.mxu0
  %v197 = vadd.f32 %v40, %v196
  %v198 = vpop.f32.mrf.mxu0
  %199 = vmatprep.mubr.f32.mxu0 0.0
  %200 = vmatmul.mubr.f32.gmra.mxu0 %v68
  %v201 = vpop.f32.mrf.mxu0
  %v202 = vadd.f32 %v40, %v201
  %v203 = vpop.f32.mrf.mxu0
  %204 = vmatprep.mubr.f32.mxu0 0.0
  %205 = vmatmul.mubr.f32.gmra.mxu0 %v71
  %v206 = vpop.f32.mrf.mxu0
  %v207 = vadd.f32 %v40, %v206
  %v208 = vpop.f32.mrf.mxu0
  %209 = vmatprep.mubr.f32.mxu0 0.0
  %210 = vmatmul.mubr.f32.gmra.mxu0 %v74
  %v211 = vpop.f32.mrf.mxu0
  %v212 = vadd.f32 %v40, %v211
  %v213 = vpop.f32.mrf.mxu0
  %214 = vmatprep.mubr.f32.mxu0 0.0
  %215 = vmatmul.mubr.f32.gmra.mxu0 %v77
  %v216 = vpop.f32.mrf.mxu0
  %v217 = vadd.f32 %v40, %v216
  %v218 = vpop.f32.mrf.mxu0
  %219 = vmatprep.mubr.f32.mxu0 0.0
  %220 = vmatmul.mubr.f32.gmra.mxu0 %v80
  %v221 = vpop.f32.mrf.mxu0
  %v222 = vadd.f32 %v40, %v221
  %v223 = vpop.f32.mrf.mxu0
  %224 = vmatprep.mubr.f32.mxu0 0.0
  %225 = vmatmul.mubr.f32.gmra.mxu0 %v83
  %v226 = vpop.f32.mrf.mxu0
  %v227 = vadd.f32 %v40, %v226
  %v228 = vpop.f32.mrf.mxu0
  %229 = vmatprep.mubr.f32.mxu0 0.0
  %230 = vmatmul.mubr.f32.gmra.mxu0 %v86
  %v231 = vpop.f32.mrf.mxu0
  %v232 = vadd.f32 %v40, %v231
  %v233 = vpop.f32.mrf.mxu0
  %234 = vmatprep.mubr.f32.mxu0 0.0
  %235 = vmatmul.mubr.f32.gmra.mxu0 %v89
  %v236 = vpop.f32.mrf.mxu0
  %v237 = vadd.f32 %v40, %v236
  %v238 = vpop.f32.mrf.mxu0
  %239 = vdwg.mxu0
  %v240 = vmax.f32 %v162, 0.0
  %v241 = vmax.f32 %v167, 0.0
  %v242 = vmax.f32 %v172, 0.0
  %v243 = vmax.f32 %v177, 0.0
  %v244 = vmax.f32 %v182, 0.0
  %v245 = vmax.f32 %v187, 0.0
  %v246 = vmax.f32 %v192, 0.0
  %v247 = vmax.f32 %v197, 0.0
  %v248 = vmax.f32 %v202, 0.0
  %v249 = vmax.f32 %v207, 0.0
  %v250 = vmax.f32 %v212, 0.0
  %v251 = vmax.f32 %v217, 0.0
  %v252 = vmax.f32 %v222, 0.0
  %v253 = vmax.f32 %v227, 0.0
  %v254 = vmax.f32 %v232, 0.0
  %v255 = vmax.f32 %v237, 0.0
  %vm256 = vcmask 64512
  %257 = vst.msk [vmem:[%s3] sm:$0xff] %vm256, %v240
  %258 = vst.msk [vmem:[%s3 + $0x8] sm:$0xff] %vm256, %v241
  %259 = vst.msk [vmem:[%s3 + $0x10] sm:$0xff] %vm256, %v242
  %260 = vst.msk [vmem:[%s3 + $0x18] sm:$0xff] %vm256, %v243
  %261 = vst.msk [vmem:[%s3 + $0x20] sm:$0xff] %vm256, %v244
  %262 = vst.msk [vmem:[%s3 + $0x28] sm:$0xff] %vm256, %v245
  %263 = vst.msk [vmem:[%s3 + $0x30] sm:$0xff] %vm256, %v246
  %264 = vst.msk [vmem:[%s3 + $0x38] sm:$0xff] %vm256, %v247
  %265 = vst.msk [vmem:[%s3 + $0x40] sm:$0xff] %vm256, %v248
  %266 = vst.msk [vmem:[%s3 + $0x48] sm:$0xff] %vm256, %v249
  %267 = vst.msk [vmem:[%s3 + $0x50] sm:$0xff] %vm256, %v250
  %268 = vst.msk [vmem:[%s3 + $0x58] sm:$0xff] %vm256, %v251
  %269 = vst.msk [vmem:[%s3 + $0x60] sm:$0xff] %vm256, %v252
  %270 = vst.msk [vmem:[%s3 + $0x68] sm:$0xff] %vm256, %v253
  %271 = vst.msk [vmem:[%s3 + $0x70] sm:$0xff] %vm256, %v254
  %272 = vst.msk [vmem:[%s3 + $0x78] sm:$0xff] %vm256, %v255
  // Predicated region
  $region14: #{transunet_forward.4} parent=0 // pred_check
    _
  $region15: #{transunet_forward.4} parent=0 // pred_check_branch
    %274 = sbr.rel (0) target = $region17
  $region16: #{transunet_forward.4} parent=0 // pred_region
    _
  $region17: #{transunet_forward.4} parent=0 // pred_fallthru
    _
  // Predicated region
  $region18: #{transunet_forward.4} parent=0 // pred_check
    _
  $region19: #{transunet_forward.4} parent=0 // pred_check_branch
    %276 = sbr.rel (0) target = $region21
  $region20: #{transunet_forward.4} parent=0 // pred_region
    _
  $region21: #{transunet_forward.4} parent=0 // pred_fallthru
    _

// kernel: transunet_forward.5
$region0: #{transunet_forward.5}
  #allocation0 [shape = 'u32[]', space=smem, size = 0x4, offset = 0x4, fixed_abs, tag = 'smem constant byte address 0x4 - core index']
  #allocation1 [shape = 'u32[144,128]{1,0:T(1,128)}', space=vmem, size = 0x12000, scoped, tag = 'internal scratch']
  %s0 = inlined_call_operand.vmem [shape: f32[32,32], index: 0, kind: input, shape index: {}]
  %s1 = inlined_call_operand.vmem [shape: f32[32,32], index: 1, kind: input, shape index: {}]
  %s2 = inlined_call_operand.vmem [shape: f32[1,32], index: 2, kind: input, shape index: {}]
  %s3 = inlined_call_operand.vmem [shape: f32[32,32], index: 3, kind: input, shape index: {}]
  %s4 = inlined_call_operand.vmem [shape: f32[32,32], index: 4, kind: output, shape index: {}]
  %s5 = sld [smem:[#allocation0]]
  $region26: #{transunet_forward.5} parent=0
    _
  %s7 = ssub.s32 1, %s5
  %s8 = scalar_select 0, %s7, %s5
  // Predicated region
  $region2: #{transunet_forward.5} parent=0 // pred_check
    _
  $region3: #{transunet_forward.5} parent=0 // pred_check_branch
    %10 = sbr.rel (0) target = $region5
  $region4: #{transunet_forward.5} parent=0 // pred_region
    _
  $region5: #{transunet_forward.5} parent=0 // pred_fallthru
    _
  // Predicated region
  $region6: #{transunet_forward.5} parent=0 // pred_check
    _
  $region7: #{transunet_forward.5} parent=0 // pred_check_branch
    %12 = sbr.rel (0) target = $region9
  $region8: #{transunet_forward.5} parent=0 // pred_region
    _
  $region9: #{transunet_forward.5} parent=0 // pred_fallthru
    _
  // Predicated region
  $region10: #{transunet_forward.5} parent=0 // pred_check
    _
  $region11: #{transunet_forward.5} parent=0 // pred_check_branch
    %14 = sbr.rel (0) target = $region13
  $region12: #{transunet_forward.5} parent=0 // pred_region
    _
  $region13: #{transunet_forward.5} parent=0 // pred_fallthru
    _
  // Predicated region
  $region14: #{transunet_forward.5} parent=0 // pred_check
    _
  $region15: #{transunet_forward.5} parent=0 // pred_check_branch
    %16 = sbr.rel (0) target = $region17
  $region16: #{transunet_forward.5} parent=0 // pred_region
    _
  $region17: #{transunet_forward.5} parent=0 // pred_fallthru
    _
  %v17 = vld [vmem:[%s0] sm:$0xff]
  %v18 = vld [vmem:[%s0 + $0x8] sm:$0xff]
  %v19 = vld [vmem:[%s0 + $0x10] sm:$0xff]
  %v20 = vld [vmem:[%s0 + $0x18] sm:$0xff]
  %v21 = vld [vmem:[%s1] sm:$0xff]
  %v22 = vld [vmem:[%s1 + $0x8] sm:$0xff]
  %v23 = vld [vmem:[%s1 + $0x10] sm:$0xff]
  %v24 = vld [vmem:[%s1 + $0x18] sm:$0xff]
  %v25 = vld [vmem:[%s2] sm:$0x1]
  %v27 = vlaneseq
  %v28 = vshrl.u32 %v27, 7
  %v29 = vsub.s32 0, %v28
  %v30 = vrot.slane %v25, %v29
  %vm32 = vcmask 261120
  %v34 = vsel %vm32, %v17, 0
  %v37 = vsel %vm32, %v18, 0
  %v40 = vsel %vm32, %v19, 0
  %v43 = vsel %vm32, %v20, 0
  %45 = vmatprep.subr.mxu0 0.0
  %46 = vmatpush1.msra.mxu0 0.0
  %47 = vmatprep.subr.mxu0 0.0
  %48 = vmatpush1.msra.mxu0 0.0
  %49 = vmatprep.subr.mxu0 0.0
  %50 = vmatpush1.msra.mxu0 0.0
  %51 = vmatprep.subr.mxu0 0.0
  %52 = vmatpush1.msra.mxu0 0.0
  %53 = vmatprep.subr.mxu0 0.0
  %54 = vmatpush1.msra.mxu0 0.0
  %55 = vmatprep.subr.mxu0 0.0
  %56 = vmatpush1.msra.mxu0 0.0
  %57 = vmatprep.subr.mxu0 0.0
  %58 = vmatpush1.msra.mxu0 0.0
  %59 = vmatprep.subr.mxu0 0.0
  %60 = vmatpush1.msra.mxu0 0.0
  %61 = vmatprep.subr.mxu0 0.0
  %62 = vmatpush1.msra.mxu0 0.0
  %63 = vmatprep.subr.mxu0 0.0
  %64 = vmatpush1.msra.mxu0 0.0
  %65 = vmatprep.subr.mxu0 0.0
  %66 = vmatpush1.msra.mxu0 0.0
  %67 = vmatprep.subr.mxu0 0.0
  %68 = vmatpush1.msra.mxu0 0.0
  %69 = vmatprep.subr.mxu0 0.0
  %70 = vmatpush1.msra.mxu0 %v24
  %71 = vmatprep.subr.mxu0 0.0
  %72 = vmatpush1.msra.mxu0 %v23
  %73 = vmatprep.subr.mxu0 0.0
  %74 = vmatpush1.msra.mxu0 %v22
  %75 = vmatprep.subr.mxu0 0.0
  %76 = vmatpush1.msra.mxu0 %v21
  %77 = vmatprep.subr.mxu0 0.0
  %78 = vmatpush2.msra.mxu0 0.0
  %79 = vmatprep.subr.mxu0 0.0
  %80 = vmatpush2.msra.mxu0 0.0
  %81 = vmatprep.subr.mxu0 0.0
  %82 = vmatpush2.msra.mxu0 0.0
  %83 = vmatprep.subr.mxu0 0.0
  %84 = vmatpush2.msra.mxu0 0.0
  %85 = vmatprep.subr.mxu0 0.0
  %86 = vmatpush2.msra.mxu0 0.0
  %87 = vmatprep.subr.mxu0 0.0
  %88 = vmatpush2.msra.mxu0 0.0
  %89 = vmatprep.subr.mxu0 0.0
  %90 = vmatpush2.msra.mxu0 0.0
  %91 = vmatprep.subr.mxu0 0.0
  %92 = vmatpush2.msra.mxu0 0.0
  %93 = vmatprep.subr.mxu0 0.0
  %94 = vmatpush2.msra.mxu0 0.0
  %95 = vmatprep.subr.mxu0 0.0
  %96 = vmatpush2.msra.mxu0 0.0
  %97 = vmatprep.subr.mxu0 0.0
  %98 = vmatpush2.msra.mxu0 0.0
  %99 = vmatprep.subr.mxu0 0.0
  %100 = vmatpush2.msra.mxu0 0.0
  %101 = vmatprep.subr.mxu0 0.0
  %102 = vmatpush2.msra.mxu0 0.0
  %103 = vmatprep.subr.mxu0 0.0
  %104 = vmatpush2.msra.mxu0 0.0
  %105 = vmatprep.subr.mxu0 0.0
  %106 = vmatpush2.msra.mxu0 0.0
  %107 = vmatprep.subr.mxu0 0.0
  %108 = vmatpush2.msra.mxu0 0.0
  %109 = vmatprep.mubr.f32.mxu0 0.0
  %110 = vmatmul.mubr.f32.gmra.mxu0 %v34
  %v111 = vpop.f32.mrf.mxu0
  %v112 = vadd.f32 %v30, %v111
  %v113 = vpop.f32.mrf.mxu0
  %114 = vmatprep.mubr.f32.mxu0 0.0
  %115 = vmatmul.mubr.f32.gmra.mxu0 %v37
  %v116 = vpop.f32.mrf.mxu0
  %v117 = vadd.f32 %v30, %v116
  %v118 = vpop.f32.mrf.mxu0
  %119 = vmatprep.mubr.f32.mxu0 0.0
  %120 = vmatmul.mubr.f32.gmra.mxu0 %v40
  %v121 = vpop.f32.mrf.mxu0
  %v122 = vadd.f32 %v30, %v121
  %v123 = vpop.f32.mrf.mxu0
  %124 = vmatprep.mubr.f32.mxu0 0.0
  %125 = vmatmul.mubr.f32.gmra.mxu0 %v43
  %v126 = vpop.f32.mrf.mxu0
  %v127 = vadd.f32 %v30, %v126
  %v128 = vpop.f32.mrf.mxu0
  %129 = vdwg.mxu0
  %v130 = vld [vmem:[%s3] sm:$0xff]
  %v131 = vld [vmem:[%s3 + $0x8] sm:$0xff]
  %v132 = vld [vmem:[%s3 + $0x10] sm:$0xff]
  %v133 = vld [vmem:[%s3 + $0x18] sm:$0xff]
  %v134 = vadd.f32 %v112, %v130
  %v135 = vadd.f32 %v117, %v131
  %v136 = vadd.f32 %v122, %v132
  %v137 = vadd.f32 %v127, %v133
  %138 = vst.msk [vmem:[%s4] sm:$0xff] %vm32, %v134
  %139 = vst.msk [vmem:[%s4 + $0x8] sm:$0xff] %vm32, %v135
  %140 = vst.msk [vmem:[%s4 + $0x10] sm:$0xff] %vm32, %v136
  %141 = vst.msk [vmem:[%s4 + $0x18] sm:$0xff] %vm32, %v137
  // Predicated region
  $region18: #{transunet_forward.5} parent=0 // pred_check
    _
  $region19: #{transunet_forward.5} parent=0 // pred_check_branch
    %143 = sbr.rel (0) target = $region21
  $region20: #{transunet_forward.5} parent=0 // pred_region
    _
  $region21: #{transunet_forward.5} parent=0 // pred_fallthru
    _
  // Predicated region
  $region22: #{transunet_forward.5} parent=0 // pred_check
    _
  $region23: #{transunet_forward.5} parent=0 // pred_check_branch
    %145 = sbr.rel (0) target = $region25
  $region24: #{transunet_forward.5} parent=0 // pred_region
    _
  $region25: #{transunet_forward.5} parent=0 // pred_fallthru
    _

// kernel: transunet_forward.6
$region0: #{transunet_forward.6}
  #allocation0 [shape = 'u32[]', space=smem, size = 0x4, offset = 0x4, fixed_abs, tag = 'smem constant byte address 0x4 - core index']
  #allocation1 [shape = 'u32[144,128]{1,0:T(1,128)}', space=vmem, size = 0x12000, scoped, tag = 'internal scratch']
  %s0 = inlined_call_operand.vmem [shape: f32[2,16,32], index: 0, kind: input, shape index: {}]
  %s1 = inlined_call_operand.vmem [shape: f32[9,32], index: 1, kind: input, shape index: {}]
  %s2 = inlined_call_operand.vmem [shape: f32[4,32], index: 2, kind: input, shape index: {}]
  %s3 = inlined_call_operand.vmem [shape: f32[32,32], index: 3, kind: input, shape index: {}]
  %s4 = inlined_call_operand.vmem [shape: f32[32,32], index: 4, kind: input, shape index: {}]
  %s5 = inlined_call_operand.vmem [shape: f32[32,32], index: 5, kind: input, shape index: {}]
  %s6 = inlined_call_operand.vmem [shape: f32[32,32], index: 6, kind: input, shape index: {}]
  %s7 = inlined_call_operand.vmem [shape: f32[32,64], index: 7, kind: input, shape index: {}]
  %s8 = inlined_call_operand.vmem [shape: f32[1,64], index: 8, kind: input, shape index: {}]
  %s9 = inlined_call_operand.vmem [shape: f32[64,32], index: 9, kind: input, shape index: {}]
  %s10 = inlined_call_operand.vmem [shape: f32[2,16,32], index: 10, kind: output, shape index: {}]
  %s11 = sld [smem:[#allocation0]]
  $region73: #{transunet_forward.6} parent=0
    _
  %s13 = ssub.s32 1, %s11
  %s14 = scalar_select 0, %s13, %s11
  loop: start=0, step=1, limit=4
  $region2: #{transunet_forward.6} parent=0 // loop_pre_header
    _
  $region3: #{transunet_forward.6} parent=0 // loop_header
    %s16 = sphi 0, %s20
    %p17 = scmp.ge.s32.totalorder %s16, 4
    %s26 = sphi 0, %s28
    %s29 = sphi 0, %s26
    %s30 = sphi 0, %s29
    %s46 = sphi 0, %s30
    %s50 = sphi 0, %s50
    %s52 = sphi 0, %s50
    %s53 = sphi 0, %s52
    %s67 = sphi 0, %s53
    %s71 = sphi 0, %s71
    %s73 = sphi 0, %s71
    %s74 = sphi 0, %s73
    %s88 = sphi 0, %s74
    %s92 = sphi 0, %s92
    %s94 = sphi 0, %s92
    %s95 = sphi 0, %s94
    %s109 = sphi 0, %s95
    %s113 = sphi 0, %s113
    %s115 = sphi 0, %s113
    %s116 = sphi 0, %s115
    %s130 = sphi 0, %s116
    %s134 = sphi 0, %s134
    %s136 = sphi 0, %s134
    %s137 = sphi 0, %s136
    %s151 = sphi 0, %s137
    %s155 = sphi 0, %s155
    %s157 = sphi 0, %s155
    %s158 = sphi 0, %s157
    %s172 = sphi 0, %s158
    %s176 = sphi 0, %s176
    %s178 = sphi 0, %s176
    %s179 = sphi 0, %s178
    %s193 = sphi 0, %s179
    %s197 = sphi 0, %s197
    %s199 = sphi 0, %s197
    %s200 = sphi 0, %s199
    %s214 = sphi 0, %s200
    %s218 = sphi 0, %s218
    %s220 = sphi 0, %s218
    %s221 = sphi 0, %s220
    %s235 = sphi 0, %s221
    %s241 = sphi 0, %s243
    %s244 = sphi 0, %s241
    %s245 = sphi 0, %s244
    %s261 = sphi 0, %s245
  $region4: #{transunet_forward.6} parent=0 // loop_header_branch
    %19 = sbr.rel (%p17) target = $region8
  $region5: #{transunet_forward.6} parent=0 // loop_body
    %s21 = ssub.s32 %s16, 1
    %s22 = ssub.s32 %s16, 2
    %s23 = sadd.s32 %s16, 1
    %s24 = ssub.s32 %s16, %s23
    %p25 = scmp.eq.s32.totalorder %s24, 0
    %s27 = sadd.s32 %s26, 1
    %s28 = scalar_select %p25, %s26, %s27
    %p31 = pneg %p25
    %p32 = scmp.eq.s32.totalorder %s16, 1
    %p33 = por %p31, %p32
    %p34 = scmp.ne.s32.totalorder %s26, %s29
    %p35 = scmp.eq.s32.totalorder %s16, 0
    %p36 = por %p34, %p35
    %p37 = scmp.ne.s32.totalorder %s26, %s29
    %p38 = scmp.eq.s32.totalorder %s21, 1
    %p39 = por %p37, %p38
    %p40 = scmp.ne.s32.totalorder %s29, %s30
    %p41 = scmp.eq.s32.totalorder %s21, 0
    %p42 = por %p40, %p41
    %p43 = scmp.ne.s32.totalorder %s29, %s30
    %p44 = scmp.eq.s32.totalorder %s22, 1
    %p45 = por %p43, %p44
    %p47 = scmp.ne.s32.totalorder %s30, %s46
    %p48 = scmp.eq.s32.totalorder %s22, 0
    %p49 = por %p47, %p48
    %s51 = sadd.s32 %s50, 1
    %p54 = scmp.eq.s32.totalorder %s16, 1
    %p55 = scmp.ne.s32.totalorder %s50, %s52
    %p56 = scmp.eq.s32.totalorder %s16, 0
    %p57 = por %p55, %p56
    %p58 = scmp.ne.s32.totalorder %s50, %s52
    %p59 = scmp.eq.s32.totalorder %s21, 1
    %p60 = por %p58, %p59
    %p61 = scmp.ne.s32.totalorder %s52, %s53
    %p62 = scmp.eq.s32.totalorder %s21, 0
    %p63 = por %p61, %p62
    %p64 = scmp.ne.s32.totalorder %s52, %s53
    %p65 = scmp.eq.s32.totalorder %s22, 1
    %p66 = por %p64, %p65
    %p68 = scmp.ne.s32.totalorder %s53, %s67
    %p69 = scmp.eq.s32.totalorder %s22, 0
    %p70 = por %p68, %p69
    %s72 = sadd.s32 %s71, 1
    %p75 = scmp.eq.s32.totalorder %s16, 1
    %p76 = scmp.ne.s32.totalorder %s71, %s73
    %p77 = scmp.eq.s32.totalorder %s16, 0
    %p78 = por %p76, %p77
    %p79 = scmp.ne.s32.totalorder %s71, %s73
    %p80 = scmp.eq.s32.totalorder %s21, 1
    %p81 = por %p79, %p80
    %p82 = scmp.ne.s32.totalorder %s73, %s74
    %p83 = scmp.eq.s32.totalorder %s21, 0
    %p84 = por %p82, %p83
    %p85 = scmp.ne.s32.totalorder %s73, %s74
    %p86 = scmp.eq.s32.totalorder %s22, 1
    %p87 = por %p85, %p86
    %p89 = scmp.ne.s32.totalorder %s74, %s88
    %p90 = scmp.eq.s32.totalorder %s22, 0
    %p91 = por %p89, %p90
    %s93 = sadd.s32 %s92, 1
    %p96 = scmp.eq.s32.totalorder %s16, 1
    %p97 = scmp.ne.s32.totalorder %s92, %s94
    %p98 = scmp.eq.s32.totalorder %s16, 0
    %p99 = por %p97, %p98
    %p100 = scmp.ne.s32.totalorder %s92, %s94
    %p101 = scmp.eq.s32.totalorder %s21, 1
    %p102 = por %p100, %p101
    %p103 = scmp.ne.s32.totalorder %s94, %s95
    %p104 = scmp.eq.s32.totalorder %s21, 0
    %p105 = por %p103, %p104
    %p106 = scmp.ne.s32.totalorder %s94, %s95
    %p107 = scmp.eq.s32.totalorder %s22, 1
    %p108 = por %p106, %p107
    %p110 = scmp.ne.s32.totalorder %s95, %s109
    %p111 = scmp.eq.s32.totalorder %s22, 0
    %p112 = por %p110, %p111
    %s114 = sadd.s32 %s113, 1
    %p117 = scmp.eq.s32.totalorder %s16, 1
    %p118 = scmp.ne.s32.totalorder %s113, %s115
    %p119 = scmp.eq.s32.totalorder %s16, 0
    %p120 = por %p118, %p119
    %p121 = scmp.ne.s32.totalorder %s113, %s115
    %p122 = scmp.eq.s32.totalorder %s21, 1
    %p123 = por %p121, %p122
    %p124 = scmp.ne.s32.totalorder %s115, %s116
    %p125 = scmp.eq.s32.totalorder %s21, 0
    %p126 = por %p124, %p125
    %p127 = scmp.ne.s32.totalorder %s115, %s116
    %p128 = scmp.eq.s32.totalorder %s22, 1
    %p129 = por %p127, %p128
    %p131 = scmp.ne.s32.totalorder %s116, %s130
    %p132 = scmp.eq.s32.totalorder %s22, 0
    %p133 = por %p131, %p132
    %s135 = sadd.s32 %s134, 1
    %p138 = scmp.eq.s32.totalorder %s16, 1
    %p139 = scmp.ne.s32.totalorder %s134, %s136
    %p140 = scmp.eq.s32.totalorder %s16, 0
    %p141 = por %p139, %p140
    %p142 = scmp.ne.s32.totalorder %s134, %s136
    %p143 = scmp.eq.s32.totalorder %s21, 1
    %p144 = por %p142, %p143
    %p145 = scmp.ne.s32.totalorder %s136, %s137
    %p146 = scmp.eq.s32.totalorder %s21, 0
    %p147 = por %p145, %p146
    %p148 = scmp.ne.s32.totalorder %s136, %s137
    %p149 = scmp.eq.s32.totalorder %s22, 1
    %p150 = por %p148, %p149
    %p152 = scmp.ne.s32.totalorder %s137, %s151
    %p153 = scmp.eq.s32.totalorder %s22, 0
    %p154 = por %p152, %p153
    %s156 = sadd.s32 %s155, 1
    %p159 = scmp.eq.s32.totalorder %s16, 1
    %p160 = scmp.ne.s32.totalorder %s155, %s157
    %p161 = scmp.eq.s32.totalorder %s16, 0
    %p162 = por %p160, %p161
    %p163 = scmp.ne.s32.totalorder %s155, %s157
    %p164 = scmp.eq.s32.totalorder %s21, 1
    %p165 = por %p163, %p164
    %p166 = scmp.ne.s32.totalorder %s157, %s158
    %p167 = scmp.eq.s32.totalorder %s21, 0
    %p168 = por %p166, %p167
    %p169 = scmp.ne.s32.totalorder %s157, %s158
    %p170 = scmp.eq.s32.totalorder %s22, 1
    %p171 = por %p169, %p170
    %p173 = scmp.ne.s32.totalorder %s158, %s172
    %p174 = scmp.eq.s32.totalorder %s22, 0
    %p175 = por %p173, %p174
    %s177 = sadd.s32 %s176, 1
    %p180 = scmp.eq.s32.totalorder %s16, 1
    %p181 = scmp.ne.s32.totalorder %s176, %s178
    %p182 = scmp.eq.s32.totalorder %s16, 0
    %p183 = por %p181, %p182
    %p184 = scmp.ne.s32.totalorder %s176, %s178
    %p185 = scmp.eq.s32.totalorder %s21, 1
    %p186 = por %p184, %p185
    %p187 = scmp.ne.s32.totalorder %s178, %s179
    %p188 = scmp.eq.s32.totalorder %s21, 0
    %p189 = por %p187, %p188
    %p190 = scmp.ne.s32.totalorder %s178, %s179
    %p191 = scmp.eq.s32.totalorder %s22, 1
    %p192 = por %p190, %p191
    %p194 = scmp.ne.s32.totalorder %s179, %s193
    %p195 = scmp.eq.s32.totalorder %s22, 0
    %p196 = por %p194, %p195
    %s198 = sadd.s32 %s197, 1
    %p201 = scmp.eq.s32.totalorder %s16, 1
    %p202 = scmp.ne.s32.totalorder %s197, %s199
    %p203 = scmp.eq.s32.totalorder %s16, 0
    %p204 = por %p202, %p203
    %p205 = scmp.ne.s32.totalorder %s197, %s199
    %p206 = scmp.eq.s32.totalorder %s21, 1
    %p207 = por %p205, %p206
    %p208 = scmp.ne.s32.totalorder %s199, %s200
    %p209 = scmp.eq.s32.totalorder %s21, 0
    %p210 = por %p208, %p209
    %p211 = scmp.ne.s32.totalorder %s199, %s200
    %p212 = scmp.eq.s32.totalorder %s22, 1
    %p213 = por %p211, %p212
    %p215 = scmp.ne.s32.totalorder %s200, %s214
    %p216 = scmp.eq.s32.totalorder %s22, 0
    %p217 = por %p215, %p216
    %s219 = sadd.s32 %s218, 1
    %p222 = scmp.eq.s32.totalorder %s16, 1
    %p223 = scmp.ne.s32.totalorder %s218, %s220
    %p224 = scmp.eq.s32.totalorder %s16, 0
    %p225 = por %p223, %p224
    %p226 = scmp.ne.s32.totalorder %s218, %s220
    %p227 = scmp.eq.s32.totalorder %s21, 1
    %p228 = por %p226, %p227
    %p229 = scmp.ne.s32.totalorder %s220, %s221
    %p230 = scmp.eq.s32.totalorder %s21, 0
    %p231 = por %p229, %p230
    %p232 = scmp.ne.s32.totalorder %s220, %s221
    %p233 = scmp.eq.s32.totalorder %s22, 1
    %p234 = por %p232, %p233
    %p236 = scmp.ne.s32.totalorder %s221, %s235
    %p237 = scmp.eq.s32.totalorder %s22, 0
    %p238 = por %p236, %p237
    %s239 = ssub.s32 %s16, %s23
    %p240 = scmp.eq.s32.totalorder %s239, 0
    %s242 = sadd.s32 %s241, 1
    %s243 = scalar_select %p240, %s241, %s242
    %p246 = pneg %p240
    %p247 = scmp.eq.s32.totalorder %s16, 1
    %p248 = por %p246, %p247
    %p249 = scmp.ne.s32.totalorder %s241, %s244
    %p250 = scmp.eq.s32.totalorder %s16, 0
    %p251 = por %p249, %p250
    %p252 = scmp.ne.s32.totalorder %s241, %s244
    %p253 = scmp.eq.s32.totalorder %s21, 1
    %p254 = por %p252, %p253
    %p255 = scmp.ne.s32.totalorder %s244, %s245
    %p256 = scmp.eq.s32.totalorder %s21, 0
    %p257 = por %p255, %p256
    %p258 = scmp.ne.s32.totalorder %s244, %s245
    %p259 = scmp.eq.s32.totalorder %s22, 1
    %p260 = por %p258, %p259
    %p262 = scmp.ne.s32.totalorder %s245, %s261
    %p263 = scmp.eq.s32.totalorder %s22, 0
    %p264 = por %p262, %p263
    %p265 = scmp.le.s32.totalorder 1, %s16
    %p266 = scmp.lt.s32.totalorder %s16, 3
    %p267 = pnand %p265, %p266
    %p268 = pneg %p267
    // Predicated region
    $region9: #{transunet_forward.6} parent=5 // pred_check
      _
    $region10: #{transunet_forward.6} parent=5 // pred_check_branch
      %270 = sbr.rel (%p267) target = $region12
    $region11: #{transunet_forward.6} parent=5 // pred_region
      %s271 = ssub.s32 %s16, 1
      // Predicated region
      $region13: #{transunet_forward.6} parent=11 // pred_check
        %p272 = pneg %p63
      $region14: #{transunet_forward.6} parent=11 // pred_check_branch
        %274 = sbr.rel (%p272) target = $region16
      $region15: #{transunet_forward.6} parent=11 // pred_region
        _
      $region16: #{transunet_forward.6} parent=11 // pred_fallthru
        _
      // Predicated region
      $region17: #{transunet_forward.6} parent=11 // pred_check
        %p275 = pneg %p84
      $region18: #{transunet_forward.6} parent=11 // pred_check_branch
        %277 = sbr.rel (%p275) target = $region20
      $region19: #{transunet_forward.6} parent=11 // pred_region
        _
      $region20: #{transunet_forward.6} parent=11 // pred_fallthru
        _
      // Predicated region
      $region21: #{transunet_forward.6} parent=11 // pred_check
        %p278 = pneg %p105
      $region22: #{transunet_forward.6} parent=11 // pred_check_branch
        %280 = sbr.rel (%p278) target = $region24
      $region23: #{transunet_forward.6} parent=11 // pred_region
        _
      $region24: #{transunet_forward.6} parent=11 // pred_fallthru
        _
      // Predicated region
      $region25: #{transunet_forward.6} parent=11 // pred_check
        %p281 = pneg %p126
      $region26: #{transunet_forward.6} parent=11 // pred_check_branch
        %283 = sbr.rel (%p281) target = $region28
      $region27: #{transunet_forward.6} parent=11 // pred_region
        _
      $region28: #{transunet_forward.6} parent=11 // pred_fallthru
        _
      // Predicated region
      $region29: #{transunet_forward.6} parent=11 // pred_check
        %p284 = pneg %p147
      $region30: #{transunet_forward.6} parent=11 // pred_check_branch
        %286 = sbr.rel (%p284) target = $region32
      $region31: #{transunet_forward.6} parent=11 // pred_region
        _
      $region32: #{transunet_forward.6} parent=11 // pred_fallthru
        _
      // Predicated region
      $region33: #{transunet_forward.6} parent=11 // pred_check
        %p287 = pneg %p168
      $region34: #{transunet_forward.6} parent=11 // pred_check_branch
        %289 = sbr.rel (%p287) target = $region36
      $region35: #{transunet_forward.6} parent=11 // pred_region
        _
      $region36: #{transunet_forward.6} parent=11 // pred_fallthru
        _
      // Predicated region
      $region37: #{transunet_forward.6} parent=11 // pred_check
        %p290 = pneg %p189
      $region38: #{transunet_forward.6} parent=11 // pred_check_branch
        %292 = sbr.rel (%p290) target = $region40
      $region39: #{transunet_forward.6} parent=11 // pred_region
        _
      $region40: #{transunet_forward.6} parent=11 // pred_fallthru
        _
      // Predicated region
      $region41: #{transunet_forward.6} parent=11 // pred_check
        %p293 = pneg %p210
      $region42: #{transunet_forward.6} parent=11 // pred_check_branch
        %295 = sbr.rel (%p293) target = $region44
      $region43: #{transunet_forward.6} parent=11 // pred_region
        _
      $region44: #{transunet_forward.6} parent=11 // pred_fallthru
        _
      // Predicated region
      $region45: #{transunet_forward.6} parent=11 // pred_check
        %p296 = pneg %p231
      $region46: #{transunet_forward.6} parent=11 // pred_check_branch
        %298 = sbr.rel (%p296) target = $region48
      $region47: #{transunet_forward.6} parent=11 // pred_region
        _
      $region48: #{transunet_forward.6} parent=11 // pred_fallthru
        _
    $region12: #{transunet_forward.6} parent=5 // pred_fallthru
      _
    %p299 = scmp.lt.s32.totalorder %s16, 2
    // Predicated region
    $region49: #{transunet_forward.6} parent=5 // pred_check
      %p300 = pneg %p299
    $region50: #{transunet_forward.6} parent=5 // pred_check_branch
      %302 = sbr.rel (%p300) target = $region52
    $region51: #{transunet_forward.6} parent=5 // pred_region
      // Predicated region
      $region53: #{transunet_forward.6} parent=51 // pred_check
        %p303 = pneg %p36
      $region54: #{transunet_forward.6} parent=51 // pred_check_branch
        %305 = sbr.rel (%p303) target = $region56
      $region55: #{transunet_forward.6} parent=51 // pred_region
        %p306 = scmp.lt.s32.totalorder %s16, 1
        %s307 = scalar_select %p306, %s16, 1
        %s308 = smul.addr %s307, 2
        %s309 = smul.addr %s308, 8
        %s310 = scalar_lea.vmem %s0, %s309
      $region56: #{transunet_forward.6} parent=51 // pred_fallthru
        _
    $region52: #{transunet_forward.6} parent=5 // pred_fallthru
      _
    %p311 = scmp.le.s32.totalorder 1, %s16
    %p312 = scmp.lt.s32.totalorder %s16, 3
    %p313 = pnand %p311, %p312
    %p314 = pneg %p313
    // Predicated region
    $region57: #{transunet_forward.6} parent=5 // pred_check
      _
    $region58: #{transunet_forward.6} parent=5 // pred_check_branch
      %316 = sbr.rel (%p313) target = $region60
    $region59: #{transunet_forward.6} parent=5 // pred_region
      %s317 = ssub.s32 %s16, 1
      %p318 = scmp.lt.s32.totalorder %s21, 1
      %s319 = scalar_select %p318, %s21, 1
      %s320 = smul.addr %s319, 2
      %s321 = smul.addr %s320, 8
      %s322 = scalar_lea.vmem %s0, %s321
      %p323 = pneg %p42
      %p324 = pneg %p39
      %p325 = pneg %p63
      %p326 = pneg %p60
      %p327 = pneg %p84
      %p328 = pneg %p81
      %p329 = pneg %p105
      %p330 = pneg %p102
      %p331 = pneg %p126
      %p332 = pneg %p123
      %p333 = pneg %p147
      %p334 = pneg %p144
      %p335 = pneg %p168
      %p336 = pneg %p165
      %p337 = pneg %p189
      %p338 = pneg %p186
      %p339 = pneg %p210
      %p340 = pneg %p207
      %p341 = pneg %p231
      %p342 = pneg %p228
      %p343 = pneg %p257
      %p344 = pneg %p254
      %p345 = scmp.lt.s32.totalorder %s21, 1
      %s346 = scalar_select %p345, %s21, 1
      %s347 = smul.addr %s346, 2
      %s348 = smul.addr %s347, 8
      %s349 = scalar_lea.vmem %s10, %s348
      %p350 = scmp.lt.s32.totalorder %s21, 1
      %s351 = scalar_select %p350, %s21, 1
      %s352 = smul.addr %s351, 2
      %s353 = smul.addr %s352, 8
      %s354 = scalar_lea.vmem %s0, %s353
      %p355 = scmp.lt.s32.totalorder %s21, 1
      %s356 = scalar_select %p355, %s21, 1
      %s357 = smul.addr %s356, 2
      %s358 = smul.addr %s357, 8
      %s359 = scalar_lea.vmem %s10, %s358
      %v360 = vld [vmem:[%s354] sm:$0xff]
      %v361 = vld [vmem:[%s354 + $0x8] sm:$0xff]
      %v362 = vld [vmem:[%s1] sm:$0xff]
      %v363 = vld [vmem:[%s1 + $0x8] sm:$0x1]
      %v364 = vld [vmem:[%s2] sm:$0xf]
      %vm365 = vcmask 261120
      %v366 = vsel %vm365, %v360, 0.0
      %367 = vadd.xlane.f32.xlu0 %v366
      %v368 = vpop.xlane.xlu0 %367
      %v369 = vsel %vm365, %v361, 0.0
      %370 = vadd.xlane.f32.xlu0 %v369
      %v371 = vpop.xlane.xlu0 %370
      %v372 = vrcp.pop 32.0
      %v373 = vmul.f32 %v368, %v372
      %v374 = vmul.f32 %v371, %v372
      %v375 = vsub.f32 %v360, %v373
      %v376 = vsub.f32 %v361, %v374
      %v377 = vmul.f32 %v375, %v375
      %v378 = vmul.f32 %v376, %v376
      %v379 = vsel %vm365, %v377, 0.0
      %380 = vadd.xlane.f32.xlu0 %v379
      %v381 = vpop.xlane.xlu0 %380
      %v382 = vsel %vm365, %v378, 0.0
      %383 = vadd.xlane.f32.xlu0 %v382
      %v384 = vpop.xlane.xlu0 %383
      %v385 = vmul.f32 %v381, %v372
      %v386 = vmul.f32 %v384, %v372
      %v387 = vadd.f32 %v385, 1e-05
      %v388 = vadd.f32 %v386, 1e-05
      %v389 = vrsqrt.pop %v387
      %v390 = vrsqrt.pop %v388
      %v391 = vmul.f32 %v375, %v389
      %v392 = vmul.f32 %v376, %v390
      %v393 = vlaneseq
      %v394 = vshrl.u32 %v393, 7
      %v395 = vsub.s32 0, %v394
      %v396 = vrot.slane %v362, %v395
      %v397 = vmul.f32 %v391, %v396
      %v398 = vmul.f32 %v392, %v396
      %v399 = vlaneseq
      %v400 = vshrl.u32 %v399, 7
      %v401 = vsub.s32 1, %v400
      %v402 = vrot.slane %v362, %v401
      %v403 = vadd.f32 %v397, %v402
      %v404 = vadd.f32 %v398, %v402
      %v405 = vld [vmem:[%s3] sm:$0xff]
      %v406 = vld [vmem:[%s3 + $0x8] sm:$0xff]
      %v407 = vld [vmem:[%s3 + $0x10] sm:$0xff]
      %v408 = vld [vmem:[%s3 + $0x18] sm:$0xff]
      %v409 = vlaneseq
      %v410 = vshrl.u32 %v409, 7
      %v411 = vsub.s32 4, %v410
      %v412 = vrot.slane %v362, %v411
      %v414 = vsel %vm365, %v403, 0
      %v417 = vsel %vm365, %v404, 0
      %419 = vmatprep.subr.mxu0 0.0
      %420 = vmatpush1.msra.mxu0 0.0
      %421 = vmatprep.subr.mxu0 0.0
      %422 = vmatpush1.msra.mxu0 0.0
      %423 = vmatprep.subr.mxu0 0.0
      %424 = vmatpush1.msra.mxu0 0.0
      %425 = vmatprep.subr.mxu0 0.0
      %426 = vmatpush1.msra.mxu0 0.0
      %427 = vmatprep.subr.mxu0 0.0
      %428 = vmatpush1.msra.mxu0 0.0
      %429 = vmatprep.subr.mxu0 0.0
      %430 = vmatpush1.msra.mxu0 0.0
      %431 = vmatprep.subr.mxu0 0.0
      %432 = vmatpush1.msra.mxu0 0.0
      %433 = vmatprep.subr.mxu0 0.0
      %434 = vmatpush1.msra.mxu0 0.0
      %435 = vmatprep.subr.mxu0 0.0
      %436 = vmatpush1.msra.mxu0 0.0
      %437 = vmatprep.subr.mxu0 0.0
      %438 = vmatpush1.msra.mxu0 0.0
      %439 = vmatprep.subr.mxu0 0.0
      %440 = vmatpush1.msra.mxu0 0.0
      %441 = vmatprep.subr.mxu0 0.0
      %442 = vmatpush1.msra.mxu0 0.0
      %443 = vmatprep.subr.mxu0 0.0
      %444 = vmatpush1.msra.mxu0 %v408
      %445 = vmatprep.subr.mxu0 0.0
      %446 = vmatpush1.msra.mxu0 %v407
      %447 = vmatprep.subr.mxu0 0.0
      %448 = vmatpush1.msra.mxu0 %v406
      %449 = vmatprep.subr.mxu0 0.0
      %450 = vmatpush1.msra.mxu0 %v405
      %451 = vmatprep.subr.mxu0 0.0
      %452 = vmatpush2.msra.mxu0 0.0
      %453 = vmatprep.subr.mxu0 0.0
      %454 = vmatpush2.msra.mxu0 0.0
      %455 = vmatprep.subr.mxu0 0.0
      %456 = vmatpush2.msra.mxu0 0.0
      %457 = vmatprep.subr.mxu0 0.0
      %458 = vmatpush2.msra.mxu0 0.0
      %459 = vmatprep.subr.mxu0 0.0
      %460 = vmatpush2.msra.mxu0 0.0
      %461 = vmatprep.subr.mxu0 0.0
      %462 = vmatpush2.msra.mxu0 0.0
      %463 = vmatprep.subr.mxu0 0.0
      %464 = vmatpush2.msra.mxu0 0.0
      %465 = vmatprep.subr.mxu0 0.0
      %466 = vmatpush2.msra.mxu0 0.0
      %467 = vmatprep.subr.mxu0 0.0
      %468 = vmatpush2.msra.mxu0 0.0
      %469 = vmatprep.subr.mxu0 0.0
      %470 = vmatpush2.msra.mxu0 0.0
      %471 = vmatprep.subr.mxu0 0.0
      %472 = vmatpush2.msra.mxu0 0.0
      %473 = vmatprep.subr.mxu0 0.0
      %474 = vmatpush2.msra.mxu0 0.0
      %475 = vmatprep.subr.mxu0 0.0
      %476 = vmatpush2.msra.mxu0 0.0
      %477 = vmatprep.subr.mxu0 0.0
      %478 = vmatpush2.msra.mxu0 0.0
      %479 = vmatprep.subr.mxu0 0.0
      %480 = vmatpush2.msra.mxu0 0.0
      %481 = vmatprep.subr.mxu0 0.0
      %482 = vmatpush2.msra.mxu0 0.0
      %483 = vmatprep.mubr.f32.mxu0 0.0
      %484 = vmatmul.mubr.f32.gmra.mxu0 %v414
      %v485 = vpop.f32.mrf.mxu0
      %v486 = vadd.f32 %v412, %v485
      %v487 = vpop.f32.mrf.mxu0
      %488 = vmatprep.mubr.f32.mxu0 0.0
      %489 = vmatmul.mubr.f32.gmra.mxu0 %v417
      %v490 = vpop.f32.mrf.mxu0
      %v491 = vadd.f32 %v412, %v490
      %v492 = vpop.f32.mrf.mxu0
      %493 = vdwg.mxu0
      %v494 = vmul.f32 %v486, 0.35355338
      %v495 = vmul.f32 %v491, 0.35355338
      %v496 = vld [vmem:[%s4] sm:$0xff]
      %v497 = vld [vmem:[%s4 + $0x8] sm:$0xff]
      %v498 = vld [vmem:[%s4 + $0x10] sm:$0xff]
      %v499 = vld [vmem:[%s4 + $0x18] sm:$0xff]
      %v500 = vlaneseq
      %v501 = vshrl.u32 %v500, 7
      %v502 = vsub.s32 5, %v501
      %v503 = vrot.slane %v362, %v502
      %504 = vmatprep.subr.mxu0 0.0
      %505 = vmatpush1.msra.mxu0 0.0
      %506 = vmatprep.subr.mxu0 0.0
      %507 = vmatpush1.msra.mxu0 0.0
      %508 = vmatprep.subr.mxu0 0.0
      %509 = vmatpush1.msra.mxu0 0.0
      %510 = vmatprep.subr.mxu0 0.0
      %511 = vmatpush1.msra.mxu0 0.0
      %512 = vmatprep.subr.mxu0 0.0
      %513 = vmatpush1.msra.mxu0 0.0
      %514 = vmatprep.subr.mxu0 0.0
      %515 = vmatpush1.msra.mxu0 0.0
      %516 = vmatprep.subr.mxu0 0.0
      %517 = vmatpush1.msra.mxu0 0.0
      %518 = vmatprep.subr.mxu0 0.0
      %519 = vmatpush1.msra.mxu0 0.0
      %520 = vmatprep.subr.mxu0 0.0
      %521 = vmatpush1.msra.mxu0 0.0
      %522 = vmatprep.subr.mxu0 0.0
      %523 = vmatpush1.msra.mxu0 0.0
      %524 = vmatprep.subr.mxu0 0.0
      %525 = vmatpush1.msra.mxu0 0.0
      %526 = vmatprep.subr.mxu0 0.0
      %527 = vmatpush1.msra.mxu0 0.0
      %528 = vmatprep.subr.mxu0 0.0
      %529 = vmatpush1.msra.mxu0 %v499
      %530 = vmatprep.subr.mxu0 0.0
      %531 = vmatpush1.msra.mxu0 %v498
      %532 = vmatprep.subr.mxu0 0.0
      %533 = vmatpush1.msra.mxu0 %v497
      %534 = vmatprep.subr.mxu0 0.0
      %535 = vmatpush1.msra.mxu0 %v496
      %536 = vmatprep.subr.mxu0 0.0
      %537 = vmatpush2.msra.mxu0 0.0
      %538 = vmatprep.subr.mxu0 0.0
      %539 = vmatpush2.msra.mxu0 0.0
      %540 = vmatprep.subr.mxu0 0.0
      %541 = vmatpush2.msra.mxu0 0.0
      %542 = vmatprep.subr.mxu0 0.0
      %543 = vmatpush2.msra.mxu0 0.0
      %544 = vmatprep.subr.mxu0 0.0
      %545 = vmatpush2.msra.mxu0 0.0
      %546 = vmatprep.subr.mxu0 0.0
      %547 = vmatpush2.msra.mxu0 0.0
      %548 = vmatprep.subr.mxu0 0.0
      %549 = vmatpush2.msra.mxu0 0.0
      %550 = vmatprep.subr.mxu0 0.0
      %551 = vmatpush2.msra.mxu0 0.0
      %552 = vmatprep.subr.mxu0 0.0
      %553 = vmatpush2.msra.mxu0 0.0
      %554 = vmatprep.subr.mxu0 0.0
      %555 = vmatpush2.msra.mxu0 0.0
      %556 = vmatprep.subr.mxu0 0.0
      %557 = vmatpush2.msra.mxu0 0.0
      %558 = vmatprep.subr.mxu0 0.0
      %559 = vmatpush2.msra.mxu0 0.0
      %560 = vmatprep.subr.mxu0 0.0
      %561 = vmatpush2.msra.mxu0 0.0
      %562 = vmatprep.subr.mxu0 0.0
      %563 = vmatpush2.msra.mxu0 0.0
      %564 = vmatprep.subr.mxu0 0.0
      %565 = vmatpush2.msra.mxu0 0.0
      %566 = vmatprep.subr.mxu0 0.0
      %567 = vmatpush2.msra.mxu0 0.0
      %568 = vmatprep.mubr.f32.mxu0 0.0
      %569 = vmatmul.mubr.f32.gmra.mxu0 %v414
      %v570 = vpop.f32.mrf.mxu0
      %v571 = vadd.f32 %v503, %v570
      %v572 = vpop.f32.mrf.mxu0
      %573 = vmatprep.mubr.f32.mxu0 0.0
      %574 = vmatmul.mubr.f32.gmra.mxu0 %v417
      %v575 = vpop.f32.mrf.mxu0
      %v576 = vadd.f32 %v503, %v575
      %v577 = vpop.f32.mrf.mxu0
      %578 = vdwg.mxu0
      %v579 = vld [vmem:[%s5] sm:$0xff]
      %v580 = vld [vmem:[%s5 + $0x8] sm:$0xff]
      %v581 = vld [vmem:[%s5 + $0x10] sm:$0xff]
      %v582 = vld [vmem:[%s5 + $0x18] sm:$0xff]
      %v583 = vlaneseq
      %v584 = vshrl.u32 %v583, 7
      %v585 = vsub.s32 6, %v584
      %v586 = vrot.slane %v362, %v585
      %587 = vmatprep.subr.mxu0 0.0
      %588 = vmatpush1.msra.mxu0 0.0
      %589 = vmatprep.subr.mxu0 0.0
      %590 = vmatpush1.msra.mxu0 0.0
      %591 = vmatprep.subr.mxu0 0.0
      %592 = vmatpush1.msra.mxu0 0.0
      %593 = vmatprep.subr.mxu0 0.0
      %594 = vmatpush1.msra.mxu0 0.0
      %595 = vmatprep.subr.mxu0 0.0
      %596 = vmatpush1.msra.mxu0 0.0
      %597 = vmatprep.subr.mxu0 0.0
      %598 = vmatpush1.msra.mxu0 0.0
      %599 = vmatprep.subr.mxu0 0.0
      %600 = vmatpush1.msra.mxu0 0.0
      %601 = vmatprep.subr.mxu0 0.0
      %602 = vmatpush1.msra.mxu0 0.0
      %603 = vmatprep.subr.mxu0 0.0
      %604 = vmatpush1.msra.mxu0 0.0
      %605 = vmatprep.subr.mxu0 0.0
      %606 = vmatpush1.msra.mxu0 0.0
      %607 = vmatprep.subr.mxu0 0.0
      %608 = vmatpush1.msra.mxu0 0.0
      %609 = vmatprep.subr.mxu0 0.0
      %610 = vmatpush1.msra.mxu0 0.0
      %611 = vmatprep.subr.mxu0 0.0
      %612 = vmatpush1.msra.mxu0 %v582
      %613 = vmatprep.subr.mxu0 0.0
      %614 = vmatpush1.msra.mxu0 %v581
      %615 = vmatprep.subr.mxu0 0.0
      %616 = vmatpush1.msra.mxu0 %v580
      %617 = vmatprep.subr.mxu0 0.0
      %618 = vmatpush1.msra.mxu0 %v579
      %619 = vmatprep.subr.mxu0 0.0
      %620 = vmatpush2.msra.mxu0 0.0
      %621 = vmatprep.subr.mxu0 0.0
      %622 = vmatpush2.msra.mxu0 0.0
      %623 = vmatprep.subr.mxu0 0.0
      %624 = vmatpush2.msra.mxu0 0.0
      %625 = vmatprep.subr.mxu0 0.0
      %626 = vmatpush2.msra.mxu0 0.0
      %627 = vmatprep.subr.mxu0 0.0
      %628 = vmatpush2.msra.mxu0 0.0
      %629 = vmatprep.subr.mxu0 0.0
      %630 = vmatpush2.msra.mxu0 0.0
      %631 = vmatprep.subr.mxu0 0.0
      %632 = vmatpush2.msra.mxu0 0.0
      %633 = vmatprep.subr.mxu0 0.0
      %634 = vmatpush2.msra.mxu0 0.0
      %635 = vmatprep.subr.mxu0 0.0
      %636 = vmatpush2.msra.mxu0 0.0
      %637 = vmatprep.subr.mxu0 0.0
      %638 = vmatpush2.msra.mxu0 0.0
      %639 = vmatprep.subr.mxu0 0.0
      %640 = vmatpush2.msra.mxu0 0.0
      %641 = vmatprep.subr.mxu0 0.0
      %642 = vmatpush2.msra.mxu0 0.0
      %643 = vmatprep.subr.mxu0 0.0
      %644 = vmatpush2.msra.mxu0 0.0
      %645 = vmatprep.subr.mxu0 0.0
      %646 = vmatpush2.msra.mxu0 0.0
      %647 = vmatprep.subr.mxu0 0.0
      %648 = vmatpush2.msra.mxu0 0.0
      %649 = vmatprep.subr.mxu0 0.0
      %650 = vmatpush2.msra.mxu0 0.0
      %651 = vmatprep.mubr.f32.mxu0 0.0
      %652 = vmatmul.mubr.f32.gmra.mxu0 %v414
      %v653 = vpop.f32.mrf.mxu0
      %v654 = vadd.f32 %v586, %v653
      %v655 = vpop.f32.mrf.mxu0
      %656 = vmatprep.mubr.f32.mxu0 0.0
      %657 = vmatmul.mubr.f32.gmra.mxu0 %v417
      %v658 = vpop.f32.mrf.mxu0
      %v659 = vadd.f32 %v586, %v658
      %v660 = vpop.f32.mrf.mxu0
      %661 = vdwg.mxu0
      %v662 = vlaneseq
      %v663 = vshrl.u32 %v662, 7
      %v664 = vsub.s32 0, %v663
      %v665 = vrot.slane %v364, %v664
      %v666 = vmul.f32 %v494, %v665
      %v667 = vmul.f32 %v495, %v665
      %v669 = vsel %vm365, %v666, 0
      %v672 = vsel %vm365, %v667, 0
      %v675 = vsel %vm365, %v571, 0
      %v678 = vsel %vm365, %v576, 0
      %680 = vmatprep.subr.mxu0 0.0
      %681 = vmatpush1.xpose.msra.mxu0 0.0
      %682 = vmatprep.subr.mxu0 0.0
      %683 = vmatpush1.xpose.msra.mxu0 0.0
      %684 = vmatprep.subr.mxu0 0.0
      %685 = vmatpush1.xpose.msra.mxu0 0.0
      %686 = vmatprep.subr.mxu0 0.0
      %687 = vmatpush1.xpose.msra.mxu0 0.0
      %688 = vmatprep.subr.mxu0 0.0
      %689 = vmatpush1.xpose.msra.mxu0 0.0
      %690 = vmatprep.subr.mxu0 0.0
      %691 = vmatpush1.xpose.msra.mxu0 0.0
      %692 = vmatprep.subr.mxu0 0.0
      %693 = vmatpush1.xpose.msra.mxu0 0.0
      %694 = vmatprep.subr.mxu0 0.0
      %695 = vmatpush1.xpose.msra.mxu0 0.0
      %696 = vmatprep.subr.mxu0 0.0
      %697 = vmatpush1.xpose.msra.mxu0 0.0
      %698 = vmatprep.subr.mxu0 0.0
      %699 = vmatpush1.xpose.msra.mxu0 0.0
      %700 = vmatprep.subr.mxu0 0.0
      %701 = vmatpush1.xpose.msra.mxu0 0.0
      %702 = vmatprep.subr.mxu0 0.0
      %703 = vmatpush1.xpose.msra.mxu0 0.0
      %704 = vmatprep.subr.mxu0 0.0
      %705 = vmatpush1.xpose.msra.mxu0 0.0
      %706 = vmatprep.subr.mxu0 0.0
      %707 = vmatpush1.xpose.msra.mxu0 0.0
      %708 = vmatprep.subr.mxu0 0.0
      %709 = vmatpush1.xpose.msra.mxu0 %v678
      %710 = vmatprep.subr.mxu0 0.0
      %711 = vmatpush1.xpose.msra.mxu0 %v675
      %712 = vmatprep.subr.mxu0 0.0
      %713 = vmatpush2.xpose.msra.mxu0 0.0
      %714 = vmatprep.subr.mxu0 0.0
      %715 = vmatpush2.xpose.msra.mxu0 0.0
      %716 = vmatprep.subr.mxu0 0.0
      %717 = vmatpush2.xpose.msra.mxu0 0.0
      %718 = vmatprep.subr.mxu0 0.0
      %719 = vmatpush2.xpose.msra.mxu0 0.0
      %720 = vmatprep.subr.mxu0 0.0
      %721 = vmatpush2.xpose.msra.mxu0 0.0
      %722 = vmatprep.subr.mxu0 0.0
      %723 = vmatpush2.xpose.msra.mxu0 0.0
      %724 = vmatprep.subr.mxu0 0.0
      %725 = vmatpush2.xpose.msra.mxu0 0.0
      %726 = vmatprep.subr.mxu0 0.0
      %727 = vmatpush2.xpose.msra.mxu0 0.0
      %728 = vmatprep.subr.mxu0 0.0
      %729 = vmatpush2.xpose.msra.mxu0 0.0
      %730 = vmatprep.subr.mxu0 0.0
      %731 = vmatpush2.xpose.msra.mxu0 0.0
      %732 = vmatprep.subr.mxu0 0.0
      %733 = vmatpush2.xpose.msra.mxu0 0.0
      %734 = vmatprep.subr.mxu0 0.0
      %735 = vmatpush2.xpose.msra.mxu0 0.0
      %736 = vmatprep.subr.mxu0 0.0
      %737 = vmatpush2.xpose.msra.mxu0 0.0
      %738 = vmatprep.subr.mxu0 0.0
      %739 = vmatpush2.xpose.msra.mxu0 0.0
      %740 = vmatprep.subr.mxu0 0.0
      %741 = vmatpush2.xpose.msra.mxu0 0.0
      %742 = vmatprep.subr.mxu0 0.0
      %743 = vmatpush2.xpose.msra.mxu0 0.0
      %744 = vmatprep.mubr.f32.mxu0 0.0
      %745 = vmatmul.mubr.f32.gmra.mxu0 %v669
      %v746 = vpop.f32.mrf.mxu0
      %v747 = vadd.f32 0.0, %v746
      %v748 = vpop.f32.mrf.mxu0
      %749 = vmatprep.mubr.f32.mxu0 0.0
      %750 = vmatmul.mubr.f32.gmra.mxu0 %v672
      %v751 = vpop.f32.mrf.mxu0
      %v752 = vadd.f32 0.0, %v751
      %v753 = vpop.f32.mrf.mxu0
      %754 = vdwg.mxu0
      %vm755 = vcmask 130048
      %v756 = vsel %vm755, %v747, -inf
      %757 = vmax.xlane.f32.xlu0 %v756
      %v758 = vpop.xlane.xlu0 %757
      %v759 = vsel %vm755, %v752, -inf
      %760 = vmax.xlane.f32.xlu0 %v759
      %v761 = vpop.xlane.xlu0 %760
      %v762 = vsub.f32 %v747, %v758
      %v763 = vsub.f32 %v752, %v761
      %v764 = vmul.f32 %v762, 1.442695
      %v765 = vpow.pop %v764
      %v766 = vmul.f32 %v763, 1.442695
      %v767 = vpow.pop %v766
      %v768 = vsel %vm755, %v765, 0.0
      %769 = vadd.xlane.f32.xlu0 %v768
      %v770 = vpop.xlane.xlu0 %769
      %v771 = vsel %vm755, %v767, 0.0
      %772 = vadd.xlane.f32.xlu0 %v771
      %v773 = vpop.xlane.xlu0 %772
      %v774 = vrcp.pop %v770
      %v775 = vrcp.pop %v773
      %v776 = vmul.f32 %v765, %v774
      %v777 = vmul.f32 %v767, %v775
      %v778 = vmul.f32 %v654, %v665
      %v779 = vmul.f32 %v659, %v665
      %v780 = vlaneseq
      %v781 = vshrl.u32 %v780, 7
      %v782 = vsub.s32 1, %v781
      %v783 = vrot.slane %v364, %v782
      %v784 = vmul.f32 %v494, %v783
      %v785 = vmul.f32 %v495, %v783
      %v787 = vsel %vm365, %v784, 0
      %v790 = vsel %vm365, %v785, 0
      %792 = vmatprep.subr.mxu0 0.0
      %793 = vmatpush1.xpose.msra.mxu0 0.0
      %794 = vmatprep.subr.mxu0 0.0
      %795 = vmatpush1.xpose.msra.mxu0 0.0
      %796 = vmatprep.subr.mxu0 0.0
      %797 = vmatpush1.xpose.msra.mxu0 0.0
      %798 = vmatprep.subr.mxu0 0.0
      %799 = vmatpush1.xpose.msra.mxu0 0.0
      %800 = vmatprep.subr.mxu0 0.0
      %801 = vmatpush1.xpose.msra.mxu0 0.0
      %802 = vmatprep.subr.mxu0 0.0
      %803 = vmatpush1.xpose.msra.mxu0 0.0
      %804 = vmatprep.subr.mxu0 0.0
      %805 = vmatpush1.xpose.msra.mxu0 0.0
      %806 = vmatprep.subr.mxu0 0.0
      %807 = vmatpush1.xpose.msra.mxu0 0.0
      %808 = vmatprep.subr.mxu0 0.0
      %809 = vmatpush1.xpose.msra.mxu0 0.0
      %810 = vmatprep.subr.mxu0 0.0
      %811 = vmatpush1.xpose.msra.mxu0 0.0
      %812 = vmatprep.subr.mxu0 0.0
      %813 = vmatpush1.xpose.msra.mxu0 0.0
      %814 = vmatprep.subr.mxu0 0.0
      %815 = vmatpush1.xpose.msra.mxu0 0.0
      %816 = vmatprep.subr.mxu0 0.0
      %817 = vmatpush1.xpose.msra.mxu0 0.0
      %818 = vmatprep.subr.mxu0 0.0
      %819 = vmatpush1.xpose.msra.mxu0 0.0
      %820 = vmatprep.subr.mxu0 0.0
      %821 = vmatpush1.xpose.msra.mxu0 %v678
      %822 = vmatprep.subr.mxu0 0.0
      %823 = vmatpush1.xpose.msra.mxu0 %v675
      %824 = vmatprep.subr.mxu0 0.0
      %825 = vmatpush2.xpose.msra.mxu0 0.0
      %826 = vmatprep.subr.mxu0 0.0
      %827 = vmatpush2.xpose.msra.mxu0 0.0
      %828 = vmatprep.subr.mxu0 0.0
      %829 = vmatpush2.xpose.msra.mxu0 0.0
      %830 = vmatprep.subr.mxu0 0.0
      %831 = vmatpush2.xpose.msra.mxu0 0.0
      %832 = vmatprep.subr.mxu0 0.0
      %833 = vmatpush2.xpose.msra.mxu0 0.0
      %834 = vmatprep.subr.mxu0 0.0
      %835 = vmatpush2.xpose.msra.mxu0 0.0
      %836 = vmatprep.subr.mxu0 0.0
      %837 = vmatpush2.xpose.msra.mxu0 0.0
      %838 = vmatprep.subr.mxu0 0.0
      %839 = vmatpush2.xpose.msra.mxu0 0.0
      %840 = vmatprep.subr.mxu0 0.0
      %841 = vmatpush2.xpose.msra.mxu0 0.0
      %842 = vmatprep.subr.mxu0 0.0
      %843 = vmatpush2.xpose.msra.mxu0 0.0
      %844 = vmatprep.subr.mxu0 0.0
      %845 = vmatpush2.xpose.msra.mxu0 0.0
      %846 = vmatprep.subr.mxu0 0.0
      %847 = vmatpush2.xpose.msra.mxu0 0.0
      %848 = vmatprep.subr.mxu0 0.0
      %849 = vmatpush2.xpose.msra.mxu0 0.0
      %850 = vmatprep.subr.mxu0 0.0
      %851 = vmatpush2.xpose.msra.mxu0 0.0
      %852 = vmatprep.subr.mxu0 0.0
      %853 = vmatpush2.xpose.msra.mxu0 0.0
      %854 = vmatprep.subr.mxu0 0.0
      %855 = vmatpush2.xpose.msra.mxu0 0.0
      %856 = vmatprep.mubr.f32.mxu0 0.0
      %857 = vmatmul.mubr.f32.gmra.mxu0 %v787
      %v858 = vpop.f32.mrf.mxu0
      %v859 = vadd.f32 0.0, %v858
      %v860 = vpop.f32.mrf.mxu0
      %861 = vmatprep.mubr.f32.mxu0 0.0
      %862 = vmatmul.mubr.f32.gmra.mxu0 %v790
      %v863 = vpop.f32.mrf.mxu0
      %v864 = vadd.f32 0.0, %v863
      %v865 = vpop.f32.mrf.mxu0
      %866 = vdwg.mxu0
      %v867 = vsel %vm755, %v859, -inf
      %868 = vmax.xlane.f32.xlu0 %v867
      %v869 = vpop.xlane.xlu0 %868
      %v870 = vsel %vm755, %v864, -inf
      %871 = vmax.xlane.f32.xlu0 %v870
      %v872 = vpop.xlane.xlu0 %871
      %v873 = vsub.f32 %v859, %v869
      %v874 = vsub.f32 %v864, %v872
      %v875 = vmul.f32 %v873, 1.442695
      %v876 = vpow.pop %v875
      %v877 = vmul.f32 %v874, 1.442695
      %v878 = vpow.pop %v877
      %v879 = vsel %vm755, %v876, 0.0
      %880 = vadd.xlane.f32.xlu0 %v879
      %v881 = vpop.xlane.xlu0 %880
      %v882 = vsel %vm755, %v878, 0.0
      %883 = vadd.xlane.f32.xlu0 %v882
      %v884 = vpop.xlane.xlu0 %883
      %v885 = vrcp.pop %v881
      %v886 = vrcp.pop %v884
      %v887 = vmul.f32 %v876, %v885
      %v888 = vmul.f32 %v878, %v886
      %v889 = vmul.f32 %v654, %v783
      %v890 = vmul.f32 %v659, %v783
      %v892 = vsel %vm755, %v887, 0
      %v895 = vsel %vm755, %v888, 0
      %897 = vmatprep.subr.mxu0 0.0
      %898 = vmatpush1.msra.mxu0 0.0
      %899 = vmatprep.subr.mxu0 0.0
      %900 = vmatpush1.msra.mxu0 0.0
      %901 = vmatprep.subr.mxu0 0.0
      %902 = vmatpush1.msra.mxu0 0.0
      %903 = vmatprep.subr.mxu0 0.0
      %904 = vmatpush1.msra.mxu0 0.0
      %905 = vmatprep.subr.mxu0 0.0
      %906 = vmatpush1.msra.mxu0 0.0
      %907 = vmatprep.subr.mxu0 0.0
      %908 = vmatpush1.msra.mxu0 0.0
      %909 = vmatprep.subr.mxu0 0.0
      %910 = vmatpush1.msra.mxu0 0.0
      %911 = vmatprep.subr.mxu0 0.0
      %912 = vmatpush1.msra.mxu0 0.0
      %913 = vmatprep.subr.mxu0 0.0
      %914 = vmatpush1.msra.mxu0 0.0
      %915 = vmatprep.subr.mxu0 0.0
      %916 = vmatpush1.msra.mxu0 0.0
      %917 = vmatprep.subr.mxu0 0.0
      %918 = vmatpush1.msra.mxu0 0.0
      %919 = vmatprep.subr.mxu0 0.0
      %920 = vmatpush1.msra.mxu0 0.0
      %921 = vmatprep.subr.mxu0 0.0
      %922 = vmatpush1.msra.mxu0 0.0
      %923 = vmatprep.subr.mxu0 0.0
      %924 = vmatpush1.msra.mxu0 0.0
      %925 = vmatprep.subr.mxu0 0.0
      %926 = vmatpush1.msra.mxu0 %v890
      %927 = vmatprep.subr.mxu0 0.0
      %928 = vmatpush1.msra.mxu0 %v889
      %929 = vmatprep.subr.mxu0 0.0
      %930 = vmatpush2.msra.mxu0 0.0
      %931 = vmatprep.subr.mxu0 0.0
      %932 = vmatpush2.msra.mxu0 0.0
      %933 = vmatprep.subr.mxu0 0.0
      %934 = vmatpush2.msra.mxu0 0.0
      %935 = vmatprep.subr.mxu0 0.0
      %936 = vmatpush2.msra.mxu0 0.0
      %937 = vmatprep.subr.mxu0 0.0
      %938 = vmatpush2.msra.mxu0 0.0
      %939 = vmatprep.subr.mxu0 0.0
      %940 = vmatpush2.msra.mxu0 0.0
      %941 = vmatprep.subr.mxu0 0.0
      %942 = vmatpush2.msra.mxu0 0.0
      %943 = vmatprep.subr.mxu0 0.0
      %944 = vmatpush2.msra.mxu0 0.0
      %945 = vmatprep.subr.mxu0 0.0
      %946 = vmatpush2.msra.mxu0 0.0
      %947 = vmatprep.subr.mxu0 0.0
      %948 = vmatpush2.msra.mxu0 0.0
      %949 = vmatprep.subr.mxu0 0.0
      %950 = vmatpush2.msra.mxu0 0.0
      %951 = vmatprep.subr.mxu0 0.0
      %952 = vmatpush2.msra.mxu0 0.0
      %953 = vmatprep.subr.mxu0 0.0
      %954 = vmatpush2.msra.mxu0 0.0
      %955 = vmatprep.subr.mxu0 0.0
      %956 = vmatpush2.msra.mxu0 0.0
      %957 = vmatprep.subr.mxu0 0.0
      %958 = vmatpush2.msra.mxu0 0.0
      %959 = vmatprep.subr.mxu0 0.0
      %960 = vmatpush2.msra.mxu0 0.0
      %961 = vmatprep.mubr.f32.mxu0 0.0
      %962 = vmatmul.mubr.f32.gmra.mxu0 %v892
      %v963 = vpop.f32.mrf.mxu0
      %v964 = vadd.f32 0.0, %v963
      %v965 = vpop.f32.mrf.mxu0
      %966 = vmatprep.mubr.f32.mxu0 0.0
      %967 = vmatmul.mubr.f32.gmra.mxu0 %v895
      %v968 = vpop.f32.mrf.mxu0
      %v969 = vadd.f32 0.0, %v968
      %v970 = vpop.f32.mrf.mxu0
      %971 = vdwg.mxu0
      %v973 = vsel %vm755, %v776, 0
      %v976 = vsel %vm755, %v777, 0
      %978 = vmatprep.subr.mxu0 0.0
      %979 = vmatpush1.msra.mxu0 0.0
      %980 = vmatprep.subr.mxu0 0.0
      %981 = vmatpush1.msra.mxu0 0.0
      %982 = vmatprep.subr.mxu0 0.0
      %983 = vmatpush1.msra.mxu0 0.0
      %984 = vmatprep.subr.mxu0 0.0
      %985 = vmatpush1.msra.mxu0 0.0
      %986 = vmatprep.subr.mxu0 0.0
      %987 = vmatpush1.msra.mxu0 0.0
      %988 = vmatprep.subr.mxu0 0.0
      %989 = vmatpush1.msra.mxu0 0.0
      %990 = vmatprep.subr.mxu0 0.0
      %991 = vmatpush1.msra.mxu0 0.0
      %992 = vmatprep.subr.mxu0 0.0
      %993 = vmatpush1.msra.mxu0 0.0
      %994 = vmatprep.subr.mxu0 0.0
      %995 = vmatpush1.msra.mxu0 0.0
      %996 = vmatprep.subr.mxu0 0.0
      %997 = vmatpush1.msra.mxu0 0.0
      %998 = vmatprep.subr.mxu0 0.0
      %999 = vmatpush1.msra.mxu0 0.0
      %1000 = vmatprep.subr.mxu0 0.0
      %1001 = vmatpush1.msra.mxu0 0.0
      %1002 = vmatprep.subr.mxu0 0.0
      %1003 = vmatpush1.msra.mxu0 0.0
      %1004 = vmatprep.subr.mxu0 0.0
      %1005 = vmatpush1.msra.mxu0 0.0
      %1006 = vmatprep.subr.mxu0 0.0
      %1007 = vmatpush1.msra.mxu0 %v779
      %1008 = vmatprep.subr.mxu0 0.0
      %1009 = vmatpush1.msra.mxu0 %v778
      %1010 = vmatprep.subr.mxu0 0.0
      %1011 = vmatpush2.msra.mxu0 0.0
      %1012 = vmatprep.subr.mxu0 0.0
      %1013 = vmatpush2.msra.mxu0 0.0
      %1014 = vmatprep.subr.mxu0 0.0
      %1015 = vmatpush2.msra.mxu0 0.0
      %1016 = vmatprep.subr.mxu0 0.0
      %1017 = vmatpush2.msra.mxu0 0.0
      %1018 = vmatprep.subr.mxu0 0.0
      %1019 = vmatpush2.msra.mxu0 0.0
      %1020 = vmatprep.subr.mxu0 0.0
      %1021 = vmatpush2.msra.mxu0 0.0
      %1022 = vmatprep.subr.mxu0 0.0
      %1023 = vmatpush2.msra.mxu0 0.0
      %1024 = vmatprep.subr.mxu0 0.0
      %1025 = vmatpush2.msra.mxu0 0.0
      %1026 = vmatprep.subr.mxu0 0.0
      %1027 = vmatpush2.msra.mxu0 0.0
      %1028 = vmatprep.subr.mxu0 0.0
      %1029 = vmatpush2.msra.mxu0 0.0
      %1030 = vmatprep.subr.mxu0 0.0
      %1031 = vmatpush2.msra.mxu0 0.0
      %1032 = vmatprep.subr.mxu0 0.0
      %1033 = vmatpush2.msra.mxu0 0.0
      %1034 = vmatprep.subr.mxu0 0.0
      %1035 = vmatpush2.msra.mxu0 0.0
      %1036 = vmatprep.subr.mxu0 0.0
      %1037 = vmatpush2.msra.mxu0 0.0
      %1038 = vmatprep.subr.mxu0 0.0
      %1039 = vmatpush2.msra.mxu0 0.0
      %1040 = vmatprep.subr.mxu0 0.0
      %1041 = vmatpush2.msra.mxu0 0.0
      %1042 = vmatprep.mubr.f32.mxu0 0.0
      %1043 = vmatmul.mubr.f32.gmra.mxu0 %v973
      %v1044 = vpop.f32.mrf.mxu0
      %v1045 = vadd.f32 %v964, %v1044
      %v1046 = vpop.f32.mrf.mxu0
      %1047 = vmatprep.mubr.f32.mxu0 0.0
      %1048 = vmatmul.mubr.f32.gmra.mxu0 %v976
      %v1049 = vpop.f32.mrf.mxu0
      %v1050 = vadd.f32 %v969, %v1049
      %v1051 = vpop.f32.mrf.mxu0
      %1052 = vdwg.mxu0
      %v1053 = vlaneseq
      %v1054 = vshrl.u32 %v1053, 7
      %v1055 = vsub.s32 2, %v1054
      %v1056 = vrot.slane %v364, %v1055
      %v1057 = vmul.f32 %v494, %v1056
      %v1058 = vmul.f32 %v495, %v1056
      %v1060 = vsel %vm365, %v1057, 0
      %v1063 = vsel %vm365, %v1058, 0
      %1065 = vmatprep.subr.mxu0 0.0
      %1066 = vmatpush1.xpose.msra.mxu0 0.0
      %1067 = vmatprep.subr.mxu0 0.0
      %1068 = vmatpush1.xpose.msra.mxu0 0.0
      %1069 = vmatprep.subr.mxu0 0.0
      %1070 = vmatpush1.xpose.msra.mxu0 0.0
      %1071 = vmatprep.subr.mxu0 0.0
      %1072 = vmatpush1.xpose.msra.mxu0 0.0
      %1073 = vmatprep.subr.mxu0 0.0
      %1074 = vmatpush1.xpose.msra.mxu0 0.0
      %1075 = vmatprep.subr.mxu0 0.0
      %1076 = vmatpush1.xpose.msra.mxu0 0.0
      %1077 = vmatprep.subr.mxu0 0.0
      %1078 = vmatpush1.xpose.msra.mxu0 0.0
      %1079 = vmatprep.subr.mxu0 0.0
      %1080 = vmatpush1.xpose.msra.mxu0 0.0
      %1081 = vmatprep.subr.mxu0 0.0
      %1082 = vmatpush1.xpose.msra.mxu0 0.0
      %1083 = vmatprep.subr.mxu0 0.0
      %1084 = vmatpush1.xpose.msra.mxu0 0.0
      %1085 = vmatprep.subr.mxu0 0.0
      %1086 = vmatpush1.xpose.msra.mxu0 0.0
      %1087 = vmatprep.subr.mxu0 0.0
      %1088 = vmatpush1.xpose.msra.mxu0 0.0
      %1089 = vmatprep.subr.mxu0 0.0
      %1090 = vmatpush1.xpose.msra.mxu0 0.0
      %1091 = vmatprep.subr.mxu0 0.0
      %1092 = vmatpush1.xpose.msra.mxu0 0.0
      %1093 = vmatprep.subr.mxu0 0.0
      %1094 = vmatpush1.xpose.msra.mxu0 %v678
      %1095 = vmatprep.subr.mxu0 0.0
      %1096 = vmatpush1.xpose.msra.mxu0 %v675
      %1097 = vmatprep.subr.mxu0 0.0
      %1098 = vmatpush2.xpose.msra.mxu0 0.0
      %1099 = vmatprep.subr.mxu0 0.0
      %1100 = vmatpush2.xpose.msra.mxu0 0.0
      %1101 = vmatprep.subr.mxu0 0.0
      %1102 = vmatpush2.xpose.msra.mxu0 0.0
      %1103 = vmatprep.subr.mxu0 0.0
      %1104 = vmatpush2.xpose.msra.mxu0 0.0
      %1105 = vmatprep.subr.mxu0 0.0
      %1106 = vmatpush2.xpose.msra.mxu0 0.0
      %1107 = vmatprep.subr.mxu0 0.0
      %1108 = vmatpush2.xpose.msra.mxu0 0.0
      %1109 = vmatprep.subr.mxu0 0.0
      %1110 = vmatpush2.xpose.msra.mxu0 0.0
      %1111 = vmatprep.subr.mxu0 0.0
      %1112 = vmatpush2.xpose.msra.mxu0 0.0
      %1113 = vmatprep.subr.mxu0 0.0
      %1114 = vmatpush2.xpose.msra.mxu0 0.0
      %1115 = vmatprep.subr.mxu0 0.0
      %1116 = vmatpush2.xpose.msra.mxu0 0.0
      %1117 = vmatprep.subr.mxu0 0.0
      %1118 = vmatpush2.xpose.msra.mxu0 0.0
      %1119 = vmatprep.subr.mxu0 0.0
      %1120 = vmatpush2.xpose.msra.mxu0 0.0
      %1121 = vmatprep.subr.mxu0 0.0
      %1122 = vmatpush2.xpose.msra.mxu0 0.0
      %1123 = vmatprep.subr.mxu0 0.0
      %1124 = vmatpush2.xpose.msra.mxu0 0.0
      %1125 = vmatprep.subr.mxu0 0.0
      %1126 = vmatpush2.xpose.msra.mxu0 0.0
      %1127 = vmatprep.subr.mxu0 0.0
      %1128 = vmatpush2.xpose.msra.mxu0 0.0
      %1129 = vmatprep.mubr.f32.mxu0 0.0
      %1130 = vmatmul.mubr.f32.gmra.mxu0 %v1060
      %v1131 = vpop.f32.mrf.mxu0
      %v1132 = vadd.f32 0.0, %v1131
      %v1133 = vpop.f32.mrf.mxu0
      %1134 = vmatprep.mubr.f32.mxu0 0.0
      %1135 = vmatmul.mubr.f32.gmra.mxu0 %v1063
      %v1136 = vpop.f32.mrf.mxu0
      %v1137 = vadd.f32 0.0, %v1136
      %v1138 = vpop.f32.mrf.mxu0
      %1139 = vdwg.mxu0
      %v1140 = vsel %vm755, %v1132, -inf
      %1141 = vmax.xlane.f32.xlu0 %v1140
      %v1142 = vpop.xlane.xlu0 %1141
      %v1143 = vsel %vm755, %v1137, -inf
      %1144 = vmax.xlane.f32.xlu0 %v1143
      %v1145 = vpop.xlane.xlu0 %1144
      %v1146 = vsub.f32 %v1132, %v1142
      %v1147 = vsub.f32 %v1137, %v1145
      %v1148 = vmul.f32 %v1146, 1.442695
      %v1149 = vpow.pop %v1148
      %v1150 = vmul.f32 %v1147, 1.442695
      %v1151 = vpow.pop %v1150
      %v1152 = vsel %vm755, %v1149, 0.0
      %1153 = vadd.xlane.f32.xlu0 %v1152
      %v1154 = vpop.xlane.xlu0 %1153
      %v1155 = vsel %vm755, %v1151, 0.0
      %1156 = vadd.xlane.f32.xlu0 %v1155
      %v1157 = vpop.xlane.xlu0 %1156
      %v1158 = vrcp.pop %v1154
      %v1159 = vrcp.pop %v1157
      %v1160 = vmul.f32 %v1149, %v1158
      %v1161 = vmul.f32 %v1151, %v1159
      %v1162 = vmul.f32 %v654, %v1056
      %v1163 = vmul.f32 %v659, %v1056
      %v1165 = vsel %vm755, %v1160, 0
      %v1168 = vsel %vm755, %v1161, 0
      %1170 = vmatprep.subr.mxu0 0.0
      %1171 = vmatpush1.msra.mxu0 0.0
      %1172 = vmatprep.subr.mxu0 0.0
      %1173 = vmatpush1.msra.mxu0 0.0
      %1174 = vmatprep.subr.mxu0 0.0
      %1175 = vmatpush1.msra.mxu0 0.0
      %1176 = vmatprep.subr.mxu0 0.0
      %1177 = vmatpush1.msra.mxu0 0.0
      %1178 = vmatprep.subr.mxu0 0.0
      %1179 = vmatpush1.msra.mxu0 0.0
      %1180 = vmatprep.subr.mxu0 0.0
      %1181 = vmatpush1.msra.mxu0 0.0
      %1182 = vmatprep.subr.mxu0 0.0
      %1183 = vmatpush1.msra.mxu0 0.0
      %1184 = vmatprep.subr.mxu0 0.0
      %1185 = vmatpush1.msra.mxu0 0.0
      %1186 = vmatprep.subr.mxu0 0.0
      %1187 = vmatpush1.msra.mxu0 0.0
      %1188 = vmatprep.subr.mxu0 0.0
      %1189 = vmatpush1.msra.mxu0 0.0
      %1190 = vmatprep.subr.mxu0 0.0
      %1191 = vmatpush1.msra.mxu0 0.0
      %1192 = vmatprep.subr.mxu0 0.0
      %1193 = vmatpush1.msra.mxu0 0.0
      %1194 = vmatprep.subr.mxu0 0.0
      %1195 = vmatpush1.msra.mxu0 0.0
      %1196 = vmatprep.subr.mxu0 0.0
      %1197 = vmatpush1.msra.mxu0 0.0
      %1198 = vmatprep.subr.mxu0 0.0
      %1199 = vmatpush1.msra.mxu0 %v1163
      %1200 = vmatprep.subr.mxu0 0.0
      %1201 = vmatpush1.msra.mxu0 %v1162
      %1202 = vmatprep.subr.mxu0 0.0
      %1203 = vmatpush2.msra.mxu0 0.0
      %1204 = vmatprep.subr.mxu0 0.0
      %1205 = vmatpush2.msra.mxu0 0.0
      %1206 = vmatprep.subr.mxu0 0.0
      %1207 = vmatpush2.msra.mxu0 0.0
      %1208 = vmatprep.subr.mxu0 0.0
      %1209 = vmatpush2.msra.mxu0 0.0
      %1210 = vmatprep.subr.mxu0 0.0
      %1211 = vmatpush2.msra.mxu0 0.0
      %1212 = vmatprep.subr.mxu0 0.0
      %1213 = vmatpush2.msra.mxu0 0.0
      %1214 = vmatprep.subr.mxu0 0.0
      %1215 = vmatpush2.msra.mxu0 0.0
      %1216 = vmatprep.subr.mxu0 0.0
      %1217 = vmatpush2.msra.mxu0 0.0
      %1218 = vmatprep.subr.mxu0 0.0
      %1219 = vmatpush2.msra.mxu0 0.0
      %1220 = vmatprep.subr.mxu0 0.0
      %1221 = vmatpush2.msra.mxu0 0.0
      %1222 = vmatprep.subr.mxu0 0.0
      %1223 = vmatpush2.msra.mxu0 0.0
      %1224 = vmatprep.subr.mxu0 0.0
      %1225 = vmatpush2.msra.mxu0 0.0
      %1226 = vmatprep.subr.mxu0 0.0
      %1227 = vmatpush2.msra.mxu0 0.0
      %1228 = vmatprep.subr.mxu0 0.0
      %1229 = vmatpush2.msra.mxu0 0.0
      %1230 = vmatprep.subr.mxu0 0.0
      %1231 = vmatpush2.msra.mxu0 0.0
      %1232 = vmatprep.subr.mxu0 0.0
      %1233 = vmatpush2.msra.mxu0 0.0
      %1234 = vmatprep.mubr.f32.mxu0 0.0
      %1235 = vmatmul.mubr.f32.gmra.mxu0 %v1165
      %v1236 = vpop.f32.mrf.mxu0
      %v1237 = vadd.f32 0.0, %v1236
      %v1238 = vpop.f32.mrf.mxu0
      %1239 = vmatprep.mubr.f32.mxu0 0.0
      %1240 = vmatmul.mubr.f32.gmra.mxu0 %v1168
      %v1241 = vpop.f32.mrf.mxu0
      %v1242 = vadd.f32 0.0, %v1241
      %v1243 = vpop.f32.mrf.mxu0
      %1244 = vdwg.mxu0
      %v1245 = vadd.f32 %v1045, %v1237
      %v1246 = vadd.f32 %v1050, %v1242
      %v1247 = vlaneseq
      %v1248 = vshrl.u32 %v1247, 7
      %v1249 = vsub.s32 3, %v1248
      %v1250 = vrot.slane %v364, %v1249
      %v1251 = vmul.f32 %v494, %v1250
      %v1252 = vmul.f32 %v495, %v1250
      %v1254 = vsel %vm365, %v1251, 0
      %v1257 = vsel %vm365, %v1252, 0
      %1259 = vmatprep.subr.mxu0 0.0
      %1260 = vmatpush1.xpose.msra.mxu0 0.0
      %1261 = vmatprep.subr.mxu0 0.0
      %1262 = vmatpush1.xpose.msra.mxu0 0.0
      %1263 = vmatprep.subr.mxu0 0.0
      %1264 = vmatpush1.xpose.msra.mxu0 0.0
      %1265 = vmatprep.subr.mxu0 0.0
      %1266 = vmatpush1.xpose.msra.mxu0 0.0
      %1267 = vmatprep.subr.mxu0 0.0
      %1268 = vmatpush1.xpose.msra.mxu0 0.0
      %1269 = vmatprep.subr.mxu0 0.0
      %1270 = vmatpush1.xpose.msra.mxu0 0.0
      %1271 = vmatprep.subr.mxu0 0.0
      %1272 = vmatpush1.xpose.msra.mxu0 0.0
      %1273 = vmatprep.subr.mxu0 0.0
      %1274 = vmatpush1.xpose.msra.mxu0 0.0
      %1275 = vmatprep.subr.mxu0 0.0
      %1276 = vmatpush1.xpose.msra.mxu0 0.0
      %1277 = vmatprep.subr.mxu0 0.0
      %1278 = vmatpush1.xpose.msra.mxu0 0.0
      %1279 = vmatprep.subr.mxu0 0.0
      %1280 = vmatpush1.xpose.msra.mxu0 0.0
      %1281 = vmatprep.subr.mxu0 0.0
      %1282 = vmatpush1.xpose.msra.mxu0 0.0
      %1283 = vmatprep.subr.mxu0 0.0
      %1284 = vmatpush1.xpose.msra.mxu0 0.0
      %1285 = vmatprep.subr.mxu0 0.0
      %1286 = vmatpush1.xpose.msra.mxu0 0.0
      %1287 = vmatprep.subr.mxu0 0.0
      %1288 = vmatpush1.xpose.msra.mxu0 %v678
      %1289 = vmatprep.subr.mxu0 0.0
      %1290 = vmatpush1.xpose.msra.mxu0 %v675
      %1291 = vmatprep.subr.mxu0 0.0
      %1292 = vmatpush2.xpose.msra.mxu0 0.0
      %1293 = vmatprep.subr.mxu0 0.0
      %1294 = vmatpush2.xpose.msra.mxu0 0.0
      %1295 = vmatprep.subr.mxu0 0.0
      %1296 = vmatpush2.xpose.msra.mxu0 0.0
      %1297 = vmatprep.subr.mxu0 0.0
      %1298 = vmatpush2.xpose.msra.mxu0 0.0
      %1299 = vmatprep.subr.mxu0 0.0
      %1300 = vmatpush2.xpose.msra.mxu0 0.0
      %1301 = vmatprep.subr.mxu0 0.0
      %1302 = vmatpush2.xpose.msra.mxu0 0.0
      %1303 = vmatprep.subr.mxu0 0.0
      %1304 = vmatpush2.xpose.msra.mxu0 0.0
      %1305 = vmatprep.subr.mxu0 0.0
      %1306 = vmatpush2.xpose.msra.mxu0 0.0
      %1307 = vmatprep.subr.mxu0 0.0
      %1308 = vmatpush2.xpose.msra.mxu0 0.0
      %1309 = vmatprep.subr.mxu0 0.0
      %1310 = vmatpush2.xpose.msra.mxu0 0.0
      %1311 = vmatprep.subr.mxu0 0.0
      %1312 = vmatpush2.xpose.msra.mxu0 0.0
      %1313 = vmatprep.subr.mxu0 0.0
      %1314 = vmatpush2.xpose.msra.mxu0 0.0
      %1315 = vmatprep.subr.mxu0 0.0
      %1316 = vmatpush2.xpose.msra.mxu0 0.0
      %1317 = vmatprep.subr.mxu0 0.0
      %1318 = vmatpush2.xpose.msra.mxu0 0.0
      %1319 = vmatprep.subr.mxu0 0.0
      %1320 = vmatpush2.xpose.msra.mxu0 0.0
      %1321 = vmatprep.subr.mxu0 0.0
      %1322 = vmatpush2.xpose.msra.mxu0 0.0
      %1323 = vmatprep.mubr.f32.mxu0 0.0
      %1324 = vmatmul.mubr.f32.gmra.mxu0 %v1254
      %v1325 = vpop.f32.mrf.mxu0
      %v1326 = vadd.f32 0.0, %v1325
      %v1327 = vpop.f32.mrf.mxu0
      %1328 = vmatprep.mubr.f32.mxu0 0.0
      %1329 = vmatmul.mubr.f32.gmra.mxu0 %v1257
      %v1330 = vpop.f32.mrf.mxu0
      %v1331 = vadd.f32 0.0, %v1330
      %v1332 = vpop.f32.mrf.mxu0
      %1333 = vdwg.mxu0
      %v1334 = vsel %vm755, %v1326, -inf
      %1335 = vmax.xlane.f32.xlu0 %v1334
      %v1336 = vpop.xlane.xlu0 %1335
      %v1337 = vsel %vm755, %v1331, -inf
      %1338 = vmax.xlane.f32.xlu0 %v1337
      %v1339 = vpop.xlane.xlu0 %1338
      %v1340 = vsub.f32 %v1326, %v1336
      %v1341 = vsub.f32 %v1331, %v1339
      %v1342 = vmul.f32 %v1340, 1.442695
      %v1343 = vpow.pop %v1342
      %v1344 = vmul.f32 %v1341, 1.442695
      %v1345 = vpow.pop %v1344
      %v1346 = vsel %vm755, %v1343, 0.0
      %1347 = vadd.xlane.f32.xlu0 %v1346
      %v1348 = vpop.xlane.xlu0 %1347
      %v1349 = vsel %vm755, %v1345, 0.0
      %1350 = vadd.xlane.f32.xlu0 %v1349
      %v1351 = vpop.xlane.xlu0 %1350
      %v1352 = vrcp.pop %v1348
      %v1353 = vrcp.pop %v1351
      %v1354 = vmul.f32 %v1343, %v1352
      %v1355 = vmul.f32 %v1345, %v1353
      %v1356 = vmul.f32 %v654, %v1250
      %v1357 = vmul.f32 %v659, %v1250
      %v1359 = vsel %vm755, %v1354, 0
      %v1362 = vsel %vm755, %v1355, 0
      %1364 = vmatprep.subr.mxu0 0.0
      %1365 = vmatpush1.msra.mxu0 0.0
      %1366 = vmatprep.subr.mxu0 0.0
      %1367 = vmatpush1.msra.mxu0 0.0
      %1368 = vmatprep.subr.mxu0 0.0
      %1369 = vmatpush1.msra.mxu0 0.0
      %1370 = vmatprep.subr.mxu0 0.0
      %1371 = vmatpush1.msra.mxu0 0.0
      %1372 = vmatprep.subr.mxu0 0.0
      %1373 = vmatpush1.msra.mxu0 0.0
      %1374 = vmatprep.subr.mxu0 0.0
      %1375 = vmatpush1.msra.mxu0 0.0
      %1376 = vmatprep.subr.mxu0 0.0
      %1377 = vmatpush1.msra.mxu0 0.0
      %1378 = vmatprep.subr.mxu0 0.0
      %1379 = vmatpush1.msra.mxu0 0.0
      %1380 = vmatprep.subr.mxu0 0.0
      %1381 = vmatpush1.msra.mxu0 0.0
      %1382 = vmatprep.subr.mxu0 0.0
      %1383 = vmatpush1.msra.mxu0 0.0
      %1384 = vmatprep.subr.mxu0 0.0
      %1385 = vmatpush1.msra.mxu0 0.0
      %1386 = vmatprep.subr.mxu0 0.0
      %1387 = vmatpush1.msra.mxu0 0.0
      %1388 = vmatprep.subr.mxu0 0.0
      %1389 = vmatpush1.msra.mxu0 0.0
      %1390 = vmatprep.subr.mxu0 0.0
      %1391 = vmatpush1.msra.mxu0 0.0
      %1392 = vmatprep.subr.mxu0 0.0
      %1393 = vmatpush1.msra.mxu0 %v1357
      %1394 = vmatprep.subr.mxu0 0.0
      %1395 = vmatpush1.msra.mxu0 %v1356
      %1396 = vmatprep.subr.mxu0 0.0
      %1397 = vmatpush2.msra.mxu0 0.0
      %1398 = vmatprep.subr.mxu0 0.0
      %1399 = vmatpush2.msra.mxu0 0.0
      %1400 = vmatprep.subr.mxu0 0.0
      %1401 = vmatpush2.msra.mxu0 0.0
      %1402 = vmatprep.subr.mxu0 0.0
      %1403 = vmatpush2.msra.mxu0 0.0
      %1404 = vmatprep.subr.mxu0 0.0
      %1405 = vmatpush2.msra.mxu0 0.0
      %1406 = vmatprep.subr.mxu0 0.0
      %1407 = vmatpush2.msra.mxu0 0.0
      %1408 = vmatprep.subr.mxu0 0.0
      %1409 = vmatpush2.msra.mxu0 0.0
      %1410 = vmatprep.subr.mxu0 0.0
      %1411 = vmatpush2.msra.mxu0 0.0
      %1412 = vmatprep.subr.mxu0 0.0
      %1413 = vmatpush2.msra.mxu0 0.0
      %1414 = vmatprep.subr.mxu0 0.0
      %1415 = vmatpush2.msra.mxu0 0.0
      %1416 = vmatprep.subr.mxu0 0.0
      %1417 = vmatpush2.msra.mxu0 0.0
      %1418 = vmatprep.subr.mxu0 0.0
      %1419 = vmatpush2.msra.mxu0 0.0
      %1420 = vmatprep.subr.mxu0 0.0
      %1421 = vmatpush2.msra.mxu0 0.0
      %1422 = vmatprep.subr.mxu0 0.0
      %1423 = vmatpush2.msra.mxu0 0.0
      %1424 = vmatprep.subr.mxu0 0.0
      %1425 = vmatpush2.msra.mxu0 0.0
      %1426 = vmatprep.subr.mxu0 0.0
      %1427 = vmatpush2.msra.mxu0 0.0
      %1428 = vmatprep.mubr.f32.mxu0 0.0
      %1429 = vmatmul.mubr.f32.gmra.mxu0 %v1359
      %v1430 = vpop.f32.mrf.mxu0
      %v1431 = vadd.f32 0.0, %v1430
      %v1432 = vpop.f32.mrf.mxu0
      %1433 = vmatprep.mubr.f32.mxu0 0.0
      %1434 = vmatmul.mubr.f32.gmra.mxu0 %v1362
      %v1435 = vpop.f32.mrf.mxu0
      %v1436 = vadd.f32 0.0, %v1435
      %v1437 = vpop.f32.mrf.mxu0
      %1438 = vdwg.mxu0
      %v1439 = vadd.f32 %v1245, %v1431
      %v1440 = vadd.f32 %v1246, %v1436
      %v1441 = vld [vmem:[%s6] sm:$0xff]
      %v1442 = vld [vmem:[%s6 + $0x8] sm:$0xff]
      %v1443 = vld [vmem:[%s6 + $0x10] sm:$0xff]
      %v1444 = vld [vmem:[%s6 + $0x18] sm:$0xff]
      %v1445 = vlaneseq
      %v1446 = vshrl.u32 %v1445, 7
      %v1447 = vsub.s32 7, %v1446
      %v1448 = vrot.slane %v362, %v1447
      %v1450 = vsel %vm365, %v1439, 0
      %v1453 = vsel %vm365, %v1440, 0
      %1455 = vmatprep.subr.mxu0 0.0
      %1456 = vmatpush1.msra.mxu0 0.0
      %1457 = vmatprep.subr.mxu0 0.0
      %1458 = vmatpush1.msra.mxu0 0.0
      %1459 = vmatprep.subr.mxu0 0.0
      %1460 = vmatpush1.msra.mxu0 0.0
      %1461 = vmatprep.subr.mxu0 0.0
      %1462 = vmatpush1.msra.mxu0 0.0
      %1463 = vmatprep.subr.mxu0 0.0
      %1464 = vmatpush1.msra.mxu0 0.0
      %1465 = vmatprep.subr.mxu0 0.0
      %1466 = vmatpush1.msra.mxu0 0.0
      %1467 = vmatprep.subr.mxu0 0.0
      %1468 = vmatpush1.msra.mxu0 0.0
      %1469 = vmatprep.subr.mxu0 0.0
      %1470 = vmatpush1.msra.mxu0 0.0
      %1471 = vmatprep.subr.mxu0 0.0
      %1472 = vmatpush1.msra.mxu0 0.0
      %1473 = vmatprep.subr.mxu0 0.0
      %1474 = vmatpush1.msra.mxu0 0.0
      %1475 = vmatprep.subr.mxu0 0.0
      %1476 = vmatpush1.msra.mxu0 0.0
      %1477 = vmatprep.subr.mxu0 0.0
      %1478 = vmatpush1.msra.mxu0 0.0
      %1479 = vmatprep.subr.mxu0 0.0
      %1480 = vmatpush1.msra.mxu0 %v1444
      %1481 = vmatprep.subr.mxu0 0.0
      %1482 = vmatpush1.msra.mxu0 %v1443
      %1483 = vmatprep.subr.mxu0 0.0
      %1484 = vmatpush1.msra.mxu0 %v1442
      %1485 = vmatprep.subr.mxu0 0.0
      %1486 = vmatpush1.msra.mxu0 %v1441
      %1487 = vmatprep.subr.mxu0 0.0
      %1488 = vmatpush2.msra.mxu0 0.0
      %1489 = vmatprep.subr.mxu0 0.0
      %1490 = vmatpush2.msra.mxu0 0.0
      %1491 = vmatprep.subr.mxu0 0.0
      %1492 = vmatpush2.msra.mxu0 0.0
      %1493 = vmatprep.subr.mxu0 0.0
      %1494 = vmatpush2.msra.mxu0 0.0
      %1495 = vmatprep.subr.mxu0 0.0
      %1496 = vmatpush2.msra.mxu0 0.0
      %1497 = vmatprep.subr.mxu0 0.0
      %1498 = vmatpush2.msra.mxu0 0.0
      %1499 = vmatprep.subr.mxu0 0.0
      %1500 = vmatpush2.msra.mxu0 0.0
      %1501 = vmatprep.subr.mxu0 0.0
      %1502 = vmatpush2.msra.mxu0 0.0
      %1503 = vmatprep.subr.mxu0 0.0
      %1504 = vmatpush2.msra.mxu0 0.0
      %1505 = vmatprep.subr.mxu0 0.0
      %1506 = vmatpush2.msra.mxu0 0.0
      %1507 = vmatprep.subr.mxu0 0.0
      %1508 = vmatpush2.msra.mxu0 0.0
      %1509 = vmatprep.subr.mxu0 0.0
      %1510 = vmatpush2.msra.mxu0 0.0
      %1511 = vmatprep.subr.mxu0 0.0
      %1512 = vmatpush2.msra.mxu0 0.0
      %1513 = vmatprep.subr.mxu0 0.0
      %1514 = vmatpush2.msra.mxu0 0.0
      %1515 = vmatprep.subr.mxu0 0.0
      %1516 = vmatpush2.msra.mxu0 0.0
      %1517 = vmatprep.subr.mxu0 0.0
      %1518 = vmatpush2.msra.mxu0 0.0
      %1519 = vmatprep.mubr.f32.mxu0 0.0
      %1520 = vmatmul.mubr.f32.gmra.mxu0 %v1450
      %v1521 = vpop.f32.mrf.mxu0
      %v1522 = vadd.f32 %v1448, %v1521
      %v1523 = vpop.f32.mrf.mxu0
      %1524 = vmatprep.mubr.f32.mxu0 0.0
      %1525 = vmatmul.mubr.f32.gmra.mxu0 %v1453
      %v1526 = vpop.f32.mrf.mxu0
      %v1527 = vadd.f32 %v1448, %v1526
      %v1528 = vpop.f32.mrf.mxu0
      %1529 = vdwg.mxu0
      %v1530 = vadd.f32 %v360, %v1522
      %v1531 = vadd.f32 %v361, %v1527
      %v1532 = vsel %vm365, %v1530, 0.0
      %1533 = vadd.xlane.f32.xlu0 %v1532
      %v1534 = vpop.xlane.xlu0 %1533
      %v1535 = vsel %vm365, %v1531, 0.0
      %1536 = vadd.xlane.f32.xlu0 %v1535
      %v1537 = vpop.xlane.xlu0 %1536
      %v1538 = vmul.f32 %v1534, %v372
      %v1539 = vmul.f32 %v1537, %v372
      %v1540 = vsub.f32 %v1530, %v1538
      %v1541 = vsub.f32 %v1531, %v1539
      %v1542 = vmul.f32 %v1540, %v1540
      %v1543 = vmul.f32 %v1541, %v1541
      %v1544 = vsel %vm365, %v1542, 0.0
      %1545 = vadd.xlane.f32.xlu0 %v1544
      %v1546 = vpop.xlane.xlu0 %1545
      %v1547 = vsel %vm365, %v1543, 0.0
      %1548 = vadd.xlane.f32.xlu0 %v1547
      %v1549 = vpop.xlane.xlu0 %1548
      %v1550 = vmul.f32 %v1546, %v372
      %v1551 = vmul.f32 %v1549, %v372
      %v1552 = vadd.f32 %v1550, 1e-05
      %v1553 = vadd.f32 %v1551, 1e-05
      %v1554 = vrsqrt.pop %v1552
      %v1555 = vrsqrt.pop %v1553
      %v1556 = vmul.f32 %v1540, %v1554
      %v1557 = vmul.f32 %v1541, %v1555
      %v1558 = vlaneseq
      %v1559 = vshrl.u32 %v1558, 7
      %v1560 = vsub.s32 2, %v1559
      %v1561 = vrot.slane %v362, %v1560
      %v1562 = vmul.f32 %v1556, %v1561
      %v1563 = vmul.f32 %v1557, %v1561
      %v1564 = vlaneseq
      %v1565 = vshrl.u32 %v1564, 7
      %v1566 = vsub.s32 3, %v1565
      %v1567 = vrot.slane %v362, %v1566
      %v1568 = vadd.f32 %v1562, %v1567
      %v1569 = vadd.f32 %v1563, %v1567
      %v1570 = vld [vmem:[%s7] sm:$0xff]
      %v1571 = vld [vmem:[%s7 + $0x8] sm:$0xff]
      %v1572 = vld [vmem:[%s7 + $0x10] sm:$0xff]
      %v1573 = vld [vmem:[%s7 + $0x18] sm:$0xff]
      %v1574 = vld [vmem:[%s8] sm:$0x1]
      %v1576 = vlaneseq
      %v1577 = vshrl.u32 %v1576, 7
      %v1578 = vsub.s32 0, %v1577
      %v1579 = vrot.slane %v1574, %v1578
      %v1582 = vsel %vm365, %v1568, 0
      %v1585 = vsel %vm365, %v1569, 0
      %1587 = vmatprep.subr.mxu0 0.0
      %1588 = vmatpush1.msra.mxu0 0.0
      %1589 = vmatprep.subr.mxu0 0.0
      %1590 = vmatpush1.msra.mxu0 0.0
      %1591 = vmatprep.subr.mxu0 0.0
      %1592 = vmatpush1.msra.mxu0 0.0
      %1593 = vmatprep.subr.mxu0 0.0
      %1594 = vmatpush1.msra.mxu0 0.0
      %1595 = vmatprep.subr.mxu0 0.0
      %1596 = vmatpush1.msra.mxu0 0.0
      %1597 = vmatprep.subr.mxu0 0.0
      %1598 = vmatpush1.msra.mxu0 0.0
      %1599 = vmatprep.subr.mxu0 0.0
      %1600 = vmatpush1.msra.mxu0 0.0
      %1601 = vmatprep.subr.mxu0 0.0
      %1602 = vmatpush1.msra.mxu0 0.0
      %1603 = vmatprep.subr.mxu0 0.0
      %1604 = vmatpush1.msra.mxu0 0.0
      %1605 = vmatprep.subr.mxu0 0.0
      %1606 = vmatpush1.msra.mxu0 0.0
      %1607 = vmatprep.subr.mxu0 0.0
      %1608 = vmatpush1.msra.mxu0 0.0
      %1609 = vmatprep.subr.mxu0 0.0
      %1610 = vmatpush1.msra.mxu0 0.0
      %1611 = vmatprep.subr.mxu0 0.0
      %1612 = vmatpush1.msra.mxu0 %v1573
      %1613 = vmatprep.subr.mxu0 0.0
      %1614 = vmatpush1.msra.mxu0 %v1572
      %1615 = vmatprep.subr.mxu0 0.0
      %1616 = vmatpush1.msra.mxu0 %v1571
      %1617 = vmatprep.subr.mxu0 0.0
      %1618 = vmatpush1.msra.mxu0 %v1570
      %1619 = vmatprep.subr.mxu0 0.0
      %1620 = vmatpush2.msra.mxu0 0.0
      %1621 = vmatprep.subr.mxu0 0.0
      %1622 = vmatpush2.msra.mxu0 0.0
      %1623 = vmatprep.subr.mxu0 0.0
      %1624 = vmatpush2.msra.mxu0 0.0
      %1625 = vmatprep.subr.mxu0 0.0
      %1626 = vmatpush2.msra.mxu0 0.0
      %1627 = vmatprep.subr.mxu0 0.0
      %1628 = vmatpush2.msra.mxu0 0.0
      %1629 = vmatprep.subr.mxu0 0.0
      %1630 = vmatpush2.msra.mxu0 0.0
      %1631 = vmatprep.subr.mxu0 0.0
      %1632 = vmatpush2.msra.mxu0 0.0
      %1633 = vmatprep.subr.mxu0 0.0
      %1634 = vmatpush2.msra.mxu0 0.0
      %1635 = vmatprep.subr.mxu0 0.0
      %1636 = vmatpush2.msra.mxu0 0.0
      %1637 = vmatprep.subr.mxu0 0.0
      %1638 = vmatpush2.msra.mxu0 0.0
      %1639 = vmatprep.subr.mxu0 0.0
      %1640 = vmatpush2.msra.mxu0 0.0
      %1641 = vmatprep.subr.mxu0 0.0
      %1642 = vmatpush2.msra.mxu0 0.0
      %1643 = vmatprep.subr.mxu0 0.0
      %1644 = vmatpush2.msra.mxu0 0.0
      %1645 = vmatprep.subr.mxu0 0.0
      %1646 = vmatpush2.msra.mxu0 0.0
      %1647 = vmatprep.subr.mxu0 0.0
      %1648 = vmatpush2.msra.mxu0 0.0
      %1649 = vmatprep.subr.mxu0 0.0
      %1650 = vmatpush2.msra.mxu0 0.0
      %1651 = vmatprep.mubr.f32.mxu0 0.0
      %1652 = vmatmul.mubr.f32.gmra.mxu0 %v1582
      %v1653 = vpop.f32.mrf.mxu0
      %v1654 = vadd.f32 %v1579, %v1653
      %v1655 = vpop.f32.mrf.mxu0
      %1656 = vmatprep.mubr.f32.mxu0 0.0
      %1657 = vmatmul.mubr.f32.gmra.mxu0 %v1585
      %v1658 = vpop.f32.mrf.mxu0
      %v1659 = vadd.f32 %v1579, %v1658
      %v1660 = vpop.f32.mrf.mxu0
      %1661 = vdwg.mxu0
      %v1662 = vmax.f32 %v1654, 0.0
      %v1663 = vmax.f32 %v1659, 0.0
      %v1664 = vld [vmem:[%s9] sm:$0xff]
      %v1665 = vld [vmem:[%s9 + $0x8] sm:$0xff]
      %v1666 = vld [vmem:[%s9 + $0x10] sm:$0xff]
      %v1667 = vld [vmem:[%s9 + $0x18] sm:$0xff]
      %v1668 = vld [vmem:[%s9 + $0x20] sm:$0xff]
      %v1669 = vld [vmem:[%s9 + $0x28] sm:$0xff]
      %v1670 = vld [vmem:[%s9 + $0x30] sm:$0xff]
      %v1671 = vld [vmem:[%s9 + $0x38] sm:$0xff]
      %v1672 = vlaneseq
      %v1673 = vshrl.u32 %v1672, 7
      %v1674 = vsub.s32 0, %v1673
      %v1675 = vrot.slane %v363, %v1674
      %vm1676 = vcmask 523264
      %v1678 = vsel %vm1676, %v1662, 0
      %v1681 = vsel %vm1676, %v1663, 0
      %1683 = vmatprep.subr.mxu0 0.0
      %1684 = vmatpush1.msra.mxu0 0.0
      %1685 = vmatprep.subr.mxu0 0.0
      %1686 = vmatpush1.msra.mxu0 0.0
      %1687 = vmatprep.subr.mxu0 0.0
      %1688 = vmatpush1.msra.mxu0 0.0
      %1689 = vmatprep.subr.mxu0 0.0
      %1690 = vmatpush1.msra.mxu0 0.0
      %1691 = vmatprep.subr.mxu0 0.0
      %1692 = vmatpush1.msra.mxu0 0.0
      %1693 = vmatprep.subr.mxu0 0.0
      %1694 = vmatpush1.msra.mxu0 0.0
      %1695 = vmatprep.subr.mxu0 0.0
      %1696 = vmatpush1.msra.mxu0 0.0
      %1697 = vmatprep.subr.mxu0 0.0
      %1698 = vmatpush1.msra.mxu0 0.0
      %1699 = vmatprep.subr.mxu0 0.0
      %1700 = vmatpush1.msra.mxu0 %v1671
      %1701 = vmatprep.subr.mxu0 0.0
      %1702 = vmatpush1.msra.mxu0 %v1670
      %1703 = vmatprep.subr.mxu0 0.0
      %1704 = vmatpush1.msra.mxu0 %v1669
      %1705 = vmatprep.subr.mxu0 0.0
      %1706 = vmatpush1.msra.mxu0 %v1668
      %1707 = vmatprep.subr.mxu0 0.0
      %1708 = vmatpush1.msra.mxu0 %v1667
      %1709 = vmatprep.subr.mxu0 0.0
      %1710 = vmatpush1.msra.mxu0 %v1666
      %1711 = vmatprep.subr.mxu0 0.0
      %1712 = vmatpush1.msra.mxu0 %v1665
      %1713 = vmatprep.subr.mxu0 0.0
      %1714 = vmatpush1.msra.mxu0 %v1664
      %1715 = vmatprep.subr.mxu0 0.0
      %1716 = vmatpush2.msra.mxu0 0.0
      %1717 = vmatprep.subr.mxu0 0.0
      %1718 = vmatpush2.msra.mxu0 0.0
      %1719 = vmatprep.subr.mxu0 0.0
      %1720 = vmatpush2.msra.mxu0 0.0
      %1721 = vmatprep.subr.mxu0 0.0
      %1722 = vmatpush2.msra.mxu0 0.0
      %1723 = vmatprep.subr.mxu0 0.0
      %1724 = vmatpush2.msra.mxu0 0.0
      %1725 = vmatprep.subr.mxu0 0.0
      %1726 = vmatpush2.msra.mxu0 0.0
      %1727 = vmatprep.subr.mxu0 0.0
      %1728 = vmatpush2.msra.mxu0 0.0
      %1729 = vmatprep.subr.mxu0 0.0
      %1730 = vmatpush2.msra.mxu0 0.0
      %1731 = vmatprep.subr.mxu0 0.0
      %1732 = vmatpush2.msra.mxu0 0.0
      %1733 = vmatprep.subr.mxu0 0.0
      %1734 = vmatpush2.msra.mxu0 0.0
      %1735 = vmatprep.subr.mxu0 0.0
      %1736 = vmatpush2.msra.mxu0 0.0
      %1737 = vmatprep.subr.mxu0 0.0
      %1738 = vmatpush2.msra.mxu0 0.0
      %1739 = vmatprep.subr.mxu0 0.0
      %1740 = vmatpush2.msra.mxu0 0.0
      %1741 = vmatprep.subr.mxu0 0.0
      %1742 = vmatpush2.msra.mxu0 0.0
      %1743 = vmatprep.subr.mxu0 0.0
      %1744 = vmatpush2.msra.mxu0 0.0
      %1745 = vmatprep.subr.mxu0 0.0
      %1746 = vmatpush2.msra.mxu0 0.0
      %1747 = vmatprep.mubr.f32.mxu0 0.0
      %1748 = vmatmul.mubr.f32.gmra.mxu0 %v1678
      %v1749 = vpop.f32.mrf.mxu0
      %v1750 = vadd.f32 %v1675, %v1749
      %v1751 = vpop.f32.mrf.mxu0
      %1752 = vmatprep.mubr.f32.mxu0 0.0
      %1753 = vmatmul.mubr.f32.gmra.mxu0 %v1681
      %v1754 = vpop.f32.mrf.mxu0
      %v1755 = vadd.f32 %v1675, %v1754
      %v1756 = vpop.f32.mrf.mxu0
      %1757 = vdwg.mxu0
      %v1758 = vadd.f32 %v1530, %v1750
      %v1759 = vadd.f32 %v1531, %v1755
      %1760 = vst.msk [vmem:[%s359] sm:$0xff] %vm365, %v1758
      %1761 = vst.msk [vmem:[%s359 + $0x8] sm:$0xff] %vm365, %v1759
      %p1762 = scmp.lt.s32.totalorder %s21, 1
      %s1763 = scalar_select %p1762, %s21, 1
      %s1764 = smul.addr %s1763, 2
      %s1765 = smul.addr %s1764, 8
      %s1766 = scalar_lea.vmem %s10, %s1765
      // Predicated region
      $region61: #{transunet_forward.6} parent=59 // pred_check
        %p1767 = pneg %p254
      $region62: #{transunet_forward.6} parent=59 // pred_check_branch
        %1769 = sbr.rel (%p1767) target = $region64
      $region63: #{transunet_forward.6} parent=59 // pred_region
        _
      $region64: #{transunet_forward.6} parent=59 // pred_fallthru
        _
    $region60: #{transunet_forward.6} parent=5 // pred_fallthru
      _
    %p1770 = scmp.le.s32.totalorder 2, %s16
    // Predicated region
    $region65: #{transunet_forward.6} parent=5 // pred_check
      %p1771 = pneg %p1770
    $region66: #{transunet_forward.6} parent=5 // pred_check_branch
      %1773 = sbr.rel (%p1771) target = $region68
    $region67: #{transunet_forward.6} parent=5 // pred_region
      %s1774 = ssub.s32 %s16, 2
      // Predicated region
      $region69: #{transunet_forward.6} parent=67 // pred_check
        %p1775 = pneg %p260
      $region70: #{transunet_forward.6} parent=67 // pred_check_branch
        %1777 = sbr.rel (%p1775) target = $region72
      $region71: #{transunet_forward.6} parent=67 // pred_region
        %p1778 = scmp.lt.s32.totalorder %s22, 1
        %s1779 = scalar_select %p1778, %s22, 1
        %s1780 = smul.addr %s1779, 2
        %s1781 = smul.addr %s1780, 8
        %s1782 = scalar_lea.vmem %s10, %s1781
      $region72: #{transunet_forward.6} parent=67 // pred_fallthru
        _
    $region68: #{transunet_forward.6} parent=5 // pred_fallthru
      _
  $region6: #{transunet_forward.6} parent=0 // loop_footer
    %s20 = sadd.s32 1, %s16
  $region7: #{transunet_forward.6} parent=0 // loop_footer_branch
    %15 = sbr.rel target = $region3
  $region8: #{transunet_forward.6} parent=0 // loop_exit
    _

// kernel: transunet_forward.7
$region0: #{transunet_forward.7}
  #allocation0 [shape = 'u32[]', space=smem, size = 0x4, offset = 0x4, fixed_abs, tag = 'smem constant byte address 0x4 - core index']
  #allocation1 [shape = 'u32[144,128]{1,0:T(1,128)}', space=vmem, size = 0x12000, scoped, tag = 'internal scratch']
  #allocation2 [shape = 'f32[1,1]{1,0:T(1,128)S(1)}', space=vmem, size = 0x200, scoped, tag = 'scoped memory for transunet_forward.7']
  %s0 = inlined_call_operand.vmem [shape: f32[128,360], index: 0, kind: input, shape index: {}]
  %s1 = inlined_call_operand.vmem [shape: f32[360,16], index: 1, kind: input, shape index: {}]
  %s2 = inlined_call_operand.vmem [shape: f32[1,16], index: 2, kind: input, shape index: {}]
  %s3 = inlined_call_operand.vmem [shape: f32[16,1], index: 3, kind: input, shape index: {}]
  %s4 = inlined_call_operand.<no memory space> [shape: f32[1,1], index: 4, kind: input, shape index: {}]
  %s5 = inlined_call_operand.vmem [shape: f32[128,1], index: 5, kind: output, shape index: {}]
  %s6 = sld [smem:[#allocation0]]
  $region30: #{transunet_forward.7} parent=0
    _
  %s8 = ssub.s32 1, %s6
  %s9 = scalar_select 0, %s8, %s6
  %v10 = vstv %s4
  %11 = vst [vmem:[#allocation2] sm:$0x1] %v10
  // Predicated region
  $region2: #{transunet_forward.7} parent=0 // pred_check
    _
  $region3: #{transunet_forward.7} parent=0 // pred_check_branch
    %13 = sbr.rel (0) target = $region5
  $region4: #{transunet_forward.7} parent=0 // pred_region
    _
  $region5: #{transunet_forward.7} parent=0 // pred_fallthru
    _
  // Predicated region
  $region6: #{transunet_forward.7} parent=0 // pred_check
    _
  $region7: #{transunet_forward.7} parent=0 // pred_check_branch
    %15 = sbr.rel (0) target = $region9
  $region8: #{transunet_forward.7} parent=0 // pred_region
    _
  $region9: #{transunet_forward.7} parent=0 // pred_fallthru
    _
  // Predicated region
  $region10: #{transunet_forward.7} parent=0 // pred_check
    _
  $region11: #{transunet_forward.7} parent=0 // pred_check_branch
    %17 = sbr.rel (0) target = $region13
  $region12: #{transunet_forward.7} parent=0 // pred_region
    _
  $region13: #{transunet_forward.7} parent=0 // pred_fallthru
    _
  // Predicated region
  $region14: #{transunet_forward.7} parent=0 // pred_check
    _
  $region15: #{transunet_forward.7} parent=0 // pred_check_branch
    %19 = sbr.rel (0) target = $region17
  $region16: #{transunet_forward.7} parent=0 // pred_region
    _
  $region17: #{transunet_forward.7} parent=0 // pred_fallthru
    _
  // Predicated region
  $region18: #{transunet_forward.7} parent=0 // pred_check
    _
  $region19: #{transunet_forward.7} parent=0 // pred_check_branch
    %21 = sbr.rel (0) target = $region21
  $region20: #{transunet_forward.7} parent=0 // pred_region
    _
  $region21: #{transunet_forward.7} parent=0 // pred_fallthru
    _
  %v22 = vld [vmem:[%s0] sm:$0xff]
  %v23 = vld [vmem:[%s0 + $0x8] sm:$0xff]
  %v24 = vld [vmem:[%s0 + $0x10] sm:$0xff]
  %v25 = vld [vmem:[%s0 + $0x18] sm:$0xff]
  %v26 = vld [vmem:[%s0 + $0x20] sm:$0xff]
  %v27 = vld [vmem:[%s0 + $0x28] sm:$0xff]
  %v28 = vld [vmem:[%s0 + $0x30] sm:$0xff]
  %v29 = vld [vmem:[%s0 + $0x38] sm:$0xff]
  %v30 = vld [vmem:[%s0 + $0x40] sm:$0xff]
  %v31 = vld [vmem:[%s0 + $0x48] sm:$0xff]
  %v32 = vld [vmem:[%s0 + $0x50] sm:$0xff]
  %v33 = vld [vmem:[%s0 + $0x58] sm:$0xff]
  %v34 = vld [vmem:[%s0 + $0x60] sm:$0xff]
  %v35 = vld [vmem:[%s0 + $0x68] sm:$0xff]
  %v36 = vld [vmem:[%s0 + $0x70] sm:$0xff]
  %v37 = vld [vmem:[%s0 + $0x78] sm:$0xff]
  %v38 = vld [vmem:[%s0 + $0x80] sm:$0xff]
  %v39 = vld [vmem:[%s0 + $0x88] sm:$0xff]
  %v40 = vld [vmem:[%s0 + $0x90] sm:$0xff]
  %v41 = vld [vmem:[%s0 + $0x98] sm:$0xff]
  %v42 = vld [vmem:[%s0 + $0xa0] sm:$0xff]
  %v43 = vld [vmem:[%s0 + $0xa8] sm:$0xff]
  %v44 = vld [vmem:[%s0 + $0xb0] sm:$0xff]
  %v45 = vld [vmem:[%s0 + $0xb8] sm:$0xff]
  %v46 = vld [vmem:[%s0 + $0xc0] sm:$0xff]
  %v47 = vld [vmem:[%s0 + $0xc8] sm:$0xff]
  %v48 = vld [vmem:[%s0 + $0xd0] sm:$0xff]
  %v49 = vld [vmem:[%s0 + $0xd8] sm:$0xff]
  %v50 = vld [vmem:[%s0 + $0xe0] sm:$0xff]
  %v51 = vld [vmem:[%s0 + $0xe8] sm:$0xff]
  %v52 = vld [vmem:[%s0 + $0xf0] sm:$0xff]
  %v53 = vld [vmem:[%s0 + $0xf8] sm:$0xff]
  %v54 = vld [vmem:[%s0 + $0x100] sm:$0xff]
  %v55 = vld [vmem:[%s0 + $0x108] sm:$0xff]
  %v56 = vld [vmem:[%s0 + $0x110] sm:$0xff]
  %v57 = vld [vmem:[%s0 + $0x118] sm:$0xff]
  %v58 = vld [vmem:[%s0 + $0x120] sm:$0xff]
  %v59 = vld [vmem:[%s0 + $0x128] sm:$0xff]
  %v60 = vld [vmem:[%s0 + $0x130] sm:$0xff]
  %v61 = vld [vmem:[%s0 + $0x138] sm:$0xff]
  %v62 = vld [vmem:[%s0 + $0x140] sm:$0xff]
  %v63 = vld [vmem:[%s0 + $0x148] sm:$0xff]
  %v64 = vld [vmem:[%s0 + $0x150] sm:$0xff]
  %v65 = vld [vmem:[%s0 + $0x158] sm:$0xff]
  %v66 = vld [vmem:[%s0 + $0x160] sm:$0xff]
  %v67 = vld [vmem:[%s0 + $0x168] sm:$0xff]
  %v68 = vld [vmem:[%s0 + $0x170] sm:$0xff]
  %v69 = vld [vmem:[%s0 + $0x178] sm:$0xff]
  %v70 = vld [vmem:[%s1] sm:$0xff]
  %v71 = vld [vmem:[%s1 + $0x8] sm:$0xff]
  %v72 = vld [vmem:[%s1 + $0x10] sm:$0xff]
  %v73 = vld [vmem:[%s1 + $0x18] sm:$0xff]
  %v74 = vld [vmem:[%s1 + $0x20] sm:$0xff]
  %v75 = vld [vmem:[%s1 + $0x28] sm:$0xff]
  %v76 = vld [vmem:[%s1 + $0x30] sm:$0xff]
  %v77 = vld [vmem:[%s1 + $0x38] sm:$0xff]
  %v78 = vld [vmem:[%s1 + $0x40] sm:$0xff]
  %v79 = vld [vmem:[%s1 + $0x48] sm:$0xff]
  %v80 = vld [vmem:[%s1 + $0x50] sm:$0xff]
  %v81 = vld [vmem:[%s1 + $0x58] sm:$0xff]
  %v82 = vld [vmem:[%s1 + $0x60] sm:$0xff]
  %v83 = vld [vmem:[%s1 + $0x68] sm:$0xff]
  %v84 = vld [vmem:[%s1 + $0x70] sm:$0xff]
  %v85 = vld [vmem:[%s1 + $0x78] sm:$0xff]
  %v86 = vld [vmem:[%s1 + $0x80] sm:$0xff]
  %v87 = vld [vmem:[%s1 + $0x88] sm:$0xff]
  %v88 = vld [vmem:[%s1 + $0x90] sm:$0xff]
  %v89 = vld [vmem:[%s1 + $0x98] sm:$0xff]
  %v90 = vld [vmem:[%s1 + $0xa0] sm:$0xff]
  %v91 = vld [vmem:[%s1 + $0xa8] sm:$0xff]
  %v92 = vld [vmem:[%s1 + $0xb0] sm:$0xff]
  %v93 = vld [vmem:[%s1 + $0xb8] sm:$0xff]
  %v94 = vld [vmem:[%s1 + $0xc0] sm:$0xff]
  %v95 = vld [vmem:[%s1 + $0xc8] sm:$0xff]
  %v96 = vld [vmem:[%s1 + $0xd0] sm:$0xff]
  %v97 = vld [vmem:[%s1 + $0xd8] sm:$0xff]
  %v98 = vld [vmem:[%s1 + $0xe0] sm:$0xff]
  %v99 = vld [vmem:[%s1 + $0xe8] sm:$0xff]
  %v100 = vld [vmem:[%s1 + $0xf0] sm:$0xff]
  %v101 = vld [vmem:[%s1 + $0xf8] sm:$0xff]
  %v102 = vld [vmem:[%s1 + $0x100] sm:$0xff]
  %v103 = vld [vmem:[%s1 + $0x108] sm:$0xff]
  %v104 = vld [vmem:[%s1 + $0x110] sm:$0xff]
  %v105 = vld [vmem:[%s1 + $0x118] sm:$0xff]
  %v106 = vld [vmem:[%s1 + $0x120] sm:$0xff]
  %v107 = vld [vmem:[%s1 + $0x128] sm:$0xff]
  %v108 = vld [vmem:[%s1 + $0x130] sm:$0xff]
  %v109 = vld [vmem:[%s1 + $0x138] sm:$0xff]
  %v110 = vld [vmem:[%s1 + $0x140] sm:$0xff]
  %v111 = vld [vmem:[%s1 + $0x148] sm:$0xff]
  %v112 = vld [vmem:[%s1 + $0x150] sm:$0xff]
  %v113 = vld [vmem:[%s1 + $0x158] sm:$0xff]
  %v114 = vld [vmem:[%s1 + $0x160] sm:$0xff]
  %v115 = vld [vmem:[%s2] sm:$0x1]
  %v117 = vlaneseq
  %v118 = vshrl.u32 %v117, 7
  %v119 = vsub.s32 0, %v118
  %v120 = vrot.slane %v115, %v119
  %vm122 = vcmask 850944
  %v124 = vsel %vm122, %v24, 0
  %v127 = vsel %vm122, %v27, 0
  %v130 = vsel %vm122, %v30, 0
  %v133 = vsel %vm122, %v33, 0
  %v136 = vsel %vm122, %v36, 0
  %v139 = vsel %vm122, %v39, 0
  %v142 = vsel %vm122, %v42, 0
  %v145 = vsel %vm122, %v45, 0
  %v148 = vsel %vm122, %v48, 0
  %v151 = vsel %vm122, %v51, 0
  %v154 = vsel %vm122, %v54, 0
  %v157 = vsel %vm122, %v57, 0
  %v160 = vsel %vm122, %v60, 0
  %v163 = vsel %vm122, %v63, 0
  %v166 = vsel %vm122, %v66, 0
  %v169 = vsel %vm122, %v69, 0
  %171 = vmatprep.subr.mxu0 0.0
  %172 = vmatpush1.msra.mxu0 %v85
  %173 = vmatprep.subr.mxu0 0.0
  %174 = vmatpush1.msra.mxu0 %v84
  %175 = vmatprep.subr.mxu0 0.0
  %176 = vmatpush1.msra.mxu0 %v83
  %177 = vmatprep.subr.mxu0 0.0
  %178 = vmatpush1.msra.mxu0 %v82
  %179 = vmatprep.subr.mxu0 0.0
  %180 = vmatpush1.msra.mxu0 %v81
  %181 = vmatprep.subr.mxu0 0.0
  %182 = vmatpush1.msra.mxu0 %v80
  %183 = vmatprep.subr.mxu0 0.0
  %184 = vmatpush1.msra.mxu0 %v79
  %185 = vmatprep.subr.mxu0 0.0
  %186 = vmatpush1.msra.mxu0 %v78
  %187 = vmatprep.subr.mxu0 0.0
  %188 = vmatpush1.msra.mxu0 %v77
  %189 = vmatprep.subr.mxu0 0.0
  %190 = vmatpush1.msra.mxu0 %v76
  %191 = vmatprep.subr.mxu0 0.0
  %192 = vmatpush1.msra.mxu0 %v75
  %193 = vmatprep.subr.mxu0 0.0
  %194 = vmatpush1.msra.mxu0 %v74
  %195 = vmatprep.subr.mxu0 0.0
  %196 = vmatpush1.msra.mxu0 %v73
  %197 = vmatprep.subr.mxu0 0.0
  %198 = vmatpush1.msra.mxu0 %v72
  %199 = vmatprep.subr.mxu0 0.0
  %200 = vmatpush1.msra.mxu0 %v71
  %201 = vmatprep.subr.mxu0 0.0
  %202 = vmatpush1.msra.mxu0 %v70
  %203 = vmatprep.subr.mxu0 0.0
  %204 = vmatpush2.msra.mxu0 %v101
  %205 = vmatprep.subr.mxu0 0.0
  %206 = vmatpush2.msra.mxu0 %v100
  %207 = vmatprep.subr.mxu0 0.0
  %208 = vmatpush2.msra.mxu0 %v99
  %209 = vmatprep.subr.mxu0 0.0
  %210 = vmatpush2.msra.mxu0 %v98
  %211 = vmatprep.subr.mxu0 0.0
  %212 = vmatpush2.msra.mxu0 %v97
  %213 = vmatprep.subr.mxu0 0.0
  %214 = vmatpush2.msra.mxu0 %v96
  %215 = vmatprep.subr.mxu0 0.0
  %216 = vmatpush2.msra.mxu0 %v95
  %217 = vmatprep.subr.mxu0 0.0
  %218 = vmatpush2.msra.mxu0 %v94
  %219 = vmatprep.subr.mxu0 0.0
  %220 = vmatpush2.msra.mxu0 %v93
  %221 = vmatprep.subr.mxu0 0.0
  %222 = vmatpush2.msra.mxu0 %v92
  %223 = vmatprep.subr.mxu0 0.0
  %224 = vmatpush2.msra.mxu0 %v91
  %225 = vmatprep.subr.mxu0 0.0
  %226 = vmatpush2.msra.mxu0 %v90
  %227 = vmatprep.subr.mxu0 0.0
  %228 = vmatpush2.msra.mxu0 %v89
  %229 = vmatprep.subr.mxu0 0.0
  %230 = vmatpush2.msra.mxu0 %v88
  %231 = vmatprep.subr.mxu0 0.0
  %232 = vmatpush2.msra.mxu0 %v87
  %233 = vmatprep.subr.mxu0 0.0
  %234 = vmatpush2.msra.mxu0 %v86
  %235 = vmatprep.mubr.f32.mxu0 %v23
  %236 = vmatmul.mubr.f32.gmra.mxu0 %v22
  %v237 = vpop.f32.mrf.mxu0
  %v238 = vadd.f32 %v120, %v237
  %v239 = vpop.f32.mrf.mxu0
  %240 = vmatprep.mubr.f32.mxu0 %v26
  %241 = vmatmul.mubr.f32.gmra.mxu0 %v25
  %v242 = vpop.f32.mrf.mxu0
  %v243 = vadd.f32 %v120, %v242
  %v244 = vpop.f32.mrf.mxu0
  %245 = vmatprep.mubr.f32.mxu0 %v29
  %246 = vmatmul.mubr.f32.gmra.mxu0 %v28
  %v247 = vpop.f32.mrf.mxu0
  %v248 = vadd.f32 %v120, %v247
  %v249 = vpop.f32.mrf.mxu0
  %250 = vmatprep.mubr.f32.mxu0 %v32
  %251 = vmatmul.mubr.f32.gmra.mxu0 %v31
  %v252 = vpop.f32.mrf.mxu0
  %v253 = vadd.f32 %v120, %v252
  %v254 = vpop.f32.mrf.mxu0
  %255 = vmatprep.mubr.f32.mxu0 %v35
  %256 = vmatmul.mubr.f32.gmra.mxu0 %v34
  %v257 = vpop.f32.mrf.mxu0
  %v258 = vadd.f32 %v120, %v257
  %v259 = vpop.f32.mrf.mxu0
  %260 = vmatprep.mubr.f32.mxu0 %v38
  %261 = vmatmul.mubr.f32.gmra.mxu0 %v37
  %v262 = vpop.f32.mrf.mxu0
  %v263 = vadd.f32 %v120, %v262
  %v264 = vpop.f32.mrf.mxu0
  %265 = vmatprep.mubr.f32.mxu0 %v41
  %266 = vmatmul.mubr.f32.gmra.mxu0 %v40
  %v267 = vpop.f32.mrf.mxu0
  %v268 = vadd.f32 %v120, %v267
  %v269 = vpop.f32.mrf.mxu0
  %270 = vmatprep.mubr.f32.mxu0 %v44
  %271 = vmatmul.mubr.f32.gmra.mxu0 %v43
  %v272 = vpop.f32.mrf.mxu0
  %v273 = vadd.f32 %v120, %v272
  %v274 = vpop.f32.mrf.mxu0
  %275 = vmatprep.mubr.f32.mxu0 %v47
  %276 = vmatmul.mubr.f32.gmra.mxu0 %v46
  %v277 = vpop.f32.mrf.mxu0
  %v278 = vadd.f32 %v120, %v277
  %v279 = vpop.f32.mrf.mxu0
  %280 = vmatprep.mubr.f32.mxu0 %v50
  %281 = vmatmul.mubr.f32.gmra.mxu0 %v49
  %v282 = vpop.f32.mrf.mxu0
  %v283 = vadd.f32 %v120, %v282
  %v284 = vpop.f32.mrf.mxu0
  %285 = vmatprep.mubr.f32.mxu0 %v53
  %286 = vmatmul.mubr.f32.gmra.mxu0 %v52
  %v287 = vpop.f32.mrf.mxu0
  %v288 = vadd.f32 %v120, %v287
  %v289 = vpop.f32.mrf.mxu0
  %290 = vmatprep.mubr.f32.mxu0 %v56
  %291 = vmatmul.mubr.f32.gmra.mxu0 %v55
  %v292 = vpop.f32.mrf.mxu0
  %v293 = vadd.f32 %v120, %v292
  %v294 = vpop.f32.mrf.mxu0
  %295 = vmatprep.mubr.f32.mxu0 %v59
  %296 = vmatmul.mubr.f32.gmra.mxu0 %v58
  %v297 = vpop.f32.mrf.mxu0
  %v298 = vadd.f32 %v120, %v297
  %v299 = vpop.f32.mrf.mxu0
  %300 = vmatprep.mubr.f32.mxu0 %v62
  %301 = vmatmul.mubr.f32.gmra.mxu0 %v61
  %v302 = vpop.f32.mrf.mxu0
  %v303 = vadd.f32 %v120, %v302
  %v304 = vpop.f32.mrf.mxu0
  %305 = vmatprep.mubr.f32.mxu0 %v65
  %306 = vmatmul.mubr.f32.gmra.mxu0 %v64
  %v307 = vpop.f32.mrf.mxu0
  %v308 = vadd.f32 %v120, %v307
  %v309 = vpop.f32.mrf.mxu0
  %310 = vmatprep.mubr.f32.mxu0 %v68
  %311 = vmatmul.mubr.f32.gmra.mxu0 %v67
  %v312 = vpop.f32.mrf.mxu0
  %v313 = vadd.f32 %v120, %v312
  %v314 = vpop.f32.mrf.mxu0
  %315 = vdwg.mxu0
  %316 = vmatprep.subr.mxu0 0.0
  %317 = vmatpush1.msra.mxu0 0.0
  %318 = vmatprep.subr.mxu0 0.0
  %319 = vmatpush1.msra.mxu0 0.0
  %320 = vmatprep.subr.mxu0 0.0
  %321 = vmatpush1.msra.mxu0 0.0
  %322 = vmatprep.subr.mxu0 0.0
  %323 = vmatpush1.msra.mxu0 %v114
  %324 = vmatprep.subr.mxu0 0.0
  %325 = vmatpush1.msra.mxu0 %v113
  %326 = vmatprep.subr.mxu0 0.0
  %327 = vmatpush1.msra.mxu0 %v112
  %328 = vmatprep.subr.mxu0 0.0
  %329 = vmatpush1.msra.mxu0 %v111
  %330 = vmatprep.subr.mxu0 0.0
  %331 = vmatpush1.msra.mxu0 %v110
  %332 = vmatprep.subr.mxu0 0.0
  %333 = vmatpush1.msra.mxu0 %v109
  %334 = vmatprep.subr.mxu0 0.0
  %335 = vmatpush1.msra.mxu0 %v108
  %336 = vmatprep.subr.mxu0 0.0
  %337 = vmatpush1.msra.mxu0 %v107
  %338 = vmatprep.subr.mxu0 0.0
  %339 = vmatpush1.msra.mxu0 %v106
  %340 = vmatprep.subr.mxu0 0.0
  %341 = vmatpush1.msra.mxu0 %v105
  %342 = vmatprep.subr.mxu0 0.0
  %343 = vmatpush1.msra.mxu0 %v104
  %344 = vmatprep.subr.mxu0 0.0
  %345 = vmatpush1.msra.mxu0 %v103
  %346 = vmatprep.subr.mxu0 0.0
  %347 = vmatpush1.msra.mxu0 %v102
  %348 = vmatprep.subr.mxu0 0.0
  %349 = vmatpush2.msra.mxu0 0.0
  %350 = vmatprep.subr.mxu0 0.0
  %351 = vmatpush2.msra.mxu0 0.0
  %352 = vmatprep.subr.mxu0 0.0
  %353 = vmatpush2.msra.mxu0 0.0
  %354 = vmatprep.subr.mxu0 0.0
  %355 = vmatpush2.msra.mxu0 0.0
  %356 = vmatprep.subr.mxu0 0.0
  %357 = vmatpush2.msra.mxu0 0.0
  %358 = vmatprep.subr.mxu0 0.0
  %359 = vmatpush2.msra.mxu0 0.0
  %360 = vmatprep.subr.mxu0 0.0
  %361 = vmatpush2.msra.mxu0 0.0
  %362 = vmatprep.subr.mxu0 0.0
  %363 = vmatpush2.msra.mxu0 0.0
  %364 = vmatprep.subr.mxu0 0.0
  %365 = vmatpush2.msra.mxu0 0.0
  %366 = vmatprep.subr.mxu0 0.0
  %367 = vmatpush2.msra.mxu0 0.0
  %368 = vmatprep.subr.mxu0 0.0
  %369 = vmatpush2.msra.mxu0 0.0
  %370 = vmatprep.subr.mxu0 0.0
  %371 = vmatpush2.msra.mxu0 0.0
  %372 = vmatprep.subr.mxu0 0.0
  %373 = vmatpush2.msra.mxu0 0.0
  %374 = vmatprep.subr.mxu0 0.0
  %375 = vmatpush2.msra.mxu0 0.0
  %376 = vmatprep.subr.mxu0 0.0
  %377 = vmatpush2.msra.mxu0 0.0
  %378 = vmatprep.subr.mxu0 0.0
  %379 = vmatpush2.msra.mxu0 0.0
  %380 = vmatprep.mubr.f32.mxu0 0.0
  %381 = vmatmul.mubr.f32.gmra.mxu0 %v124
  %v382 = vpop.f32.mrf.mxu0
  %v383 = vadd.f32 %v238, %v382
  %v384 = vpop.f32.mrf.mxu0
  %385 = vmatprep.mubr.f32.mxu0 0.0
  %386 = vmatmul.mubr.f32.gmra.mxu0 %v127
  %v387 = vpop.f32.mrf.mxu0
  %v388 = vadd.f32 %v243, %v387
  %v389 = vpop.f32.mrf.mxu0
  %390 = vmatprep.mubr.f32.mxu0 0.0
  %391 = vmatmul.mubr.f32.gmra.mxu0 %v130
  %v392 = vpop.f32.mrf.mxu0
  %v393 = vadd.f32 %v248, %v392
  %v394 = vpop.f32.mrf.mxu0
  %395 = vmatprep.mubr.f32.mxu0 0.0
  %396 = vmatmul.mubr.f32.gmra.mxu0 %v133
  %v397 = vpop.f32.mrf.mxu0
  %v398 = vadd.f32 %v253, %v397
  %v399 = vpop.f32.mrf.mxu0
  %400 = vmatprep.mubr.f32.mxu0 0.0
  %401 = vmatmul.mubr.f32.gmra.mxu0 %v136
  %v402 = vpop.f32.mrf.mxu0
  %v403 = vadd.f32 %v258, %v402
  %v404 = vpop.f32.mrf.mxu0
  %405 = vmatprep.mubr.f32.mxu0 0.0
  %406 = vmatmul.mubr.f32.gmra.mxu0 %v139
  %v407 = vpop.f32.mrf.mxu0
  %v408 = vadd.f32 %v263, %v407
  %v409 = vpop.f32.mrf.mxu0
  %410 = vmatprep.mubr.f32.mxu0 0.0
  %411 = vmatmul.mubr.f32.gmra.mxu0 %v142
  %v412 = vpop.f32.mrf.mxu0
  %v413 = vadd.f32 %v268, %v412
  %v414 = vpop.f32.mrf.mxu0
  %415 = vmatprep.mubr.f32.mxu0 0.0
  %416 = vmatmul.mubr.f32.gmra.mxu0 %v145
  %v417 = vpop.f32.mrf.mxu0
  %v418 = vadd.f32 %v273, %v417
  %v419 = vpop.f32.mrf.mxu0
  %420 = vmatprep.mubr.f32.mxu0 0.0
  %421 = vmatmul.mubr.f32.gmra.mxu0 %v148
  %v422 = vpop.f32.mrf.mxu0
  %v423 = vadd.f32 %v278, %v422
  %v424 = vpop.f32.mrf.mxu0
  %425 = vmatprep.mubr.f32.mxu0 0.0
  %426 = vmatmul.mubr.f32.gmra.mxu0 %v151
  %v427 = vpop.f32.mrf.mxu0
  %v428 = vadd.f32 %v283, %v427
  %v429 = vpop.f32.mrf.mxu0
  %430 = vmatprep.mubr.f32.mxu0 0.0
  %431 = vmatmul.mubr.f32.gmra.mxu0 %v154
  %v432 = vpop.f32.mrf.mxu0
  %v433 = vadd.f32 %v288, %v432
  %v434 = vpop.f32.mrf.mxu0
  %435 = vmatprep.mubr.f32.mxu0 0.0
  %436 = vmatmul.mubr.f32.gmra.mxu0 %v157
  %v437 = vpop.f32.mrf.mxu0
  %v438 = vadd.f32 %v293, %v437
  %v439 = vpop.f32.mrf.mxu0
  %440 = vmatprep.mubr.f32.mxu0 0.0
  %441 = vmatmul.mubr.f32.gmra.mxu0 %v160
  %v442 = vpop.f32.mrf.mxu0
  %v443 = vadd.f32 %v298, %v442
  %v444 = vpop.f32.mrf.mxu0
  %445 = vmatprep.mubr.f32.mxu0 0.0
  %446 = vmatmul.mubr.f32.gmra.mxu0 %v163
  %v447 = vpop.f32.mrf.mxu0
  %v448 = vadd.f32 %v303, %v447
  %v449 = vpop.f32.mrf.mxu0
  %450 = vmatprep.mubr.f32.mxu0 0.0
  %451 = vmatmul.mubr.f32.gmra.mxu0 %v166
  %v452 = vpop.f32.mrf.mxu0
  %v453 = vadd.f32 %v308, %v452
  %v454 = vpop.f32.mrf.mxu0
  %455 = vmatprep.mubr.f32.mxu0 0.0
  %456 = vmatmul.mubr.f32.gmra.mxu0 %v169
  %v457 = vpop.f32.mrf.mxu0
  %v458 = vadd.f32 %v313, %v457
  %v459 = vpop.f32.mrf.mxu0
  %460 = vdwg.mxu0
  %v461 = vmax.f32 %v383, 0.0
  %v462 = vmax.f32 %v388, 0.0
  %v463 = vmax.f32 %v393, 0.0
  %v464 = vmax.f32 %v398, 0.0
  %v465 = vmax.f32 %v403, 0.0
  %v466 = vmax.f32 %v408, 0.0
  %v467 = vmax.f32 %v413, 0.0
  %v468 = vmax.f32 %v418, 0.0
  %v469 = vmax.f32 %v423, 0.0
  %v470 = vmax.f32 %v428, 0.0
  %v471 = vmax.f32 %v433, 0.0
  %v472 = vmax.f32 %v438, 0.0
  %v473 = vmax.f32 %v443, 0.0
  %v474 = vmax.f32 %v448, 0.0
  %v475 = vmax.f32 %v453, 0.0
  %v476 = vmax.f32 %v458, 0.0
  %v477 = vld [vmem:[%s3] sm:$0xff]
  %v478 = vld [vmem:[%s3 + $0x8] sm:$0xff]
  %v479 = vld [vmem:[#allocation2] sm:$0x1]
  %v481 = vlaneseq
  %v482 = vshrl.u32 %v481, 7
  %v483 = vsub.s32 0, %v482
  %v484 = vrot.slane %v479, %v483
  %vm486 = vcmask 130048
  %v488 = vsel %vm486, %v461, 0
  %v491 = vsel %vm486, %v462, 0
  %v494 = vsel %vm486, %v463, 0
  %v497 = vsel %vm486, %v464, 0
  %v500 = vsel %vm486, %v465, 0
  %v503 = vsel %vm486, %v466, 0
  %v506 = vsel %vm486, %v467, 0
  %v509 = vsel %vm486, %v468, 0
  %v512 = vsel %vm486, %v469, 0
  %v515 = vsel %vm486, %v470, 0
  %v518 = vsel %vm486, %v471, 0
  %v521 = vsel %vm486, %v472, 0
  %v524 = vsel %vm486, %v473, 0
  %v527 = vsel %vm486, %v474, 0
  %v530 = vsel %vm486, %v475, 0
  %v533 = vsel %vm486, %v476, 0
  %535 = vmatprep.subr.mxu0 0.0
  %536 = vmatpush1.msra.mxu0 0.0
  %537 = vmatprep.subr.mxu0 0.0
  %538 = vmatpush1.msra.mxu0 0.0
  %539 = vmatprep.subr.mxu0 0.0
  %540 = vmatpush1.msra.mxu0 0.0
  %541 = vmatprep.subr.mxu0 0.0
  %542 = vmatpush1.msra.mxu0 0.0
  %543 = vmatprep.subr.mxu0 0.0
  %544 = vmatpush1.msra.mxu0 0.0
  %545 = vmatprep.subr.mxu0 0.0
  %546 = vmatpush1.msra.mxu0 0.0
  %547 = vmatprep.subr.mxu0 0.0
  %548 = vmatpush1.msra.mxu0 0.0
  %549 = vmatprep.subr.mxu0 0.0
  %550 = vmatpush1.msra.mxu0 0.0
  %551 = vmatprep.subr.mxu0 0.0
  %552 = vmatpush1.msra.mxu0 0.0
  %553 = vmatprep.subr.mxu0 0.0
  %554 = vmatpush1.msra.mxu0 0.0
  %555 = vmatprep.subr.mxu0 0.0
  %556 = vmatpush1.msra.mxu0 0.0
  %557 = vmatprep.subr.mxu0 0.0
  %558 = vmatpush1.msra.mxu0 0.0
  %559 = vmatprep.subr.mxu0 0.0
  %560 = vmatpush1.msra.mxu0 0.0
  %561 = vmatprep.subr.mxu0 0.0
  %562 = vmatpush1.msra.mxu0 0.0
  %563 = vmatprep.subr.mxu0 0.0
  %564 = vmatpush1.msra.mxu0 %v478
  %565 = vmatprep.subr.mxu0 0.0
  %566 = vmatpush1.msra.mxu0 %v477
  %567 = vmatprep.subr.mxu0 0.0
  %568 = vmatpush2.msra.mxu0 0.0
  %569 = vmatprep.subr.mxu0 0.0
  %570 = vmatpush2.msra.mxu0 0.0
  %571 = vmatprep.subr.mxu0 0.0
  %572 = vmatpush2.msra.mxu0 0.0
  %573 = vmatprep.subr.mxu0 0.0
  %574 = vmatpush2.msra.mxu0 0.0
  %575 = vmatprep.subr.mxu0 0.0
  %576 = vmatpush2.msra.mxu0 0.0
  %577 = vmatprep.subr.mxu0 0.0
  %578 = vmatpush2.msra.mxu0 0.0
  %579 = vmatprep.subr.mxu0 0.0
  %580 = vmatpush2.msra.mxu0 0.0
  %581 = vmatprep.subr.mxu0 0.0
  %582 = vmatpush2.msra.mxu0 0.0
  %583 = vmatprep.subr.mxu0 0.0
  %584 = vmatpush2.msra.mxu0 0.0
  %585 = vmatprep.subr.mxu0 0.0
  %586 = vmatpush2.msra.mxu0 0.0
  %587 = vmatprep.subr.mxu0 0.0
  %588 = vmatpush2.msra.mxu0 0.0
  %589 = vmatprep.subr.mxu0 0.0
  %590 = vmatpush2.msra.mxu0 0.0
  %591 = vmatprep.subr.mxu0 0.0
  %592 = vmatpush2.msra.mxu0 0.0
  %593 = vmatprep.subr.mxu0 0.0
  %594 = vmatpush2.msra.mxu0 0.0
  %595 = vmatprep.subr.mxu0 0.0
  %596 = vmatpush2.msra.mxu0 0.0
  %597 = vmatprep.subr.mxu0 0.0
  %598 = vmatpush2.msra.mxu0 0.0
  %599 = vmatprep.mubr.f32.mxu0 0.0
  %600 = vmatmul.mubr.f32.gmra.mxu0 %v488
  %v601 = vpop.f32.mrf.mxu0
  %v602 = vadd.f32 %v484, %v601
  %v603 = vpop.f32.mrf.mxu0
  %604 = vmatprep.mubr.f32.mxu0 0.0
  %605 = vmatmul.mubr.f32.gmra.mxu0 %v491
  %v606 = vpop.f32.mrf.mxu0
  %v607 = vadd.f32 %v484, %v606
  %v608 = vpop.f32.mrf.mxu0
  %609 = vmatprep.mubr.f32.mxu0 0.0
  %610 = vmatmul.mubr.f32.gmra.mxu0 %v494
  %v611 = vpop.f32.mrf.mxu0
  %v612 = vadd.f32 %v484, %v611
  %v613 = vpop.f32.mrf.mxu0
  %614 = vmatprep.mubr.f32.mxu0 0.0
  %615 = vmatmul.mubr.f32.gmra.mxu0 %v497
  %v616 = vpop.f32.mrf.mxu0
  %v617 = vadd.f32 %v484, %v616
  %v618 = vpop.f32.mrf.mxu0
  %619 = vmatprep.mubr.f32.mxu0 0.0
  %620 = vmatmul.mubr.f32.gmra.mxu0 %v500
  %v621 = vpop.f32.mrf.mxu0
  %v622 = vadd.f32 %v484, %v621
  %v623 = vpop.f32.mrf.mxu0
  %624 = vmatprep.mubr.f32.mxu0 0.0
  %625 = vmatmul.mubr.f32.gmra.mxu0 %v503
  %v626 = vpop.f32.mrf.mxu0
  %v627 = vadd.f32 %v484, %v626
  %v628 = vpop.f32.mrf.mxu0
  %629 = vmatprep.mubr.f32.mxu0 0.0
  %630 = vmatmul.mubr.f32.gmra.mxu0 %v506
  %v631 = vpop.f32.mrf.mxu0
  %v632 = vadd.f32 %v484, %v631
  %v633 = vpop.f32.mrf.mxu0
  %634 = vmatprep.mubr.f32.mxu0 0.0
  %635 = vmatmul.mubr.f32.gmra.mxu0 %v509
  %v636 = vpop.f32.mrf.mxu0
  %v637 = vadd.f32 %v484, %v636
  %v638 = vpop.f32.mrf.mxu0
  %639 = vmatprep.mubr.f32.mxu0 0.0
  %640 = vmatmul.mubr.f32.gmra.mxu0 %v512
  %v641 = vpop.f32.mrf.mxu0
  %v642 = vadd.f32 %v484, %v641
  %v643 = vpop.f32.mrf.mxu0
  %644 = vmatprep.mubr.f32.mxu0 0.0
  %645 = vmatmul.mubr.f32.gmra.mxu0 %v515
  %v646 = vpop.f32.mrf.mxu0
  %v647 = vadd.f32 %v484, %v646
  %v648 = vpop.f32.mrf.mxu0
  %649 = vmatprep.mubr.f32.mxu0 0.0
  %650 = vmatmul.mubr.f32.gmra.mxu0 %v518
  %v651 = vpop.f32.mrf.mxu0
  %v652 = vadd.f32 %v484, %v651
  %v653 = vpop.f32.mrf.mxu0
  %654 = vmatprep.mubr.f32.mxu0 0.0
  %655 = vmatmul.mubr.f32.gmra.mxu0 %v521
  %v656 = vpop.f32.mrf.mxu0
  %v657 = vadd.f32 %v484, %v656
  %v658 = vpop.f32.mrf.mxu0
  %659 = vmatprep.mubr.f32.mxu0 0.0
  %660 = vmatmul.mubr.f32.gmra.mxu0 %v524
  %v661 = vpop.f32.mrf.mxu0
  %v662 = vadd.f32 %v484, %v661
  %v663 = vpop.f32.mrf.mxu0
  %664 = vmatprep.mubr.f32.mxu0 0.0
  %665 = vmatmul.mubr.f32.gmra.mxu0 %v527
  %v666 = vpop.f32.mrf.mxu0
  %v667 = vadd.f32 %v484, %v666
  %v668 = vpop.f32.mrf.mxu0
  %669 = vmatprep.mubr.f32.mxu0 0.0
  %670 = vmatmul.mubr.f32.gmra.mxu0 %v530
  %v671 = vpop.f32.mrf.mxu0
  %v672 = vadd.f32 %v484, %v671
  %v673 = vpop.f32.mrf.mxu0
  %674 = vmatprep.mubr.f32.mxu0 0.0
  %675 = vmatmul.mubr.f32.gmra.mxu0 %v533
  %v676 = vpop.f32.mrf.mxu0
  %v677 = vadd.f32 %v484, %v676
  %v678 = vpop.f32.mrf.mxu0
  %679 = vdwg.mxu0
  %vm680 = vcmask 7168
  %681 = vst.msk [vmem:[%s5] sm:$0xff] %vm680, %v602
  %682 = vst.msk [vmem:[%s5 + $0x8] sm:$0xff] %vm680, %v607
  %683 = vst.msk [vmem:[%s5 + $0x10] sm:$0xff] %vm680, %v612
  %684 = vst.msk [vmem:[%s5 + $0x18] sm:$0xff] %vm680, %v617
  %685 = vst.msk [vmem:[%s5 + $0x20] sm:$0xff] %vm680, %v622
  %686 = vst.msk [vmem:[%s5 + $0x28] sm:$0xff] %vm680, %v627
  %687 = vst.msk [vmem:[%s5 + $0x30] sm:$0xff] %vm680, %v632
  %688 = vst.msk [vmem:[%s5 + $0x38] sm:$0xff] %vm680, %v637
  %689 = vst.msk [vmem:[%s5 + $0x40] sm:$0xff] %vm680, %v642
  %690 = vst.msk [vmem:[%s5 + $0x48] sm:$0xff] %vm680, %v647
  %691 = vst.msk [vmem:[%s5 + $0x50] sm:$0xff] %vm680, %v652
  %692 = vst.msk [vmem:[%s5 + $0x58] sm:$0xff] %vm680, %v657
  %693 = vst.msk [vmem:[%s5 + $0x60] sm:$0xff] %vm680, %v662
  %694 = vst.msk [vmem:[%s5 + $0x68] sm:$0xff] %vm680, %v667
  %695 = vst.msk [vmem:[%s5 + $0x70] sm:$0xff] %vm680, %v672
  %696 = vst.msk [vmem:[%s5 + $0x78] sm:$0xff] %vm680, %v677
  // Predicated region
  $region22: #{transunet_forward.7} parent=0 // pred_check
    _
  $region23: #{transunet_forward.7} parent=0 // pred_check_branch
    %698 = sbr.rel (0) target = $region25
  $region24: #{transunet_forward.7} parent=0 // pred_region
    _
  $region25: #{transunet_forward.7} parent=0 // pred_fallthru
    _
  // Predicated region
  $region26: #{transunet_forward.7} parent=0 // pred_check
    _
  $region27: #{transunet_forward.7} parent=0 // pred_check_branch
    %700 = sbr.rel (0) target = $region29
  $region28: #{transunet_forward.7} parent=0 // pred_region
    _
  $region29: #{transunet_forward.7} parent=0 // pred_fallthru
    _

</llo_original>
